<compile_context>
chip_gen: v7x
topology: tpu7x:2x2x1
jax: 0.10.0
libtpu: 0.0.40
codegen_flags: <defaults>
</compile_context>

<pallas_src>
import math
import functools

import jax
import jax.numpy as jnp
from jax.experimental import pallas as pl
from jax.experimental.pallas import tpu as pltpu


# ----------------------------- in-kernel helpers -----------------------------

def _layer_norm(x, g, b, eps=1e-6):
    # PyTorch nn.LayerNorm: biased variance over last dim, eps inside sqrt. fp32 stats.
    mu = jnp.mean(x, axis=-1, keepdims=True)
    var = jnp.mean((x - mu) ** 2, axis=-1, keepdims=True)
    return (x - mu) * jax.lax.rsqrt(var + eps) * g + b


def _gelu(x):
    # PreSumm's tanh-approximation gelu used inside PositionwiseFeedForward.
    return 0.5 * x * (1.0 + jnp.tanh(math.sqrt(2.0 / math.pi) * (x + 0.044715 * x * x * x)))


# --------------------------------- the kernel --------------------------------

def encoder_layer_kernel(x_ref, mq_ref, kb_ref, mk_ref, pe_ref,
                         lnA_g_ref, lnA_b_ref,
                         wq_ref, bq_ref, wk_ref, bk_ref, wv_ref, bv_ref,
                         woA_ref, boA_ref,
                         lnF_g_ref, lnF_b_ref, w1_ref, b1_ref, w2_ref, b2_ref,
                         lnfin_g_ref, lnfin_b_ref, wout_ref, bout_ref,
                         out_ref, x_carry, ctx_sc, *, heads):
    # grid = (batch_block, layer); this body handles ONE layer of ONE batch block.
    l = pl.program_id(1)
    num_layers = pl.num_programs(1)

    bb, n, d = x_ref.shape            # (Bb, N, D) batch block
    rows = bb * n
    dh = d // heads

    # ---- layer 0: x = top_vecs * mask + pos_emb; residual stream persists in fp32 VMEM ----
    @pl.when(l == 0)
    def _():
        x0 = x_ref[...] * mq_ref[...] + pe_ref[...]          # (Bb, N, D); pe broadcasts over Bb
        x_carry[...] = x0.reshape(rows, d)

    x = x_carry[...]                                         # (Bb*N, D) fp32 residual stream

    # Pre-LN on every layer except the first. Blend instead of control flow on the traced
    # layer index (LN of this tile is negligible next to the matmuls).
    h_ln = _layer_norm(x, lnA_g_ref[0], lnA_b_ref[0])
    use_ln = (l > 0).astype(jnp.float32)
    h = x + use_ln * (h_ln - x)
    hb = h.astype(jnp.bfloat16)

    # ---- self-attention: full-D (Bb*N, D)@(D, D) projections, bf16 operands / fp32 acc ----
    # 1/sqrt(d_head) is already folded into wq/bq by the wrapper. q/k/v are cast to bf16 ONCE.
    q = (jnp.dot(hb, wq_ref[0], preferred_element_type=jnp.float32)
         + bq_ref[0]).astype(jnp.bfloat16)
    k = (jnp.dot(hb, wk_ref[0], preferred_element_type=jnp.float32)
         + bk_ref[0]).astype(jnp.bfloat16)
    v = (jnp.dot(hb, wv_ref[0], preferred_element_type=jnp.float32)
         + bv_ref[0]).astype(jnp.bfloat16)
    q3 = q.reshape(bb, n, d)
    k3 = k.reshape(bb, n, d)
    v3 = v.reshape(bb, n, d)

    # Additive key-padding bias (0 valid / -1e18 pad), precomputed in the wrapper. Padded keys
    # underflow to 0 after the max-subtracted exp. (A fully-padded row softmaxes over its raw
    # scores instead of going uniform, but such a row is zeroed by the final mask anyway.)
    key_bias = kb_ref[...]                                   # (Bb, 1, N) fp32

    # Per-head attention: batched (over Bb) einsums; each head's context is written straight
    # into the bf16 VMEM scratch so the (Bb, N, N) score intermediates die per head.
    # TODO(synk): for large head counts switch to lax.fori_loop over heads with pl.ds slices
    # on q/k/v scratch refs (and optionally pad dh to 128 for lane-aligned slabs).
    for hh in range(heads):                                  # small static unroll
        lo = hh * dh
        qh = q3[:, :, lo:lo + dh]                            # (Bb, N, dh) bf16
        kh = k3[:, :, lo:lo + dh]
        vh = v3[:, :, lo:lo + dh]
        s = jnp.einsum('bqd,bkd->bqk', qh, kh,
                       preferred_element_type=jnp.float32)   # (Bb, N, N) fp32
        s = s + key_bias
        s = s - jnp.max(s, axis=-1, keepdims=True)
        e = jnp.exp(s)
        p = e * pl.reciprocal(jnp.sum(e, axis=-1, keepdims=True), approx=True)
        ctx_h = jnp.einsum('bqk,bkd->bqd', p.astype(jnp.bfloat16), vh,
                           preferred_element_type=jnp.float32)
        ctx_sc[:, :, lo:lo + dh] = ctx_h.astype(jnp.bfloat16)

    ctx = ctx_sc[...].reshape(rows, d)                       # (Bb*N, D) bf16

    # Fused output projection over all heads: ONE (Bb*N, D)@(D, D) matmul.
    attn = jnp.dot(ctx, woA_ref[0], preferred_element_type=jnp.float32) + boA_ref[0]
    out = attn + x                                           # dropout(context) + inputs

    # ---- PositionwiseFeedForward: LN -> W1 -> gelu -> W2 -> +residual ----
    hn = _layer_norm(out, lnF_g_ref[0], lnF_b_ref[0]).astype(jnp.bfloat16)
    inter = _gelu(jnp.dot(hn, w1_ref[0], preferred_element_type=jnp.float32) + b1_ref[0])
    ff = jnp.dot(inter.astype(jnp.bfloat16), w2_ref[0],
                 preferred_element_type=jnp.float32) + b2_ref[0]
    x_new = ff + out
    x_carry[...] = x_new

    # ---- after the last layer: final LN, wo (D -> 1), sigmoid, mask; lane-dense store ----
    @pl.when(l == num_layers - 1)
    def _():
        xf = _layer_norm(x_new, lnfin_g_ref[...], lnfin_b_ref[...])      # (Bb*N, D)
        logit = jnp.sum(xf.reshape(bb, n, d) * wout_ref[...], axis=-1) + bout_ref[...]  # (Bb, N)
        scores = jax.nn.sigmoid(logit)[:, None, :] * mk_ref[...]         # (Bb, 1, N)
        out_ref[...] = scores                                            # scores along lanes


# --------------------------------- wrapper ------------------------------------

def _pick_batch_block(batch, n_sents, target_rows=256):
    """Smallest batch block whose flattened rows reach the MXU-native row count, while (if
    possible) leaving >= 2 grid steps on the parallel batch axis (keeps both v7x TCs busy)."""
    divisors = [d for d in range(1, batch + 1) if batch % d == 0]
    reaching = [d for d in divisors if d * n_sents >= target_rows]
    if reaching:
        bb = min(reaching)
        if batch // bb < 2:
            two_step = [d for d in divisors if batch // d >= 2]
            if two_step:
                bb = max(two_step)
        return bb
    two_step = [d for d in divisors if batch // d >= 2]
    return max(two_step) if two_step else batch


def _nbytes(shape, dtype):
    n = 1
    for d in shape:
        n *= d
    return n * jnp.dtype(dtype).itemsize


def transformer_inter_encoder(top_vecs, mask_bool, params, *, heads, num_layers,
                              batch_block=None):
    B, N, D = top_vecs.shape
    F = params['w1'].shape[-1]
    assert num_layers >= 1 and D % heads == 0 and B >= 1
    L = num_layers
    dh = D // heads
    scale = 1.0 / math.sqrt(dh)

    Bb = batch_block if batch_block is not None else _pick_batch_block(B, N)
    assert B % Bb == 0

    f32, bf16 = jnp.float32, jnp.bfloat16
    maskf = mask_bool.astype(f32)
    mask_q = maskf[:, :, None]                      # (B, N, 1) query/row layout (layer-0 init)
    mask_k = maskf[:, None, :]                      # (B, 1, N) lane layout (final multiply)
    key_bias = (mask_k - 1.0) * 1e18                # (B, 1, N) additive bias: 0 valid / -1e18 pad

    # bf16 weights for the MXU (halves weight DMA/VMEM); biases & LN params stay fp32.
    # Fold the 1/sqrt(d_head) query scale into Wq / bq.
    wq = (params['wq'] * scale).astype(bf16)
    bq = (params['bq'] * scale).reshape(L, 1, D).astype(f32)
    wk = params['wk'].astype(bf16);  bk = params['bk'].reshape(L, 1, D)
    wv = params['wv'].astype(bf16);  bv = params['bv'].reshape(L, 1, D)
    woA = params['woA'].astype(bf16); boA = params['boA'].reshape(L, 1, D)
    w1 = params['w1'].astype(bf16);  b1 = params['b1'].reshape(L, 1, F)
    w2 = params['w2'].astype(bf16);  b2 = params['b2'].reshape(L, 1, D)
    lnA_g = params['lnA_g'].reshape(L, 1, D); lnA_b = params['lnA_b'].reshape(L, 1, D)
    lnF_g = params['lnF_g'].reshape(L, 1, D); lnF_b = params['lnF_b'].reshape(L, 1, D)
    pe = params['pe'][:, :N].astype(f32)

    def idx_b(b, l): return (b, 0, 0)    # batch-blocked activations
    def idx_l(b, l): return (l, 0, 0)    # layer-streamed weights
    def idx_0(b, l): return (0, 0, 0)    # broadcast 3-D constants
    def idx_02(b, l): return (0, 0)      # broadcast 2-D constants

    # (array, block_shape, index_map) — a block's last two dims always equal the array's
    # last two dims (satisfies the (8,128) BlockSpec rule at any D / d_ff / N).
    entries = [
        (top_vecs.astype(f32), (Bb, N, D), idx_b),
        (mask_q,               (Bb, N, 1), idx_b),
        (key_bias,             (Bb, 1, N), idx_b),
        (mask_k,               (Bb, 1, N), idx_b),
        (pe,                   (1, N, D), idx_0),
        (lnA_g, (1, 1, D), idx_l), (lnA_b, (1, 1, D), idx_l),
        (wq,    (1, D, D), idx_l), (bq,    (1, 1, D), idx_l),
        (wk,    (1, D, D), idx_l), (bk,    (1, 1, D), idx_l),
        (wv,    (1, D, D), idx_l), (bv,    (1, 1, D), idx_l),
        (woA,   (1, D, D), idx_l), (boA,   (1, 1, D), idx_l),
        (lnF_g, (1, 1, D), idx_l), (lnF_b, (1, 1, D), idx_l),
        (w1,    (1, D, F), idx_l), (b1,    (1, 1, F), idx_l),
        (w2,    (1, F, D), idx_l), (b2,    (1, 1, D), idx_l),
        (params['lnfin_g'], (1, D), idx_02), (params['lnfin_b'], (1, D), idx_02),
        (params['wout'],    (1, D), idx_02), (params['bout'],    (1, 1), idx_02),
    ]
    inputs = [a for a, _, _ in entries]
    in_specs = [pl.BlockSpec(bs, im) for _, bs, im in entries]
    out_spec = pl.BlockSpec((Bb, 1, N), idx_b)                # lane-dense score slab

    # VMEM budget: double-buffered input blocks + output block + carried residual/ctx scratch
    # + headroom for fp32 intermediates. Capped at ~85% of the physical per-core VMEM so it
    # uses v5e/v6e's 128 MiB while leaving Mosaic headroom on v7x's 64 MiB.
    vmem_est = sum(2 * _nbytes(bs, a.dtype) for a, bs, _ in entries)
    vmem_est += 2 * _nbytes((Bb, 1, N), f32)                                  # output block
    vmem_est += _nbytes((Bb * N, D), f32) + _nbytes((Bb, N, D), bf16)         # scratches
    vmem_est += 10 * _nbytes((Bb * N, max(D, F)), f32)                        # live intermediates
    vmem_est += 4 * _nbytes((Bb, N, N), f32)                                  # one head's scores
    try:
        info = pltpu.get_tpu_info()
        vmem_cap = int(getattr(info, "vmem_capacity_bytes", 64 * 1024 * 1024))
    except Exception:
        vmem_cap = 64 * 1024 * 1024
    vmem_limit = int(min(max(int(1.5 * vmem_est), 16 * 1024 * 1024),
                         int(0.85 * vmem_cap)))

    kernel = functools.partial(encoder_layer_kernel, heads=heads)
    scores = pl.pallas_call(
        kernel,
        out_shape=jax.ShapeDtypeStruct((B, 1, N), jnp.float32),
        grid_spec=pltpu.PrefetchScalarGridSpec(
            num_scalar_prefetch=0,
            grid=(B // Bb, num_layers),            # layer axis innermost: residual carry valid
            in_specs=in_specs,
            out_specs=out_spec,
            scratch_shapes=[
                pltpu.VMEM((Bb * N, D), jnp.float32),   # carried residual stream (flat rows)
                pltpu.VMEM((Bb, N, D), jnp.bfloat16),   # per-head context write-out (no concat)
            ],
        ),
        compiler_params=pltpu.CompilerParams(
            dimension_semantics=("parallel", "arbitrary"),   # batch blocks shard across TCs
            vmem_limit_bytes=vmem_limit,
        ),
    )(*inputs)
    return scores[:, 0, :]                                   # (B, N)


# ----------------------------- parameter setup (glue) -------------------------

def make_pos_emb(n_sents, dim):
    # PositionalEncoding buffer pe[:, :n_sents]  (no sqrt(dim) scale in this forward path)
    position = jnp.arange(n_sents, dtype=jnp.float32)[:, None]
    div_term = jnp.exp(jnp.arange(0, dim, 2, dtype=jnp.float32) * -(math.log(10000.0) / dim))
    ang = position * div_term                                    # (n, dim/2)
    pe = jnp.stack([jnp.sin(ang), jnp.cos(ang)], axis=-1).reshape(n_sents, dim)
    return pe[None]                                              # (1, n, dim)


def init_params(key, d_model, d_ff, num_layers, n_sents):
    ks = jax.random.split(key, 8)
    nrm = lambda k, shape: (0.05 * jax.random.normal(k, shape)).astype(jnp.float32)
    L, D, F = num_layers, d_model, d_ff
    return {
        'pe': make_pos_emb(n_sents, D).astype(jnp.float32),
        'lnA_g': jnp.ones((L, D), jnp.float32), 'lnA_b': jnp.zeros((L, D), jnp.float32),
        'wq': nrm(ks[0], (L, D, D)), 'bq': jnp.zeros((L, D), jnp.float32),
        'wk': nrm(ks[1], (L, D, D)), 'bk': jnp.zeros((L, D), jnp.float32),
        'wv': nrm(ks[2], (L, D, D)), 'bv': jnp.zeros((L, D), jnp.float32),
        'woA': nrm(ks[3], (L, D, D)), 'boA': jnp.zeros((L, D), jnp.float32),
        'lnF_g': jnp.ones((L, D), jnp.float32), 'lnF_b': jnp.zeros((L, D), jnp.float32),
        'w1': nrm(ks[4], (L, D, F)), 'b1': jnp.zeros((L, F), jnp.float32),
        'w2': nrm(ks[5], (L, F, D)), 'b2': jnp.zeros((L, D), jnp.float32),
        'lnfin_g': jnp.ones((1, D), jnp.float32), 'lnfin_b': jnp.zeros((1, D), jnp.float32),
        'wout': nrm(ks[6], (1, D)), 'bout': nrm(ks[7], (1, 1)),
    }


# ------------------------------------ main ------------------------------------

if __name__ == "__main__":
    B, N = 2, 8                   # batch, n_sents
    D_MODEL, D_FF = 32, 64
    HEADS, NUM_LAYERS = 4, 2

    key = jax.random.PRNGKey(0)
    k_x, k_p = jax.random.split(key)

    top_vecs = jax.random.normal(k_x, (B, N, D_MODEL), jnp.float32)
    # boolean sentence mask: True = real sentence, False = padding
    mask = jnp.array([[1, 1, 1, 1, 1, 1, 1, 1],
                      [1, 1, 1, 1, 1, 0, 0, 0]], dtype=bool)

    params = init_params(k_p, D_MODEL, D_FF, NUM_LAYERS, N)

    sent_scores = transformer_inter_encoder(top_vecs, mask, params,
                                            heads=HEADS, num_layers=NUM_LAYERS)
    sent_scores = jax.block_until_ready(sent_scores)

    assert sent_scores.shape == (B, N)
    assert bool(jnp.all(jnp.isfinite(sent_scores)))
    # padded sentences must score exactly 0 after the final mask multiply
    assert bool(jnp.all(sent_scores[1, 5:] == 0.0))
    print("KERNEL_OK")
</pallas_src>

<mosaic_0001>
module attributes {stable_mosaic.version = 11 : i64} {
  func.func @encoder_layer_kernel(%arg0: i32, %arg1: i32, %arg2: memref<1x8x32xf32, #tpu.memory_space<vmem>>, %arg3: memref<1x8x1xf32, #tpu.memory_space<vmem>>, %arg4: memref<1x1x8xf32, #tpu.memory_space<vmem>>, %arg5: memref<1x1x8xf32, #tpu.memory_space<vmem>>, %arg6: memref<1x8x32xf32, #tpu.memory_space<vmem>>, %arg7: memref<1x1x32xf32, #tpu.memory_space<vmem>>, %arg8: memref<1x1x32xf32, #tpu.memory_space<vmem>>, %arg9: memref<1x32x32xbf16, #tpu.memory_space<vmem>>, %arg10: memref<1x1x32xf32, #tpu.memory_space<vmem>>, %arg11: memref<1x32x32xbf16, #tpu.memory_space<vmem>>, %arg12: memref<1x1x32xf32, #tpu.memory_space<vmem>>, %arg13: memref<1x32x32xbf16, #tpu.memory_space<vmem>>, %arg14: memref<1x1x32xf32, #tpu.memory_space<vmem>>, %arg15: memref<1x32x32xbf16, #tpu.memory_space<vmem>>, %arg16: memref<1x1x32xf32, #tpu.memory_space<vmem>>, %arg17: memref<1x1x32xf32, #tpu.memory_space<vmem>>, %arg18: memref<1x1x32xf32, #tpu.memory_space<vmem>>, %arg19: memref<1x32x64xbf16, #tpu.memory_space<vmem>>, %arg20: memref<1x1x64xf32, #tpu.memory_space<vmem>>, %arg21: memref<1x64x32xbf16, #tpu.memory_space<vmem>>, %arg22: memref<1x1x32xf32, #tpu.memory_space<vmem>>, %arg23: memref<1x32xf32, #tpu.memory_space<vmem>>, %arg24: memref<1x32xf32, #tpu.memory_space<vmem>>, %arg25: memref<1x32xf32, #tpu.memory_space<vmem>>, %arg26: memref<1x1xf32, #tpu.memory_space<vmem>>, %arg27: memref<1x1x8xf32, #tpu.memory_space<vmem>>, %arg28: memref<8x32xf32, #tpu.memory_space<vmem>>, %arg29: memref<1x8x32xbf16, #tpu.memory_space<vmem>>) attributes {dimension_semantics = [#tpu.dimension_semantics<parallel>, #tpu.dimension_semantics<arbitrary>], iteration_bounds = array<i64: 2, 2>, scalar_prefetch = 0 : i64, scratch_operands = 2 : i64, tpu.core_type = #tpu.core_type<tc>, window_params = [{transform_indices = @transform_0, window_bounds = array<i64: 1, 8, 32>}, {transform_indices = @transform_1, window_bounds = array<i64: 1, 8, 1>}, {transform_indices = @transform_2, window_bounds = array<i64: 1, 1, 8>}, {transform_indices = @transform_3, window_bounds = array<i64: 1, 1, 8>}, {pipeline_mode = #tpu.pipeline_mode<synchronous>, transform_indices = @transform_4, window_bounds = array<i64: 1, 8, 32>}, {transform_indices = @transform_5, window_bounds = array<i64: 1, 1, 32>}, {transform_indices = @transform_6, window_bounds = array<i64: 1, 1, 32>}, {transform_indices = @transform_7, window_bounds = array<i64: 1, 32, 32>}, {transform_indices = @transform_8, window_bounds = array<i64: 1, 1, 32>}, {transform_indices = @transform_9, window_bounds = array<i64: 1, 32, 32>}, {transform_indices = @transform_10, window_bounds = array<i64: 1, 1, 32>}, {transform_indices = @transform_11, window_bounds = array<i64: 1, 32, 32>}, {transform_indices = @transform_12, window_bounds = array<i64: 1, 1, 32>}, {transform_indices = @transform_13, window_bounds = array<i64: 1, 32, 32>}, {transform_indices = @transform_14, window_bounds = array<i64: 1, 1, 32>}, {transform_indices = @transform_15, window_bounds = array<i64: 1, 1, 32>}, {transform_indices = @transform_16, window_bounds = array<i64: 1, 1, 32>}, {transform_indices = @transform_17, window_bounds = array<i64: 1, 32, 64>}, {transform_indices = @transform_18, window_bounds = array<i64: 1, 1, 64>}, {transform_indices = @transform_19, window_bounds = array<i64: 1, 64, 32>}, {transform_indices = @transform_20, window_bounds = array<i64: 1, 1, 32>}, {pipeline_mode = #tpu.pipeline_mode<synchronous>, transform_indices = @transform_21, window_bounds = array<i64: 1, 32>}, {pipeline_mode = #tpu.pipeline_mode<synchronous>, transform_indices = @transform_22, window_bounds = array<i64: 1, 32>}, {pipeline_mode = #tpu.pipeline_mode<synchronous>, transform_indices = @transform_23, window_bounds = array<i64: 1, 32>}, {pipeline_mode = #tpu.pipeline_mode<synchronous>, transform_indices = @transform_24, window_bounds = array<i64: 1, 1>}, {transform_indices = @transform_25, window_bounds = array<i64: 1, 1, 8>}]} {
    %c0_i32 = arith.constant 0 : i32
    %0 = arith.cmpi eq, %arg1, %c0_i32 : i32
    %1 = arith.extui %0 : i1 to i32
    %c0_i32_0 = arith.constant 0 : i32
    %2 = arith.cmpi ne, %1, %c0_i32_0 : i32
    scf.if %2 {
      %c0_104 = arith.constant 0 : index
      %c0_105 = arith.constant 0 : index
      %c0_106 = arith.constant 0 : index
      %216 = vector.load %arg2[%c0_104, %c0_105, %c0_106] : memref<1x8x32xf32, #tpu.memory_space<vmem>>, vector<1x8x32xf32>
      %c0_107 = arith.constant 0 : index
      %c0_108 = arith.constant 0 : index
      %c0_109 = arith.constant 0 : index
      %217 = vector.load %arg3[%c0_107, %c0_108, %c0_109] : memref<1x8x1xf32, #tpu.memory_space<vmem>>, vector<1x8x1xf32>
      %218 = vector.broadcast %217 : vector<1x8x1xf32> to vector<1x8x32xf32>
      %219 = arith.mulf %216, %218 : vector<1x8x32xf32>
      %c0_110 = arith.constant 0 : index
      %c0_111 = arith.constant 0 : index
      %c0_112 = arith.constant 0 : index
      %220 = vector.load %arg6[%c0_110, %c0_111, %c0_112] : memref<1x8x32xf32, #tpu.memory_space<vmem>>, vector<1x8x32xf32>
      %221 = arith.addf %219, %220 : vector<1x8x32xf32>
      %222 = vector.shape_cast %221 : vector<1x8x32xf32> to vector<8x32xf32>
      %c0_113 = arith.constant 0 : index
      %c0_114 = arith.constant 0 : index
      %223 = vector.load %arg28[%c0_113, %c0_114] : memref<8x32xf32, #tpu.memory_space<vmem>>, vector<8x32xf32>
      tpu.vector_store %arg28[%c0_113, %c0_114], %222 {strides = array<i32>} : memref<8x32xf32, #tpu.memory_space<vmem>>, vector<8x32xf32>,
    } else {
    }
    %c0 = arith.constant 0 : index
    %c0_1 = arith.constant 0 : index
    %3 = vector.load %arg28[%c0, %c0_1] : memref<8x32xf32, #tpu.memory_space<vmem>>, vector<8x32xf32>
    %c0_2 = arith.constant 0 : index
    %c0_3 = arith.constant 0 : index
    %c0_4 = arith.constant 0 : index
    %4 = vector.load %arg7[%c0_2, %c0_3, %c0_4] : memref<1x1x32xf32, #tpu.memory_space<vmem>>, vector<1x1x32xf32>
    %5 = vector.shape_cast %4 : vector<1x1x32xf32> to vector<1x32xf32>
    %c0_5 = arith.constant 0 : index
    %c0_6 = arith.constant 0 : index
    %c0_7 = arith.constant 0 : index
    %6 = vector.load %arg8[%c0_5, %c0_6, %c0_7] : memref<1x1x32xf32, #tpu.memory_space<vmem>>, vector<1x1x32xf32>
    %7 = vector.shape_cast %6 : vector<1x1x32xf32> to vector<1x32xf32>
    %cst = arith.constant dense<0.000000e+00> : vector<8xf32>
    %8 = vector.multi_reduction <add>, %3, %cst [1] : vector<8x32xf32> to vector<8xf32>
    %9 = vector.shape_cast %8 : vector<8xf32> to vector<8x1xf32>
    %cst_8 = arith.constant 3.200000e+01 : f32
    %10 = vector.broadcast %cst_8 : f32 to vector<8x1xf32>
    %11 = arith.divf %9, %10 : vector<8x1xf32>
    %12 = vector.broadcast %11 : vector<8x1xf32> to vector<8x32xf32>
    %13 = arith.subf %3, %12 : vector<8x32xf32>
    %14 = arith.mulf %13, %13 : vector<8x32xf32>
    %cst_9 = arith.constant dense<0.000000e+00> : vector<8xf32>
    %15 = vector.multi_reduction <add>, %14, %cst_9 [1] : vector<8x32xf32> to vector<8xf32>
    %16 = vector.shape_cast %15 : vector<8xf32> to vector<8x1xf32>
    %cst_10 = arith.constant 3.200000e+01 : f32
    %17 = vector.broadcast %cst_10 : f32 to vector<8x1xf32>
    %18 = arith.divf %16, %17 : vector<8x1xf32>
    %19 = vector.broadcast %11 : vector<8x1xf32> to vector<8x32xf32>
    %20 = arith.subf %3, %19 : vector<8x32xf32>
    %cst_11 = arith.constant 9.99999997E-7 : f32
    %21 = vector.broadcast %cst_11 : f32 to vector<8x1xf32>
    %22 = arith.addf %18, %21 : vector<8x1xf32>
    %23 = math.rsqrt %22 : vector<8x1xf32>
    %24 = vector.broadcast %23 : vector<8x1xf32> to vector<8x32xf32>
    %25 = arith.mulf %20, %24 : vector<8x32xf32>
    %26 = vector.broadcast %5 : vector<1x32xf32> to vector<8x32xf32>
    %27 = arith.mulf %25, %26 : vector<8x32xf32>
    %28 = vector.broadcast %7 : vector<1x32xf32> to vector<8x32xf32>
    %29 = arith.addf %27, %28 : vector<8x32xf32>
    %c0_i32_12 = arith.constant 0 : i32
    %30 = arith.cmpi sgt, %arg1, %c0_i32_12 : i32
    %31 = arith.extui %30 : i1 to i32
    %32 = arith.sitofp %31 : i32 to f32
    %33 = arith.subf %29, %3 : vector<8x32xf32>
    %34 = vector.broadcast %32 : f32 to vector<8x32xf32>
    %35 = arith.mulf %34, %33 : vector<8x32xf32>
    %36 = arith.addf %3, %35 : vector<8x32xf32>
    %37 = arith.truncf %36 : vector<8x32xf32> to vector<8x32xbf16>
    %c0_13 = arith.constant 0 : index
    %c0_14 = arith.constant 0 : index
    %c0_15 = arith.constant 0 : index
    %38 = vector.load %arg9[%c0_13, %c0_14, %c0_15] : memref<1x32x32xbf16, #tpu.memory_space<vmem>>, vector<1x32x32xbf16>
    %39 = vector.shape_cast %38 : vector<1x32x32xbf16> to vector<32x32xbf16>
    %cst_16 = arith.constant dense<0.000000e+00> : vector<8x32xf32>
    %40 = tpu.matmul %37, %39, %cst_16 {dimension_numbers = #tpu.dot_dimension_numbers<[1], [0], [0], [1], [0, 0, 1, 1], [], []>} : vector<8x32xbf16>, vector<32x32xbf16>, vector<8x32xf32> -> vector<8x32xf32>
    %c0_17 = arith.constant 0 : index
    %c0_18 = arith.constant 0 : index
    %c0_19 = arith.constant 0 : index
    %41 = vector.load %arg10[%c0_17, %c0_18, %c0_19] : memref<1x1x32xf32, #tpu.memory_space<vmem>>, vector<1x1x32xf32>
    %42 = vector.shape_cast %41 : vector<1x1x32xf32> to vector<1x32xf32>
    %43 = vector.broadcast %42 : vector<1x32xf32> to vector<8x32xf32>
    %44 = arith.addf %40, %43 : vector<8x32xf32>
    %45 = arith.truncf %44 : vector<8x32xf32> to vector<8x32xbf16>
    %c0_20 = arith.constant 0 : index
    %c0_21 = arith.constant 0 : index
    %c0_22 = arith.constant 0 : index
    %46 = vector.load %arg11[%c0_20, %c0_21, %c0_22] : memref<1x32x32xbf16, #tpu.memory_space<vmem>>, vector<1x32x32xbf16>
    %47 = vector.shape_cast %46 : vector<1x32x32xbf16> to vector<32x32xbf16>
    %cst_23 = arith.constant dense<0.000000e+00> : vector<8x32xf32>
    %48 = tpu.matmul %37, %47, %cst_23 {dimension_numbers = #tpu.dot_dimension_numbers<[1], [0], [0], [1], [0, 0, 1, 1], [], []>} : vector<8x32xbf16>, vector<32x32xbf16>, vector<8x32xf32> -> vector<8x32xf32>
    %c0_24 = arith.constant 0 : index
    %c0_25 = arith.constant 0 : index
    %c0_26 = arith.constant 0 : index
    %49 = vector.load %arg12[%c0_24, %c0_25, %c0_26] : memref<1x1x32xf32, #tpu.memory_space<vmem>>, vector<1x1x32xf32>
    %50 = vector.shape_cast %49 : vector<1x1x32xf32> to vector<1x32xf32>
    %51 = vector.broadcast %50 : vector<1x32xf32> to vector<8x32xf32>
    %52 = arith.addf %48, %51 : vector<8x32xf32>
    %53 = arith.truncf %52 : vector<8x32xf32> to vector<8x32xbf16>
    %c0_27 = arith.constant 0 : index
    %c0_28 = arith.constant 0 : index
    %c0_29 = arith.constant 0 : index
    %54 = vector.load %arg13[%c0_27, %c0_28, %c0_29] : memref<1x32x32xbf16, #tpu.memory_space<vmem>>, vector<1x32x32xbf16>
    %55 = vector.shape_cast %54 : vector<1x32x32xbf16> to vector<32x32xbf16>
    %cst_30 = arith.constant dense<0.000000e+00> : vector<8x32xf32>
    %56 = tpu.matmul %37, %55, %cst_30 {dimension_numbers = #tpu.dot_dimension_numbers<[1], [0], [0], [1], [0, 0, 1, 1], [], []>} : vector<8x32xbf16>, vector<32x32xbf16>, vector<8x32xf32> -> vector<8x32xf32>
    %c0_31 = arith.constant 0 : index
    %c0_32 = arith.constant 0 : index
    %c0_33 = arith.constant 0 : index
    %57 = vector.load %arg14[%c0_31, %c0_32, %c0_33] : memref<1x1x32xf32, #tpu.memory_space<vmem>>, vector<1x1x32xf32>
    %58 = vector.shape_cast %57 : vector<1x1x32xf32> to vector<1x32xf32>
    %59 = vector.broadcast %58 : vector<1x32xf32> to vector<8x32xf32>
    %60 = arith.addf %56, %59 : vector<8x32xf32>
    %61 = arith.truncf %60 : vector<8x32xf32> to vector<8x32xbf16>
    %62 = vector.shape_cast %45 : vector<8x32xbf16> to vector<1x8x32xbf16>
    %63 = vector.shape_cast %53 : vector<8x32xbf16> to vector<1x8x32xbf16>
    %64 = vector.shape_cast %61 : vector<8x32xbf16> to vector<1x8x32xbf16>
    %c0_34 = arith.constant 0 : index
    %c0_35 = arith.constant 0 : index
    %c0_36 = arith.constant 0 : index
    %65 = vector.load %arg4[%c0_34, %c0_35, %c0_36] : memref<1x1x8xf32, #tpu.memory_space<vmem>>, vector<1x1x8xf32>
    %66 = vector.extract_strided_slice %62 {offsets = [0, 0, 0], sizes = [1, 8, 8], strides = [1, 1, 1]} : vector<1x8x32xbf16> to vector<1x8x8xbf16>
    %67 = vector.extract_strided_slice %63 {offsets = [0, 0, 0], sizes = [1, 8, 8], strides = [1, 1, 1]} : vector<1x8x32xbf16> to vector<1x8x8xbf16>
    %68 = vector.extract_strided_slice %64 {offsets = [0, 0, 0], sizes = [1, 8, 8], strides = [1, 1, 1]} : vector<1x8x32xbf16> to vector<1x8x8xbf16>
    "tpu.trace_start"() <{level = 10 : i32, message = "bqd,bkd->bqk"}> : () -> ()
    %cst_37 = arith.constant dense<0.000000e+00> : vector<1x8x8xf32>
    %69 = tpu.matmul %66, %67, %cst_37 {dimension_numbers = #tpu.dot_dimension_numbers<[2], [2], [1], [1], [0, 0, 0, 1, 1, 1], [0], [0]>} : vector<1x8x8xbf16>, vector<1x8x8xbf16>, vector<1x8x8xf32> -> vector<1x8x8xf32>
    "tpu.trace_stop"() : () -> ()
    %70 = vector.broadcast %65 : vector<1x1x8xf32> to vector<1x8x8xf32>
    %71 = arith.addf %69, %70 : vector<1x8x8xf32>
    %cst_38 = arith.constant dense<0xFF800000> : vector<1x8xf32>
    %72 = vector.multi_reduction <maximumf>, %71, %cst_38 [2] : vector<1x8x8xf32> to vector<1x8xf32>
    %73 = vector.shape_cast %72 : vector<1x8xf32> to vector<1x8x1xf32>
    %74 = vector.broadcast %73 : vector<1x8x1xf32> to vector<1x8x8xf32>
    %75 = arith.subf %71, %74 : vector<1x8x8xf32>
    %76 = math.exp %75 : vector<1x8x8xf32>
    %cst_39 = arith.constant dense<0.000000e+00> : vector<1x8xf32>
    %77 = vector.multi_reduction <add>, %76, %cst_39 [2] : vector<1x8x8xf32> to vector<1x8xf32>
    %78 = vector.shape_cast %77 : vector<1x8xf32> to vector<1x8x1xf32>
    %79 = tpu.reciprocal %78 {approx = true} : vector<1x8x1xf32> -> vector<1x8x1xf32>
    %80 = vector.broadcast %79 : vector<1x8x1xf32> to vector<1x8x8xf32>
    %81 = arith.mulf %76, %80 : vector<1x8x8xf32>
    %82 = arith.truncf %81 : vector<1x8x8xf32> to vector<1x8x8xbf16>
    "tpu.trace_start"() <{level = 10 : i32, message = "bqk,bkd->bqd"}> : () -> ()
    %cst_40 = arith.constant dense<0.000000e+00> : vector<1x8x8xf32>
    %83 = tpu.matmul %82, %68, %cst_40 {dimension_numbers = #tpu.dot_dimension_numbers<[2], [1], [1], [2], [0, 0, 0, 1, 1, 2], [0], [0]>} : vector<1x8x8xbf16>, vector<1x8x8xbf16>, vector<1x8x8xf32> -> vector<1x8x8xf32>
    "tpu.trace_stop"() : () -> ()
    %84 = arith.truncf %83 : vector<1x8x8xf32> to vector<1x8x8xbf16>
    %c0_41 = arith.constant 0 : index
    %c0_42 = arith.constant 0 : index
    %c0_43 = arith.constant 0 : index
    %85 = vector.load %arg29[%c0_41, %c0_42, %c0_43] : memref<1x8x32xbf16, #tpu.memory_space<vmem>>, vector<1x8x8xbf16>
    tpu.vector_store %arg29[%c0_41, %c0_42, %c0_43], %84 {strides = array<i32>} : memref<1x8x32xbf16, #tpu.memory_space<vmem>>, vector<1x8x8xbf16>,
    %86 = vector.extract_strided_slice %62 {offsets = [0, 0, 8], sizes = [1, 8, 8], strides = [1, 1, 1]} : vector<1x8x32xbf16> to vector<1x8x8xbf16>
    %87 = vector.extract_strided_slice %63 {offsets = [0, 0, 8], sizes = [1, 8, 8], strides = [1, 1, 1]} : vector<1x8x32xbf16> to vector<1x8x8xbf16>
    %88 = vector.extract_strided_slice %64 {offsets = [0, 0, 8], sizes = [1, 8, 8], strides = [1, 1, 1]} : vector<1x8x32xbf16> to vector<1x8x8xbf16>
    "tpu.trace_start"() <{level = 10 : i32, message = "bqd,bkd->bqk"}> : () -> ()
    %cst_44 = arith.constant dense<0.000000e+00> : vector<1x8x8xf32>
    %89 = tpu.matmul %86, %87, %cst_44 {dimension_numbers = #tpu.dot_dimension_numbers<[2], [2], [1], [1], [0, 0, 0, 1, 1, 1], [0], [0]>} : vector<1x8x8xbf16>, vector<1x8x8xbf16>, vector<1x8x8xf32> -> vector<1x8x8xf32>
    "tpu.trace_stop"() : () -> ()
    %90 = vector.broadcast %65 : vector<1x1x8xf32> to vector<1x8x8xf32>
    %91 = arith.addf %89, %90 : vector<1x8x8xf32>
    %cst_45 = arith.constant dense<0xFF800000> : vector<1x8xf32>
    %92 = vector.multi_reduction <maximumf>, %91, %cst_45 [2] : vector<1x8x8xf32> to vector<1x8xf32>
    %93 = vector.shape_cast %92 : vector<1x8xf32> to vector<1x8x1xf32>
    %94 = vector.broadcast %93 : vector<1x8x1xf32> to vector<1x8x8xf32>
    %95 = arith.subf %91, %94 : vector<1x8x8xf32>
    %96 = math.exp %95 : vector<1x8x8xf32>
    %cst_46 = arith.constant dense<0.000000e+00> : vector<1x8xf32>
    %97 = vector.multi_reduction <add>, %96, %cst_46 [2] : vector<1x8x8xf32> to vector<1x8xf32>
    %98 = vector.shape_cast %97 : vector<1x8xf32> to vector<1x8x1xf32>
    %99 = tpu.reciprocal %98 {approx = true} : vector<1x8x1xf32> -> vector<1x8x1xf32>
    %100 = vector.broadcast %99 : vector<1x8x1xf32> to vector<1x8x8xf32>
    %101 = arith.mulf %96, %100 : vector<1x8x8xf32>
    %102 = arith.truncf %101 : vector<1x8x8xf32> to vector<1x8x8xbf16>
    "tpu.trace_start"() <{level = 10 : i32, message = "bqk,bkd->bqd"}> : () -> ()
    %cst_47 = arith.constant dense<0.000000e+00> : vector<1x8x8xf32>
    %103 = tpu.matmul %102, %88, %cst_47 {dimension_numbers = #tpu.dot_dimension_numbers<[2], [1], [1], [2], [0, 0, 0, 1, 1, 2], [0], [0]>} : vector<1x8x8xbf16>, vector<1x8x8xbf16>, vector<1x8x8xf32> -> vector<1x8x8xf32>
    "tpu.trace_stop"() : () -> ()
    %104 = arith.truncf %103 : vector<1x8x8xf32> to vector<1x8x8xbf16>
    %c0_48 = arith.constant 0 : index
    %c0_49 = arith.constant 0 : index
    %c8 = arith.constant 8 : index
    %105 = vector.load %arg29[%c0_48, %c0_49, %c8] : memref<1x8x32xbf16, #tpu.memory_space<vmem>>, vector<1x8x8xbf16>
    tpu.vector_store %arg29[%c0_48, %c0_49, %c8], %104 {strides = array<i32>} : memref<1x8x32xbf16, #tpu.memory_space<vmem>>, vector<1x8x8xbf16>,
    %106 = vector.extract_strided_slice %62 {offsets = [0, 0, 16], sizes = [1, 8, 8], strides = [1, 1, 1]} : vector<1x8x32xbf16> to vector<1x8x8xbf16>
    %107 = vector.extract_strided_slice %63 {offsets = [0, 0, 16], sizes = [1, 8, 8], strides = [1, 1, 1]} : vector<1x8x32xbf16> to vector<1x8x8xbf16>
    %108 = vector.extract_strided_slice %64 {offsets = [0, 0, 16], sizes = [1, 8, 8], strides = [1, 1, 1]} : vector<1x8x32xbf16> to vector<1x8x8xbf16>
    "tpu.trace_start"() <{level = 10 : i32, message = "bqd,bkd->bqk"}> : () -> ()
    %cst_50 = arith.constant dense<0.000000e+00> : vector<1x8x8xf32>
    %109 = tpu.matmul %106, %107, %cst_50 {dimension_numbers = #tpu.dot_dimension_numbers<[2], [2], [1], [1], [0, 0, 0, 1, 1, 1], [0], [0]>} : vector<1x8x8xbf16>, vector<1x8x8xbf16>, vector<1x8x8xf32> -> vector<1x8x8xf32>
    "tpu.trace_stop"() : () -> ()
    %110 = vector.broadcast %65 : vector<1x1x8xf32> to vector<1x8x8xf32>
    %111 = arith.addf %109, %110 : vector<1x8x8xf32>
    %cst_51 = arith.constant dense<0xFF800000> : vector<1x8xf32>
    %112 = vector.multi_reduction <maximumf>, %111, %cst_51 [2] : vector<1x8x8xf32> to vector<1x8xf32>
    %113 = vector.shape_cast %112 : vector<1x8xf32> to vector<1x8x1xf32>
    %114 = vector.broadcast %113 : vector<1x8x1xf32> to vector<1x8x8xf32>
    %115 = arith.subf %111, %114 : vector<1x8x8xf32>
    %116 = math.exp %115 : vector<1x8x8xf32>
    %cst_52 = arith.constant dense<0.000000e+00> : vector<1x8xf32>
    %117 = vector.multi_reduction <add>, %116, %cst_52 [2] : vector<1x8x8xf32> to vector<1x8xf32>
    %118 = vector.shape_cast %117 : vector<1x8xf32> to vector<1x8x1xf32>
    %119 = tpu.reciprocal %118 {approx = true} : vector<1x8x1xf32> -> vector<1x8x1xf32>
    %120 = vector.broadcast %119 : vector<1x8x1xf32> to vector<1x8x8xf32>
    %121 = arith.mulf %116, %120 : vector<1x8x8xf32>
    %122 = arith.truncf %121 : vector<1x8x8xf32> to vector<1x8x8xbf16>
    "tpu.trace_start"() <{level = 10 : i32, message = "bqk,bkd->bqd"}> : () -> ()
    %cst_53 = arith.constant dense<0.000000e+00> : vector<1x8x8xf32>
    %123 = tpu.matmul %122, %108, %cst_53 {dimension_numbers = #tpu.dot_dimension_numbers<[2], [1], [1], [2], [0, 0, 0, 1, 1, 2], [0], [0]>} : vector<1x8x8xbf16>, vector<1x8x8xbf16>, vector<1x8x8xf32> -> vector<1x8x8xf32>
    "tpu.trace_stop"() : () -> ()
    %124 = arith.truncf %123 : vector<1x8x8xf32> to vector<1x8x8xbf16>
    %c0_54 = arith.constant 0 : index
    %c0_55 = arith.constant 0 : index
    %c16 = arith.constant 16 : index
    %125 = vector.load %arg29[%c0_54, %c0_55, %c16] : memref<1x8x32xbf16, #tpu.memory_space<vmem>>, vector<1x8x8xbf16>
    tpu.vector_store %arg29[%c0_54, %c0_55, %c16], %124 {strides = array<i32>} : memref<1x8x32xbf16, #tpu.memory_space<vmem>>, vector<1x8x8xbf16>,
    %126 = vector.extract_strided_slice %62 {offsets = [0, 0, 24], sizes = [1, 8, 8], strides = [1, 1, 1]} : vector<1x8x32xbf16> to vector<1x8x8xbf16>
    %127 = vector.extract_strided_slice %63 {offsets = [0, 0, 24], sizes = [1, 8, 8], strides = [1, 1, 1]} : vector<1x8x32xbf16> to vector<1x8x8xbf16>
    %128 = vector.extract_strided_slice %64 {offsets = [0, 0, 24], sizes = [1, 8, 8], strides = [1, 1, 1]} : vector<1x8x32xbf16> to vector<1x8x8xbf16>
    "tpu.trace_start"() <{level = 10 : i32, message = "bqd,bkd->bqk"}> : () -> ()
    %cst_56 = arith.constant dense<0.000000e+00> : vector<1x8x8xf32>
    %129 = tpu.matmul %126, %127, %cst_56 {dimension_numbers = #tpu.dot_dimension_numbers<[2], [2], [1], [1], [0, 0, 0, 1, 1, 1], [0], [0]>} : vector<1x8x8xbf16>, vector<1x8x8xbf16>, vector<1x8x8xf32> -> vector<1x8x8xf32>
    "tpu.trace_stop"() : () -> ()
    %130 = vector.broadcast %65 : vector<1x1x8xf32> to vector<1x8x8xf32>
    %131 = arith.addf %129, %130 : vector<1x8x8xf32>
    %cst_57 = arith.constant dense<0xFF800000> : vector<1x8xf32>
    %132 = vector.multi_reduction <maximumf>, %131, %cst_57 [2] : vector<1x8x8xf32> to vector<1x8xf32>
    %133 = vector.shape_cast %132 : vector<1x8xf32> to vector<1x8x1xf32>
    %134 = vector.broadcast %133 : vector<1x8x1xf32> to vector<1x8x8xf32>
    %135 = arith.subf %131, %134 : vector<1x8x8xf32>
    %136 = math.exp %135 : vector<1x8x8xf32>
    %cst_58 = arith.constant dense<0.000000e+00> : vector<1x8xf32>
    %137 = vector.multi_reduction <add>, %136, %cst_58 [2] : vector<1x8x8xf32> to vector<1x8xf32>
    %138 = vector.shape_cast %137 : vector<1x8xf32> to vector<1x8x1xf32>
    %139 = tpu.reciprocal %138 {approx = true} : vector<1x8x1xf32> -> vector<1x8x1xf32>
    %140 = vector.broadcast %139 : vector<1x8x1xf32> to vector<1x8x8xf32>
    %141 = arith.mulf %136, %140 : vector<1x8x8xf32>
    %142 = arith.truncf %141 : vector<1x8x8xf32> to vector<1x8x8xbf16>
    "tpu.trace_start"() <{level = 10 : i32, message = "bqk,bkd->bqd"}> : () -> ()
    %cst_59 = arith.constant dense<0.000000e+00> : vector<1x8x8xf32>
    %143 = tpu.matmul %142, %128, %cst_59 {dimension_numbers = #tpu.dot_dimension_numbers<[2], [1], [1], [2], [0, 0, 0, 1, 1, 2], [0], [0]>} : vector<1x8x8xbf16>, vector<1x8x8xbf16>, vector<1x8x8xf32> -> vector<1x8x8xf32>
    "tpu.trace_stop"() : () -> ()
    %144 = arith.truncf %143 : vector<1x8x8xf32> to vector<1x8x8xbf16>
    %c0_60 = arith.constant 0 : index
    %c0_61 = arith.constant 0 : index
    %c24 = arith.constant 24 : index
    %145 = vector.load %arg29[%c0_60, %c0_61, %c24] : memref<1x8x32xbf16, #tpu.memory_space<vmem>>, vector<1x8x8xbf16>
    tpu.vector_store %arg29[%c0_60, %c0_61, %c24], %144 {strides = array<i32>} : memref<1x8x32xbf16, #tpu.memory_space<vmem>>, vector<1x8x8xbf16>,
    %c0_62 = arith.constant 0 : index
    %c0_63 = arith.constant 0 : index
    %c0_64 = arith.constant 0 : index
    %146 = vector.load %arg29[%c0_62, %c0_63, %c0_64] : memref<1x8x32xbf16, #tpu.memory_space<vmem>>, vector<1x8x32xbf16>
    %147 = vector.shape_cast %146 : vector<1x8x32xbf16> to vector<8x32xbf16>
    %c0_65 = arith.constant 0 : index
    %c0_66 = arith.constant 0 : index
    %c0_67 = arith.constant 0 : index
    %148 = vector.load %arg15[%c0_65, %c0_66, %c0_67] : memref<1x32x32xbf16, #tpu.memory_space<vmem>>, vector<1x32x32xbf16>
    %149 = vector.shape_cast %148 : vector<1x32x32xbf16> to vector<32x32xbf16>
    %cst_68 = arith.constant dense<0.000000e+00> : vector<8x32xf32>
    %150 = tpu.matmul %147, %149, %cst_68 {dimension_numbers = #tpu.dot_dimension_numbers<[1], [0], [0], [1], [0, 0, 1, 1], [], []>} : vector<8x32xbf16>, vector<32x32xbf16>, vector<8x32xf32> -> vector<8x32xf32>
    %c0_69 = arith.constant 0 : index
    %c0_70 = arith.constant 0 : index
    %c0_71 = arith.constant 0 : index
    %151 = vector.load %arg16[%c0_69, %c0_70, %c0_71] : memref<1x1x32xf32, #tpu.memory_space<vmem>>, vector<1x1x32xf32>
    %152 = vector.shape_cast %151 : vector<1x1x32xf32> to vector<1x32xf32>
    %153 = vector.broadcast %152 : vector<1x32xf32> to vector<8x32xf32>
    %154 = arith.addf %150, %153 : vector<8x32xf32>
    %155 = arith.addf %154, %3 : vector<8x32xf32>
    %c0_72 = arith.constant 0 : index
    %c0_73 = arith.constant 0 : index
    %c0_74 = arith.constant 0 : index
    %156 = vector.load %arg17[%c0_72, %c0_73, %c0_74] : memref<1x1x32xf32, #tpu.memory_space<vmem>>, vector<1x1x32xf32>
    %157 = vector.shape_cast %156 : vector<1x1x32xf32> to vector<1x32xf32>
    %c0_75 = arith.constant 0 : index
    %c0_76 = arith.constant 0 : index
    %c0_77 = arith.constant 0 : index
    %158 = vector.load %arg18[%c0_75, %c0_76, %c0_77] : memref<1x1x32xf32, #tpu.memory_space<vmem>>, vector<1x1x32xf32>
    %159 = vector.shape_cast %158 : vector<1x1x32xf32> to vector<1x32xf32>
    %cst_78 = arith.constant dense<0.000000e+00> : vector<8xf32>
    %160 = vector.multi_reduction <add>, %155, %cst_78 [1] : vector<8x32xf32> to vector<8xf32>
    %161 = vector.shape_cast %160 : vector<8xf32> to vector<8x1xf32>
    %cst_79 = arith.constant 3.200000e+01 : f32
    %162 = vector.broadcast %cst_79 : f32 to vector<8x1xf32>
    %163 = arith.divf %161, %162 : vector<8x1xf32>
    %164 = vector.broadcast %163 : vector<8x1xf32> to vector<8x32xf32>
    %165 = arith.subf %155, %164 : vector<8x32xf32>
    %166 = arith.mulf %165, %165 : vector<8x32xf32>
    %cst_80 = arith.constant dense<0.000000e+00> : vector<8xf32>
    %167 = vector.multi_reduction <add>, %166, %cst_80 [1] : vector<8x32xf32> to vector<8xf32>
    %168 = vector.shape_cast %167 : vector<8xf32> to vector<8x1xf32>
    %cst_81 = arith.constant 3.200000e+01 : f32
    %169 = vector.broadcast %cst_81 : f32 to vector<8x1xf32>
    %170 = arith.divf %168, %169 : vector<8x1xf32>
    %171 = vector.broadcast %163 : vector<8x1xf32> to vector<8x32xf32>
    %172 = arith.subf %155, %171 : vector<8x32xf32>
    %cst_82 = arith.constant 9.99999997E-7 : f32
    %173 = vector.broadcast %cst_82 : f32 to vector<8x1xf32>
    %174 = arith.addf %170, %173 : vector<8x1xf32>
    %175 = math.rsqrt %174 : vector<8x1xf32>
    %176 = vector.broadcast %175 : vector<8x1xf32> to vector<8x32xf32>
    %177 = arith.mulf %172, %176 : vector<8x32xf32>
    %178 = vector.broadcast %157 : vector<1x32xf32> to vector<8x32xf32>
    %179 = arith.mulf %177, %178 : vector<8x32xf32>
    %180 = vector.broadcast %159 : vector<1x32xf32> to vector<8x32xf32>
    %181 = arith.addf %179, %180 : vector<8x32xf32>
    %182 = arith.truncf %181 : vector<8x32xf32> to vector<8x32xbf16>
    %c0_83 = arith.constant 0 : index
    %c0_84 = arith.constant 0 : index
    %c0_85 = arith.constant 0 : index
    %183 = vector.load %arg19[%c0_83, %c0_84, %c0_85] : memref<1x32x64xbf16, #tpu.memory_space<vmem>>, vector<1x32x64xbf16>
    %184 = vector.shape_cast %183 : vector<1x32x64xbf16> to vector<32x64xbf16>
    %cst_86 = arith.constant dense<0.000000e+00> : vector<8x64xf32>
    %185 = tpu.matmul %182, %184, %cst_86 {dimension_numbers = #tpu.dot_dimension_numbers<[1], [0], [0], [1], [0, 0, 1, 1], [], []>} : vector<8x32xbf16>, vector<32x64xbf16>, vector<8x64xf32> -> vector<8x64xf32>
    %c0_87 = arith.constant 0 : index
    %c0_88 = arith.constant 0 : index
    %c0_89 = arith.constant 0 : index
    %186 = vector.load %arg20[%c0_87, %c0_88, %c0_89] : memref<1x1x64xf32, #tpu.memory_space<vmem>>, vector<1x1x64xf32>
    %187 = vector.shape_cast %186 : vector<1x1x64xf32> to vector<1x64xf32>
    %188 = vector.broadcast %187 : vector<1x64xf32> to vector<8x64xf32>
    %189 = arith.addf %185, %188 : vector<8x64xf32>
    %cst_90 = arith.constant 5.000000e-01 : f32
    %190 = vector.broadcast %cst_90 : f32 to vector<8x64xf32>
    %191 = arith.mulf %190, %189 : vector<8x64xf32>
    %cst_91 = arith.constant 4.471500e-02 : f32
    %192 = vector.broadcast %cst_91 : f32 to vector<8x64xf32>
    %193 = arith.mulf %192, %189 : vector<8x64xf32>
    %194 = arith.mulf %193, %189 : vector<8x64xf32>
    %195 = arith.mulf %194, %189 : vector<8x64xf32>
    %196 = arith.addf %189, %195 : vector<8x64xf32>
    %cst_92 = arith.constant 0.797884583 : f32
    %197 = vector.broadcast %cst_92 : f32 to vector<8x64xf32>
    %198 = arith.mulf %197, %196 : vector<8x64xf32>
    %199 = math.tanh %198 : vector<8x64xf32>
    %cst_93 = arith.constant 1.000000e+00 : f32
    %200 = vector.broadcast %cst_93 : f32 to vector<8x64xf32>
    %201 = arith.addf %200, %199 : vector<8x64xf32>
    %202 = arith.mulf %191, %201 : vector<8x64xf32>
    %203 = arith.truncf %202 : vector<8x64xf32> to vector<8x64xbf16>
    %c0_94 = arith.constant 0 : index
    %c0_95 = arith.constant 0 : index
    %c0_96 = arith.constant 0 : index
    %204 = vector.load %arg21[%c0_94, %c0_95, %c0_96] : memref<1x64x32xbf16, #tpu.memory_space<vmem>>, vector<1x64x32xbf16>
    %205 = vector.shape_cast %204 : vector<1x64x32xbf16> to vector<64x32xbf16>
    %cst_97 = arith.constant dense<0.000000e+00> : vector<8x32xf32>
    %206 = tpu.matmul %203, %205, %cst_97 {dimension_numbers = #tpu.dot_dimension_numbers<[1], [0], [0], [1], [0, 0, 1, 1], [], []>} : vector<8x64xbf16>, vector<64x32xbf16>, vector<8x32xf32> -> vector<8x32xf32>
    %c0_98 = arith.constant 0 : index
    %c0_99 = arith.constant 0 : index
    %c0_100 = arith.constant 0 : index
    %207 = vector.load %arg22[%c0_98, %c0_99, %c0_100] : memref<1x1x32xf32, #tpu.memory_space<vmem>>, vector<1x1x32xf32>
    %208 = vector.shape_cast %207 : vector<1x1x32xf32> to vector<1x32xf32>
    %209 = vector.broadcast %208 : vector<1x32xf32> to vector<8x32xf32>
    %210 = arith.addf %206, %209 : vector<8x32xf32>
    %211 = arith.addf %210, %155 : vector<8x32xf32>
    %c0_101 = arith.constant 0 : index
    %c0_102 = arith.constant 0 : index
    %212 = vector.load %arg28[%c0_101, %c0_102] : memref<8x32xf32, #tpu.memory_space<vmem>>, vector<8x32xf32>
    tpu.vector_store %arg28[%c0_101, %c0_102], %211 {strides = array<i32>} : memref<8x32xf32, #tpu.memory_space<vmem>>, vector<8x32xf32>,
    %c1_i32 = arith.constant 1 : i32
    %213 = arith.cmpi eq, %arg1, %c1_i32 : i32
    %214 = arith.extui %213 : i1 to i32
    %c0_i32_103 = arith.constant 0 : i32
    %215 = arith.cmpi ne, %214, %c0_i32_103 : i32
    scf.if %215 {
      %c0_104 = arith.constant 0 : index
      %c0_105 = arith.constant 0 : index
      %216 = vector.load %arg23[%c0_104, %c0_105] : memref<1x32xf32, #tpu.memory_space<vmem>>, vector<1x32xf32>
      %c0_106 = arith.constant 0 : index
      %c0_107 = arith.constant 0 : index
      %217 = vector.load %arg24[%c0_106, %c0_107] : memref<1x32xf32, #tpu.memory_space<vmem>>, vector<1x32xf32>
      %cst_108 = arith.constant dense<0.000000e+00> : vector<8xf32>
      %218 = vector.multi_reduction <add>, %211, %cst_108 [1] : vector<8x32xf32> to vector<8xf32>
      %219 = vector.shape_cast %218 : vector<8xf32> to vector<8x1xf32>
      %cst_109 = arith.constant 3.200000e+01 : f32
      %220 = vector.broadcast %cst_109 : f32 to vector<8x1xf32>
      %221 = arith.divf %219, %220 : vector<8x1xf32>
      %222 = vector.broadcast %221 : vector<8x1xf32> to vector<8x32xf32>
      %223 = arith.subf %211, %222 : vector<8x32xf32>
      %224 = arith.mulf %223, %223 : vector<8x32xf32>
      %cst_110 = arith.constant dense<0.000000e+00> : vector<8xf32>
      %225 = vector.multi_reduction <add>, %224, %cst_110 [1] : vector<8x32xf32> to vector<8xf32>
      %226 = vector.shape_cast %225 : vector<8xf32> to vector<8x1xf32>
      %cst_111 = arith.constant 3.200000e+01 : f32
      %227 = vector.broadcast %cst_111 : f32 to vector<8x1xf32>
      %228 = arith.divf %226, %227 : vector<8x1xf32>
      %229 = vector.broadcast %221 : vector<8x1xf32> to vector<8x32xf32>
      %230 = arith.subf %211, %229 : vector<8x32xf32>
      %cst_112 = arith.constant 9.99999997E-7 : f32
      %231 = vector.broadcast %cst_112 : f32 to vector<8x1xf32>
      %232 = arith.addf %228, %231 : vector<8x1xf32>
      %233 = math.rsqrt %232 : vector<8x1xf32>
      %234 = vector.broadcast %233 : vector<8x1xf32> to vector<8x32xf32>
      %235 = arith.mulf %230, %234 : vector<8x32xf32>
      %236 = vector.broadcast %216 : vector<1x32xf32> to vector<8x32xf32>
      %237 = arith.mulf %235, %236 : vector<8x32xf32>
      %238 = vector.broadcast %217 : vector<1x32xf32> to vector<8x32xf32>
      %239 = arith.addf %237, %238 : vector<8x32xf32>
      %240 = vector.shape_cast %239 : vector<8x32xf32> to vector<1x8x32xf32>
      %c0_113 = arith.constant 0 : index
      %c0_114 = arith.constant 0 : index
      %241 = vector.load %arg25[%c0_113, %c0_114] : memref<1x32xf32, #tpu.memory_space<vmem>>, vector<1x32xf32>
      %242 = vector.shape_cast %241 : vector<1x32xf32> to vector<1x1x32xf32>
      %243 = vector.broadcast %242 : vector<1x1x32xf32> to vector<1x8x32xf32>
      %244 = arith.mulf %240, %243 : vector<1x8x32xf32>
      %cst_115 = arith.constant dense<0.000000e+00> : vector<1x8xf32>
      %245 = vector.multi_reduction <add>, %244, %cst_115 [2] : vector<1x8x32xf32> to vector<1x8xf32>
      %c0_116 = arith.constant 0 : index
      %c0_117 = arith.constant 0 : index
      %246 = vector.load %arg26[%c0_116, %c0_117] : memref<1x1xf32, #tpu.memory_space<vmem>>, vector<1x1xf32>
      %247 = vector.broadcast %246 : vector<1x1xf32> to vector<1x8xf32>
      %248 = arith.addf %245, %247 : vector<1x8xf32>
      %249 = arith.negf %248 : vector<1x8xf32>
      %250 = math.exp %249 : vector<1x8xf32>
      %cst_118 = arith.constant 1.000000e+00 : f32
      %251 = vector.broadcast %cst_118 : f32 to vector<1x8xf32>
      %252 = arith.addf %251, %250 : vector<1x8xf32>
      %253 = arith.divf %251, %252 : vector<1x8xf32>
      %254 = vector.shape_cast %253 : vector<1x8xf32> to vector<1x1x8xf32>
      %c0_119 = arith.constant 0 : index
      %c0_120 = arith.constant 0 : index
      %c0_121 = arith.constant 0 : index
      %255 = vector.load %arg5[%c0_119, %c0_120, %c0_121] : memref<1x1x8xf32, #tpu.memory_space<vmem>>, vector<1x1x8xf32>
      %256 = arith.mulf %254, %255 : vector<1x1x8xf32>
      %c0_122 = arith.constant 0 : index
      %c0_123 = arith.constant 0 : index
      %c0_124 = arith.constant 0 : index
      %257 = vector.load %arg27[%c0_122, %c0_123, %c0_124] : memref<1x1x8xf32, #tpu.memory_space<vmem>>, vector<1x1x8xf32>
      tpu.vector_store %arg27[%c0_122, %c0_123, %c0_124], %256 {strides = array<i32>} : memref<1x1x8xf32, #tpu.memory_space<vmem>>, vector<1x1x8xf32>,
    } else {
    }
    return
  }
  func.func @transform_0(%arg0: i32, %arg1: i32) -> (i32, i32, i32) {
    %c0_i32 = arith.constant 0 : i32
    %c0_i32_0 = arith.constant 0 : i32
    %c0_i32_1 = arith.constant 0 : i32
    return %arg0, %c0_i32, %c0_i32_0 : i32, i32, i32
  }
  func.func @transform_1(%arg0: i32, %arg1: i32) -> (i32, i32, i32) {
    %c0_i32 = arith.constant 0 : i32
    %c0_i32_0 = arith.constant 0 : i32
    %c0_i32_1 = arith.constant 0 : i32
    return %arg0, %c0_i32, %c0_i32_0 : i32, i32, i32
  }
  func.func @transform_2(%arg0: i32, %arg1: i32) -> (i32, i32, i32) {
    %c0_i32 = arith.constant 0 : i32
    %c0_i32_0 = arith.constant 0 : i32
    %c0_i32_1 = arith.constant 0 : i32
    return %arg0, %c0_i32, %c0_i32_0 : i32, i32, i32
  }
  func.func @transform_3(%arg0: i32, %arg1: i32) -> (i32, i32, i32) {
    %c0_i32 = arith.constant 0 : i32
    %c0_i32_0 = arith.constant 0 : i32
    %c0_i32_1 = arith.constant 0 : i32
    return %arg0, %c0_i32, %c0_i32_0 : i32, i32, i32
  }
  func.func @transform_4(%arg0: i32, %arg1: i32) -> (i32, i32, i32) {
    %c0_i32 = arith.constant 0 : i32
    %c0_i32_0 = arith.constant 0 : i32
    %c0_i32_1 = arith.constant 0 : i32
    %c0_i32_2 = arith.constant 0 : i32
    return %c0_i32, %c0_i32_0, %c0_i32_1 : i32, i32, i32
  }
  func.func @transform_5(%arg0: i32, %arg1: i32) -> (i32, i32, i32) {
    %c0_i32 = arith.constant 0 : i32
    %c0_i32_0 = arith.constant 0 : i32
    %c0_i32_1 = arith.constant 0 : i32
    return %arg1, %c0_i32, %c0_i32_0 : i32, i32, i32
  }
  func.func @transform_6(%arg0: i32, %arg1: i32) -> (i32, i32, i32) {
    %c0_i32 = arith.constant 0 : i32
    %c0_i32_0 = arith.constant 0 : i32
    %c0_i32_1 = arith.constant 0 : i32
    return %arg1, %c0_i32, %c0_i32_0 : i32, i32, i32
  }
  func.func @transform_7(%arg0: i32, %arg1: i32) -> (i32, i32, i32) {
    %c0_i32 = arith.constant 0 : i32
    %c0_i32_0 = arith.constant 0 : i32
    %c0_i32_1 = arith.constant 0 : i32
    return %arg1, %c0_i32, %c0_i32_0 : i32, i32, i32
  }
  func.func @transform_8(%arg0: i32, %arg1: i32) -> (i32, i32, i32) {
    %c0_i32 = arith.constant 0 : i32
    %c0_i32_0 = arith.constant 0 : i32
    %c0_i32_1 = arith.constant 0 : i32
    return %arg1, %c0_i32, %c0_i32_0 : i32, i32, i32
  }
  func.func @transform_9(%arg0: i32, %arg1: i32) -> (i32, i32, i32) {
    %c0_i32 = arith.constant 0 : i32
    %c0_i32_0 = arith.constant 0 : i32
    %c0_i32_1 = arith.constant 0 : i32
    return %arg1, %c0_i32, %c0_i32_0 : i32, i32, i32
  }
  func.func @transform_10(%arg0: i32, %arg1: i32) -> (i32, i32, i32) {
    %c0_i32 = arith.constant 0 : i32
    %c0_i32_0 = arith.constant 0 : i32
    %c0_i32_1 = arith.constant 0 : i32
    return %arg1, %c0_i32, %c0_i32_0 : i32, i32, i32
  }
  func.func @transform_11(%arg0: i32, %arg1: i32) -> (i32, i32, i32) {
    %c0_i32 = arith.constant 0 : i32
    %c0_i32_0 = arith.constant 0 : i32
    %c0_i32_1 = arith.constant 0 : i32
    return %arg1, %c0_i32, %c0_i32_0 : i32, i32, i32
  }
  func.func @transform_12(%arg0: i32, %arg1: i32) -> (i32, i32, i32) {
    %c0_i32 = arith.constant 0 : i32
    %c0_i32_0 = arith.constant 0 : i32
    %c0_i32_1 = arith.constant 0 : i32
    return %arg1, %c0_i32, %c0_i32_0 : i32, i32, i32
  }
  func.func @transform_13(%arg0: i32, %arg1: i32) -> (i32, i32, i32) {
    %c0_i32 = arith.constant 0 : i32
    %c0_i32_0 = arith.constant 0 : i32
    %c0_i32_1 = arith.constant 0 : i32
    return %arg1, %c0_i32, %c0_i32_0 : i32, i32, i32
  }
  func.func @transform_14(%arg0: i32, %arg1: i32) -> (i32, i32, i32) {
    %c0_i32 = arith.constant 0 : i32
    %c0_i32_0 = arith.constant 0 : i32
    %c0_i32_1 = arith.constant 0 : i32
    return %arg1, %c0_i32, %c0_i32_0 : i32, i32, i32
  }
  func.func @transform_15(%arg0: i32, %arg1: i32) -> (i32, i32, i32) {
    %c0_i32 = arith.constant 0 : i32
    %c0_i32_0 = arith.constant 0 : i32
    %c0_i32_1 = arith.constant 0 : i32
    return %arg1, %c0_i32, %c0_i32_0 : i32, i32, i32
  }
  func.func @transform_16(%arg0: i32, %arg1: i32) -> (i32, i32, i32) {
    %c0_i32 = arith.constant 0 : i32
    %c0_i32_0 = arith.constant 0 : i32
    %c0_i32_1 = arith.constant 0 : i32
    return %arg1, %c0_i32, %c0_i32_0 : i32, i32, i32
  }
  func.func @transform_17(%arg0: i32, %arg1: i32) -> (i32, i32, i32) {
    %c0_i32 = arith.constant 0 : i32
    %c0_i32_0 = arith.constant 0 : i32
    %c0_i32_1 = arith.constant 0 : i32
    return %arg1, %c0_i32, %c0_i32_0 : i32, i32, i32
  }
  func.func @transform_18(%arg0: i32, %arg1: i32) -> (i32, i32, i32) {
    %c0_i32 = arith.constant 0 : i32
    %c0_i32_0 = arith.constant 0 : i32
    %c0_i32_1 = arith.constant 0 : i32
    return %arg1, %c0_i32, %c0_i32_0 : i32, i32, i32
  }
  func.func @transform_19(%arg0: i32, %arg1: i32) -> (i32, i32, i32) {
    %c0_i32 = arith.constant 0 : i32
    %c0_i32_0 = arith.constant 0 : i32
    %c0_i32_1 = arith.constant 0 : i32
    return %arg1, %c0_i32, %c0_i32_0 : i32, i32, i32
  }
  func.func @transform_20(%arg0: i32, %arg1: i32) -> (i32, i32, i32) {
    %c0_i32 = arith.constant 0 : i32
    %c0_i32_0 = arith.constant 0 : i32
    %c0_i32_1 = arith.constant 0 : i32
    return %arg1, %c0_i32, %c0_i32_0 : i32, i32, i32
  }
  func.func @transform_21(%arg0: i32, %arg1: i32) -> (i32, i32) {
    %c0_i32 = arith.constant 0 : i32
    %c0_i32_0 = arith.constant 0 : i32
    %c0_i32_1 = arith.constant 0 : i32
    return %c0_i32, %c0_i32_0 : i32, i32
  }
  func.func @transform_22(%arg0: i32, %arg1: i32) -> (i32, i32) {
    %c0_i32 = arith.constant 0 : i32
    %c0_i32_0 = arith.constant 0 : i32
    %c0_i32_1 = arith.constant 0 : i32
    return %c0_i32, %c0_i32_0 : i32, i32
  }
  func.func @transform_23(%arg0: i32, %arg1: i32) -> (i32, i32) {
    %c0_i32 = arith.constant 0 : i32
    %c0_i32_0 = arith.constant 0 : i32
    %c0_i32_1 = arith.constant 0 : i32
    return %c0_i32, %c0_i32_0 : i32, i32
  }
  func.func @transform_24(%arg0: i32, %arg1: i32) -> (i32, i32) {
    %c0_i32 = arith.constant 0 : i32
    %c0_i32_0 = arith.constant 0 : i32
    %c0_i32_1 = arith.constant 0 : i32
    return %c0_i32, %c0_i32_0 : i32, i32
  }
  func.func @transform_25(%arg0: i32, %arg1: i32) -> (i32, i32, i32) {
    %c0_i32 = arith.constant 0 : i32
    %c0_i32_0 = arith.constant 0 : i32
    %c0_i32_1 = arith.constant 0 : i32
    return %arg0, %c0_i32, %c0_i32_0 : i32, i32, i32
  }
}

</mosaic_0001>

<llo_original>
// kernel: tpu_custom_call.1
$region0: #{tpu_custom_call.1}
  #allocation0 [shape = 'u32[]', space=smem, size = 0x4, offset = 0x4, fixed_abs, tag = 'smem constant byte address 0x4 - core index']
  #allocation1 [shape = 'u32[144,128]{1,0:T(1,128)}', space=vmem, size = 0x12000, scoped, tag = 'internal scratch']
  #allocation2 [shape = 'f32[8,32]{1,0:T(8,128)}', space=vmem, size = 0x1000, scoped, tag = 'scratch operand']
  #allocation3 [shape = 'bf16[1,8,32]{2,1,0:T(8,128)(2,1)}', space=vmem, size = 0x800, scoped, tag = 'scratch operand']
  #allocation4 [shape = 'f32[1,1]{1,0:T(1,128)S(1)}', space=vmem, size = 0x200, scoped, tag = 'scoped memory for tpu_custom_call.1']
  %s0 = inlined_call_operand.hbm [shape: f32[2,8,32], index: 0, kind: input, shape index: {}]
  %s1 = inlined_call_operand.vmem [shape: f32[2,8,1], index: 1, kind: input, shape index: {}]
  %s2 = inlined_call_operand.vmem [shape: f32[2,1,8], index: 2, kind: input, shape index: {}]
  %s3 = inlined_call_operand.hbm [shape: f32[2,1,8], index: 3, kind: input, shape index: {}]
  %s4 = inlined_call_operand.hbm [shape: f32[1,8,32], index: 4, kind: input, shape index: {}]
  %s5 = inlined_call_operand.hbm [shape: f32[2,1,32], index: 5, kind: input, shape index: {}]
  %s6 = inlined_call_operand.hbm [shape: f32[2,1,32], index: 6, kind: input, shape index: {}]
  %s7 = inlined_call_operand.vmem [shape: bf16[2,32,32], index: 7, kind: input, shape index: {}]
  %s8 = inlined_call_operand.hbm [shape: f32[2,1,32], index: 8, kind: input, shape index: {}]
  %s9 = inlined_call_operand.vmem [shape: bf16[2,32,32], index: 9, kind: input, shape index: {}]
  %s10 = inlined_call_operand.hbm [shape: f32[2,1,32], index: 10, kind: input, shape index: {}]
  %s11 = inlined_call_operand.vmem [shape: bf16[2,32,32], index: 11, kind: input, shape index: {}]
  %s12 = inlined_call_operand.hbm [shape: f32[2,1,32], index: 12, kind: input, shape index: {}]
  %s13 = inlined_call_operand.vmem [shape: bf16[2,32,32], index: 13, kind: input, shape index: {}]
  %s14 = inlined_call_operand.vmem [shape: f32[2,1,32], index: 14, kind: input, shape index: {}]
  %s15 = inlined_call_operand.vmem [shape: f32[2,1,32], index: 15, kind: input, shape index: {}]
  %s16 = inlined_call_operand.vmem [shape: f32[2,1,32], index: 16, kind: input, shape index: {}]
  %s17 = inlined_call_operand.hbm [shape: bf16[2,32,64], index: 17, kind: input, shape index: {}]
  %s18 = inlined_call_operand.vmem [shape: f32[2,1,64], index: 18, kind: input, shape index: {}]
  %s19 = inlined_call_operand.vmem [shape: bf16[2,64,32], index: 19, kind: input, shape index: {}]
  %s20 = inlined_call_operand.vmem [shape: f32[2,1,32], index: 20, kind: input, shape index: {}]
  %s21 = inlined_call_operand.vmem [shape: f32[1,32], index: 21, kind: input, shape index: {}]
  %s22 = inlined_call_operand.vmem [shape: f32[1,32], index: 22, kind: input, shape index: {}]
  %s23 = inlined_call_operand.vmem [shape: f32[1,32], index: 23, kind: input, shape index: {}]
  %s24 = inlined_call_operand.<no memory space> [shape: f32[1,1], index: 24, kind: input, shape index: {}]
  %s25 = inlined_call_operand.hbm [shape: f32[2,1,8], index: 25, kind: output, shape index: {}]
  %s26 = sld [smem:[#allocation0]]
  $region177: #{tpu_custom_call.1} parent=0
    _
  %s28 = ssub.s32 1, %s26
  %s29 = scalar_select 0, %s28, %s26
  %v30 = vstv %s24
  %31 = vst [vmem:[#allocation4] sm:$0x1] %v30
  $region1: #{tpu_custom_call.1} parent=0
    #allocation5 [shape = 'u8[8192]{0}', space=vmem, size = 0x2000, scoped, tag = 'input window, operand 0']
    #allocation6 [shape = 's32[2]{0}', space=sflag, size = 0x8, scoped, tag = 'scoped memory for tpu_custom_call.1']
    #allocation7 [shape = 's32[2]{0}', space=sflag, size = 0x8, scoped, tag = 'scoped memory for tpu_custom_call.1']
    #allocation8 [shape = 'u8[1024]{0}', space=vmem, size = 0x400, scoped, tag = 'input window, operand 3']
    #allocation9 [shape = 's32[2]{0}', space=sflag, size = 0x8, scoped, tag = 'scoped memory for tpu_custom_call.1']
    #allocation10 [shape = 'u8[4096]{0}', space=vmem, size = 0x1000, scoped, tag = 'input window, operand 4, single buffered']
    #allocation11 [shape = 'u8[1024]{0}', space=vmem, size = 0x400, scoped, tag = 'input window, operand 5']
    #allocation12 [shape = 's32[2]{0}', space=sflag, size = 0x8, scoped, tag = 'scoped memory for tpu_custom_call.1']
    #allocation13 [shape = 'u8[1024]{0}', space=vmem, size = 0x400, scoped, tag = 'input window, operand 6']
    #allocation14 [shape = 'u8[1024]{0}', space=vmem, size = 0x400, scoped, tag = 'input window, operand 8']
    #allocation15 [shape = 's32[2]{0}', space=sflag, size = 0x8, scoped, tag = 'scoped memory for tpu_custom_call.1']
    #allocation16 [shape = 'u8[1024]{0}', space=vmem, size = 0x400, scoped, tag = 'input window, operand 10']
    #allocation17 [shape = 'u8[1024]{0}', space=vmem, size = 0x400, scoped, tag = 'input window, operand 12']
    #allocation18 [shape = 's32[2]{0}', space=sflag, size = 0x8, scoped, tag = 'scoped memory for tpu_custom_call.1']
    #allocation19 [shape = 'u8[16384]{0}', space=vmem, size = 0x4000, scoped, tag = 'input window, operand 17']
    #allocation20 [shape = 'u8[1024]{0}', space=vmem, size = 0x400, scoped, tag = 'output window, operand 0']
    %32 = vsyncpa [#allocation6], 0
    %s33 = scalar_lea.sflag [#allocation6], 1
    %34 = vsyncpa %s33, 0
    %35 = vsyncpa [#allocation9], 0
    %s36 = scalar_lea.sflag [#allocation9], 1
    %37 = vsyncpa %s36, 0
    %38 = vsyncpa [#allocation12], 0
    %s39 = scalar_lea.sflag [#allocation12], 1
    %40 = vsyncpa %s39, 0
    %41 = vsyncpa [#allocation15], 0
    %s42 = scalar_lea.sflag [#allocation15], 1
    %43 = vsyncpa %s42, 0
    %44 = vsyncpa [#allocation18], 0
    %s45 = scalar_lea.sflag [#allocation18], 1
    %46 = vsyncpa %s45, 0
    %47 = vsyncpa [#allocation7], 0
    %s48 = scalar_lea.sflag [#allocation7], 1
    %49 = vsyncpa %s48, 0
    loop: start=0, step=1, limit=6
    $region2: #{tpu_custom_call.1} parent=1 // loop_pre_header
      _
    $region3: #{tpu_custom_call.1} parent=1 // loop_header
      %s51 = sphi 0, %s55
      %p52 = scmp.ge.s32.totalorder %s51, 6
      %s58 = sphi 0, %s70
      %s59 = sphi 0, %s66
      %s60 = sphi 0, %s58
      %s61 = sphi 0, %s59
      %s62 = sphi 0, %s60
      %s63 = sphi 0, %s61
      %s73 = sphi 0, %s75
      %s76 = sphi 0, %s73
      %s77 = sphi 0, %s76
      %s93 = sphi 0, %s77
      %s99 = sphi 0, %s101
      %s102 = sphi 0, %s99
      %s103 = sphi 0, %s102
      %s119 = sphi 0, %s103
      %s125 = sphi 0, %s127
      %s128 = sphi 0, %s125
      %s129 = sphi 0, %s128
      %s145 = sphi 0, %s129
      %s151 = sphi 0, %s153
      %s154 = sphi 0, %s151
      %s155 = sphi 0, %s154
      %s171 = sphi 0, %s155
      %s175 = sphi 0, %s175
      %s177 = sphi 0, %s175
      %s178 = sphi 0, %s177
      %s192 = sphi 0, %s178
      %s198 = sphi 0, %s200
      %s201 = sphi 0, %s198
      %s202 = sphi 0, %s201
      %s218 = sphi 0, %s202
      %s224 = sphi 0, %s226
      %s227 = sphi 0, %s224
      %s228 = sphi 0, %s227
      %s244 = sphi 0, %s228
      %s250 = sphi 0, %s252
      %s253 = sphi 0, %s250
      %s254 = sphi 0, %s253
      %s270 = sphi 0, %s254
      %s276 = sphi 0, %s278
      %s279 = sphi 0, %s276
      %s280 = sphi 0, %s279
      %s296 = sphi 0, %s280
      %s302 = sphi 0, %s304
      %s305 = sphi 0, %s302
      %s306 = sphi 0, %s305
      %s322 = sphi 0, %s306
      %s328 = sphi 0, %s330
      %s331 = sphi 0, %s328
      %s332 = sphi 0, %s331
      %s348 = sphi 0, %s332
      %s354 = sphi 0, %s356
      %s357 = sphi 0, %s354
      %s358 = sphi 0, %s357
      %s374 = sphi 0, %s358
      %s380 = sphi 0, %s382
      %s383 = sphi 0, %s380
      %s384 = sphi 0, %s383
      %s400 = sphi 0, %s384
      %s406 = sphi 0, %s408
      %s409 = sphi 0, %s406
      %s410 = sphi 0, %s409
      %s426 = sphi 0, %s410
      %s432 = sphi 0, %s434
      %s435 = sphi 0, %s432
      %s436 = sphi 0, %s435
      %s452 = sphi 0, %s436
      %s458 = sphi 0, %s460
      %s461 = sphi 0, %s458
      %s462 = sphi 0, %s461
      %s478 = sphi 0, %s462
      %s484 = sphi 0, %s486
      %s487 = sphi 0, %s484
      %s488 = sphi 0, %s487
      %s504 = sphi 0, %s488
      %s510 = sphi 0, %s512
      %s513 = sphi 0, %s510
      %s514 = sphi 0, %s513
      %s530 = sphi 0, %s514
      %s536 = sphi 0, %s538
      %s539 = sphi 0, %s536
      %s540 = sphi 0, %s539
      %s556 = sphi 0, %s540
      %s562 = sphi 0, %s564
      %s565 = sphi 0, %s562
      %s566 = sphi 0, %s565
      %s582 = sphi 0, %s566
      %s588 = sphi 0, %s590
      %s591 = sphi 0, %s588
      %s592 = sphi 0, %s591
      %s608 = sphi 0, %s592
      %s612 = sphi 0, %s612
      %s614 = sphi 0, %s612
      %s615 = sphi 0, %s614
      %s629 = sphi 0, %s615
      %s633 = sphi 0, %s633
      %s635 = sphi 0, %s633
      %s636 = sphi 0, %s635
      %s650 = sphi 0, %s636
      %s654 = sphi 0, %s654
      %s656 = sphi 0, %s654
      %s657 = sphi 0, %s656
      %s671 = sphi 0, %s657
      %s675 = sphi 0, %s675
      %s677 = sphi 0, %s675
      %s678 = sphi 0, %s677
      %s692 = sphi 0, %s678
      %s698 = sphi 0, %s700
      %s701 = sphi 0, %s698
      %s702 = sphi 0, %s701
      %s718 = sphi 0, %s702
    $region4: #{tpu_custom_call.1} parent=1 // loop_header_branch
      %54 = sbr.rel (%p52) target = $region8
    $region5: #{tpu_custom_call.1} parent=1 // loop_body
      %s56 = ssub.s32 %s51, 1
      %s57 = ssub.s32 %s51, 2
      %s64 = sadd.s32 1, %s59
      %p65 = scmp.ge.s32.totalorder %s64, 2
      %s66 = scalar_select %p65, 0, %s64
      %s67 = sadd.s32 1, %s58
      %s68 = scalar_select %p65, %s67, %s58
      %p69 = scmp.ge.s32.totalorder %s68, 2
      %s70 = scalar_select %p69, 0, %s68
      %s71 = ssub.s32 %s58, %s70
      %p72 = scmp.eq.s32.totalorder %s71, 0
      %s74 = sadd.s32 %s73, 1
      %s75 = scalar_select %p72, %s73, %s74
      %p78 = pneg %p72
      %p79 = scmp.eq.s32.totalorder %s51, 3
      %p80 = por %p78, %p79
      %p81 = scmp.ne.s32.totalorder %s73, %s76
      %p82 = scmp.eq.s32.totalorder %s51, 0
      %p83 = por %p81, %p82
      %p84 = scmp.ne.s32.totalorder %s73, %s76
      %p85 = scmp.eq.s32.totalorder %s56, 3
      %p86 = por %p84, %p85
      %p87 = scmp.ne.s32.totalorder %s76, %s77
      %p88 = scmp.eq.s32.totalorder %s56, 0
      %p89 = por %p87, %p88
      %p90 = scmp.ne.s32.totalorder %s76, %s77
      %p91 = scmp.eq.s32.totalorder %s57, 3
      %p92 = por %p90, %p91
      %p94 = scmp.ne.s32.totalorder %s77, %s93
      %p95 = scmp.eq.s32.totalorder %s57, 0
      %p96 = por %p94, %p95
      %s97 = ssub.s32 %s58, %s70
      %p98 = scmp.eq.s32.totalorder %s97, 0
      %s100 = sadd.s32 %s99, 1
      %s101 = scalar_select %p98, %s99, %s100
      %p104 = pneg %p98
      %p105 = scmp.eq.s32.totalorder %s51, 3
      %p106 = por %p104, %p105
      %p107 = scmp.ne.s32.totalorder %s99, %s102
      %p108 = scmp.eq.s32.totalorder %s51, 0
      %p109 = por %p107, %p108
      %p110 = scmp.ne.s32.totalorder %s99, %s102
      %p111 = scmp.eq.s32.totalorder %s56, 3
      %p112 = por %p110, %p111
      %p113 = scmp.ne.s32.totalorder %s102, %s103
      %p114 = scmp.eq.s32.totalorder %s56, 0
      %p115 = por %p113, %p114
      %p116 = scmp.ne.s32.totalorder %s102, %s103
      %p117 = scmp.eq.s32.totalorder %s57, 3
      %p118 = por %p116, %p117
      %p120 = scmp.ne.s32.totalorder %s103, %s119
      %p121 = scmp.eq.s32.totalorder %s57, 0
      %p122 = por %p120, %p121
      %s123 = ssub.s32 %s58, %s70
      %p124 = scmp.eq.s32.totalorder %s123, 0
      %s126 = sadd.s32 %s125, 1
      %s127 = scalar_select %p124, %s125, %s126
      %p130 = pneg %p124
      %p131 = scmp.eq.s32.totalorder %s51, 3
      %p132 = por %p130, %p131
      %p133 = scmp.ne.s32.totalorder %s125, %s128
      %p134 = scmp.eq.s32.totalorder %s51, 0
      %p135 = por %p133, %p134
      %p136 = scmp.ne.s32.totalorder %s125, %s128
      %p137 = scmp.eq.s32.totalorder %s56, 3
      %p138 = por %p136, %p137
      %p139 = scmp.ne.s32.totalorder %s128, %s129
      %p140 = scmp.eq.s32.totalorder %s56, 0
      %p141 = por %p139, %p140
      %p142 = scmp.ne.s32.totalorder %s128, %s129
      %p143 = scmp.eq.s32.totalorder %s57, 3
      %p144 = por %p142, %p143
      %p146 = scmp.ne.s32.totalorder %s129, %s145
      %p147 = scmp.eq.s32.totalorder %s57, 0
      %p148 = por %p146, %p147
      %s149 = ssub.s32 %s58, %s70
      %p150 = scmp.eq.s32.totalorder %s149, 0
      %s152 = sadd.s32 %s151, 1
      %s153 = scalar_select %p150, %s151, %s152
      %p156 = pneg %p150
      %p157 = scmp.eq.s32.totalorder %s51, 3
      %p158 = por %p156, %p157
      %p159 = scmp.ne.s32.totalorder %s151, %s154
      %p160 = scmp.eq.s32.totalorder %s51, 0
      %p161 = por %p159, %p160
      %p162 = scmp.ne.s32.totalorder %s151, %s154
      %p163 = scmp.eq.s32.totalorder %s56, 3
      %p164 = por %p162, %p163
      %p165 = scmp.ne.s32.totalorder %s154, %s155
      %p166 = scmp.eq.s32.totalorder %s56, 0
      %p167 = por %p165, %p166
      %p168 = scmp.ne.s32.totalorder %s154, %s155
      %p169 = scmp.eq.s32.totalorder %s57, 3
      %p170 = por %p168, %p169
      %p172 = scmp.ne.s32.totalorder %s155, %s171
      %p173 = scmp.eq.s32.totalorder %s57, 0
      %p174 = por %p172, %p173
      %s176 = sadd.s32 %s175, 1
      %p179 = scmp.eq.s32.totalorder %s51, 3
      %p180 = scmp.ne.s32.totalorder %s175, %s177
      %p181 = scmp.eq.s32.totalorder %s51, 0
      %p182 = por %p180, %p181
      %p183 = scmp.ne.s32.totalorder %s175, %s177
      %p184 = scmp.eq.s32.totalorder %s56, 3
      %p185 = por %p183, %p184
      %p186 = scmp.ne.s32.totalorder %s177, %s178
      %p187 = scmp.eq.s32.totalorder %s56, 0
      %p188 = por %p186, %p187
      %p189 = scmp.ne.s32.totalorder %s177, %s178
      %p190 = scmp.eq.s32.totalorder %s57, 3
      %p191 = por %p189, %p190
      %p193 = scmp.ne.s32.totalorder %s178, %s192
      %p194 = scmp.eq.s32.totalorder %s57, 0
      %p195 = por %p193, %p194
      %s196 = ssub.s32 %s59, %s66
      %p197 = scmp.eq.s32.totalorder %s196, 0
      %s199 = sadd.s32 %s198, 1
      %s200 = scalar_select %p197, %s198, %s199
      %p203 = pneg %p197
      %p204 = scmp.eq.s32.totalorder %s51, 3
      %p205 = por %p203, %p204
      %p206 = scmp.ne.s32.totalorder %s198, %s201
      %p207 = scmp.eq.s32.totalorder %s51, 0
      %p208 = por %p206, %p207
      %p209 = scmp.ne.s32.totalorder %s198, %s201
      %p210 = scmp.eq.s32.totalorder %s56, 3
      %p211 = por %p209, %p210
      %p212 = scmp.ne.s32.totalorder %s201, %s202
      %p213 = scmp.eq.s32.totalorder %s56, 0
      %p214 = por %p212, %p213
      %p215 = scmp.ne.s32.totalorder %s201, %s202
      %p216 = scmp.eq.s32.totalorder %s57, 3
      %p217 = por %p215, %p216
      %p219 = scmp.ne.s32.totalorder %s202, %s218
      %p220 = scmp.eq.s32.totalorder %s57, 0
      %p221 = por %p219, %p220
      %s222 = ssub.s32 %s59, %s66
      %p223 = scmp.eq.s32.totalorder %s222, 0
      %s225 = sadd.s32 %s224, 1
      %s226 = scalar_select %p223, %s224, %s225
      %p229 = pneg %p223
      %p230 = scmp.eq.s32.totalorder %s51, 3
      %p231 = por %p229, %p230
      %p232 = scmp.ne.s32.totalorder %s224, %s227
      %p233 = scmp.eq.s32.totalorder %s51, 0
      %p234 = por %p232, %p233
      %p235 = scmp.ne.s32.totalorder %s224, %s227
      %p236 = scmp.eq.s32.totalorder %s56, 3
      %p237 = por %p235, %p236
      %p238 = scmp.ne.s32.totalorder %s227, %s228
      %p239 = scmp.eq.s32.totalorder %s56, 0
      %p240 = por %p238, %p239
      %p241 = scmp.ne.s32.totalorder %s227, %s228
      %p242 = scmp.eq.s32.totalorder %s57, 3
      %p243 = por %p241, %p242
      %p245 = scmp.ne.s32.totalorder %s228, %s244
      %p246 = scmp.eq.s32.totalorder %s57, 0
      %p247 = por %p245, %p246
      %s248 = ssub.s32 %s59, %s66
      %p249 = scmp.eq.s32.totalorder %s248, 0
      %s251 = sadd.s32 %s250, 1
      %s252 = scalar_select %p249, %s250, %s251
      %p255 = pneg %p249
      %p256 = scmp.eq.s32.totalorder %s51, 3
      %p257 = por %p255, %p256
      %p258 = scmp.ne.s32.totalorder %s250, %s253
      %p259 = scmp.eq.s32.totalorder %s51, 0
      %p260 = por %p258, %p259
      %p261 = scmp.ne.s32.totalorder %s250, %s253
      %p262 = scmp.eq.s32.totalorder %s56, 3
      %p263 = por %p261, %p262
      %p264 = scmp.ne.s32.totalorder %s253, %s254
      %p265 = scmp.eq.s32.totalorder %s56, 0
      %p266 = por %p264, %p265
      %p267 = scmp.ne.s32.totalorder %s253, %s254
      %p268 = scmp.eq.s32.totalorder %s57, 3
      %p269 = por %p267, %p268
      %p271 = scmp.ne.s32.totalorder %s254, %s270
      %p272 = scmp.eq.s32.totalorder %s57, 0
      %p273 = por %p271, %p272
      %s274 = ssub.s32 %s59, %s66
      %p275 = scmp.eq.s32.totalorder %s274, 0
      %s277 = sadd.s32 %s276, 1
      %s278 = scalar_select %p275, %s276, %s277
      %p281 = pneg %p275
      %p282 = scmp.eq.s32.totalorder %s51, 3
      %p283 = por %p281, %p282
      %p284 = scmp.ne.s32.totalorder %s276, %s279
      %p285 = scmp.eq.s32.totalorder %s51, 0
      %p286 = por %p284, %p285
      %p287 = scmp.ne.s32.totalorder %s276, %s279
      %p288 = scmp.eq.s32.totalorder %s56, 3
      %p289 = por %p287, %p288
      %p290 = scmp.ne.s32.totalorder %s279, %s280
      %p291 = scmp.eq.s32.totalorder %s56, 0
      %p292 = por %p290, %p291
      %p293 = scmp.ne.s32.totalorder %s279, %s280
      %p294 = scmp.eq.s32.totalorder %s57, 3
      %p295 = por %p293, %p294
      %p297 = scmp.ne.s32.totalorder %s280, %s296
      %p298 = scmp.eq.s32.totalorder %s57, 0
      %p299 = por %p297, %p298
      %s300 = ssub.s32 %s59, %s66
      %p301 = scmp.eq.s32.totalorder %s300, 0
      %s303 = sadd.s32 %s302, 1
      %s304 = scalar_select %p301, %s302, %s303
      %p307 = pneg %p301
      %p308 = scmp.eq.s32.totalorder %s51, 3
      %p309 = por %p307, %p308
      %p310 = scmp.ne.s32.totalorder %s302, %s305
      %p311 = scmp.eq.s32.totalorder %s51, 0
      %p312 = por %p310, %p311
      %p313 = scmp.ne.s32.totalorder %s302, %s305
      %p314 = scmp.eq.s32.totalorder %s56, 3
      %p315 = por %p313, %p314
      %p316 = scmp.ne.s32.totalorder %s305, %s306
      %p317 = scmp.eq.s32.totalorder %s56, 0
      %p318 = por %p316, %p317
      %p319 = scmp.ne.s32.totalorder %s305, %s306
      %p320 = scmp.eq.s32.totalorder %s57, 3
      %p321 = por %p319, %p320
      %p323 = scmp.ne.s32.totalorder %s306, %s322
      %p324 = scmp.eq.s32.totalorder %s57, 0
      %p325 = por %p323, %p324
      %s326 = ssub.s32 %s59, %s66
      %p327 = scmp.eq.s32.totalorder %s326, 0
      %s329 = sadd.s32 %s328, 1
      %s330 = scalar_select %p327, %s328, %s329
      %p333 = pneg %p327
      %p334 = scmp.eq.s32.totalorder %s51, 3
      %p335 = por %p333, %p334
      %p336 = scmp.ne.s32.totalorder %s328, %s331
      %p337 = scmp.eq.s32.totalorder %s51, 0
      %p338 = por %p336, %p337
      %p339 = scmp.ne.s32.totalorder %s328, %s331
      %p340 = scmp.eq.s32.totalorder %s56, 3
      %p341 = por %p339, %p340
      %p342 = scmp.ne.s32.totalorder %s331, %s332
      %p343 = scmp.eq.s32.totalorder %s56, 0
      %p344 = por %p342, %p343
      %p345 = scmp.ne.s32.totalorder %s331, %s332
      %p346 = scmp.eq.s32.totalorder %s57, 3
      %p347 = por %p345, %p346
      %p349 = scmp.ne.s32.totalorder %s332, %s348
      %p350 = scmp.eq.s32.totalorder %s57, 0
      %p351 = por %p349, %p350
      %s352 = ssub.s32 %s59, %s66
      %p353 = scmp.eq.s32.totalorder %s352, 0
      %s355 = sadd.s32 %s354, 1
      %s356 = scalar_select %p353, %s354, %s355
      %p359 = pneg %p353
      %p360 = scmp.eq.s32.totalorder %s51, 3
      %p361 = por %p359, %p360
      %p362 = scmp.ne.s32.totalorder %s354, %s357
      %p363 = scmp.eq.s32.totalorder %s51, 0
      %p364 = por %p362, %p363
      %p365 = scmp.ne.s32.totalorder %s354, %s357
      %p366 = scmp.eq.s32.totalorder %s56, 3
      %p367 = por %p365, %p366
      %p368 = scmp.ne.s32.totalorder %s357, %s358
      %p369 = scmp.eq.s32.totalorder %s56, 0
      %p370 = por %p368, %p369
      %p371 = scmp.ne.s32.totalorder %s357, %s358
      %p372 = scmp.eq.s32.totalorder %s57, 3
      %p373 = por %p371, %p372
      %p375 = scmp.ne.s32.totalorder %s358, %s374
      %p376 = scmp.eq.s32.totalorder %s57, 0
      %p377 = por %p375, %p376
      %s378 = ssub.s32 %s59, %s66
      %p379 = scmp.eq.s32.totalorder %s378, 0
      %s381 = sadd.s32 %s380, 1
      %s382 = scalar_select %p379, %s380, %s381
      %p385 = pneg %p379
      %p386 = scmp.eq.s32.totalorder %s51, 3
      %p387 = por %p385, %p386
      %p388 = scmp.ne.s32.totalorder %s380, %s383
      %p389 = scmp.eq.s32.totalorder %s51, 0
      %p390 = por %p388, %p389
      %p391 = scmp.ne.s32.totalorder %s380, %s383
      %p392 = scmp.eq.s32.totalorder %s56, 3
      %p393 = por %p391, %p392
      %p394 = scmp.ne.s32.totalorder %s383, %s384
      %p395 = scmp.eq.s32.totalorder %s56, 0
      %p396 = por %p394, %p395
      %p397 = scmp.ne.s32.totalorder %s383, %s384
      %p398 = scmp.eq.s32.totalorder %s57, 3
      %p399 = por %p397, %p398
      %p401 = scmp.ne.s32.totalorder %s384, %s400
      %p402 = scmp.eq.s32.totalorder %s57, 0
      %p403 = por %p401, %p402
      %s404 = ssub.s32 %s59, %s66
      %p405 = scmp.eq.s32.totalorder %s404, 0
      %s407 = sadd.s32 %s406, 1
      %s408 = scalar_select %p405, %s406, %s407
      %p411 = pneg %p405
      %p412 = scmp.eq.s32.totalorder %s51, 3
      %p413 = por %p411, %p412
      %p414 = scmp.ne.s32.totalorder %s406, %s409
      %p415 = scmp.eq.s32.totalorder %s51, 0
      %p416 = por %p414, %p415
      %p417 = scmp.ne.s32.totalorder %s406, %s409
      %p418 = scmp.eq.s32.totalorder %s56, 3
      %p419 = por %p417, %p418
      %p420 = scmp.ne.s32.totalorder %s409, %s410
      %p421 = scmp.eq.s32.totalorder %s56, 0
      %p422 = por %p420, %p421
      %p423 = scmp.ne.s32.totalorder %s409, %s410
      %p424 = scmp.eq.s32.totalorder %s57, 3
      %p425 = por %p423, %p424
      %p427 = scmp.ne.s32.totalorder %s410, %s426
      %p428 = scmp.eq.s32.totalorder %s57, 0
      %p429 = por %p427, %p428
      %s430 = ssub.s32 %s59, %s66
      %p431 = scmp.eq.s32.totalorder %s430, 0
      %s433 = sadd.s32 %s432, 1
      %s434 = scalar_select %p431, %s432, %s433
      %p437 = pneg %p431
      %p438 = scmp.eq.s32.totalorder %s51, 3
      %p439 = por %p437, %p438
      %p440 = scmp.ne.s32.totalorder %s432, %s435
      %p441 = scmp.eq.s32.totalorder %s51, 0
      %p442 = por %p440, %p441
      %p443 = scmp.ne.s32.totalorder %s432, %s435
      %p444 = scmp.eq.s32.totalorder %s56, 3
      %p445 = por %p443, %p444
      %p446 = scmp.ne.s32.totalorder %s435, %s436
      %p447 = scmp.eq.s32.totalorder %s56, 0
      %p448 = por %p446, %p447
      %p449 = scmp.ne.s32.totalorder %s435, %s436
      %p450 = scmp.eq.s32.totalorder %s57, 3
      %p451 = por %p449, %p450
      %p453 = scmp.ne.s32.totalorder %s436, %s452
      %p454 = scmp.eq.s32.totalorder %s57, 0
      %p455 = por %p453, %p454
      %s456 = ssub.s32 %s59, %s66
      %p457 = scmp.eq.s32.totalorder %s456, 0
      %s459 = sadd.s32 %s458, 1
      %s460 = scalar_select %p457, %s458, %s459
      %p463 = pneg %p457
      %p464 = scmp.eq.s32.totalorder %s51, 3
      %p465 = por %p463, %p464
      %p466 = scmp.ne.s32.totalorder %s458, %s461
      %p467 = scmp.eq.s32.totalorder %s51, 0
      %p468 = por %p466, %p467
      %p469 = scmp.ne.s32.totalorder %s458, %s461
      %p470 = scmp.eq.s32.totalorder %s56, 3
      %p471 = por %p469, %p470
      %p472 = scmp.ne.s32.totalorder %s461, %s462
      %p473 = scmp.eq.s32.totalorder %s56, 0
      %p474 = por %p472, %p473
      %p475 = scmp.ne.s32.totalorder %s461, %s462
      %p476 = scmp.eq.s32.totalorder %s57, 3
      %p477 = por %p475, %p476
      %p479 = scmp.ne.s32.totalorder %s462, %s478
      %p480 = scmp.eq.s32.totalorder %s57, 0
      %p481 = por %p479, %p480
      %s482 = ssub.s32 %s59, %s66
      %p483 = scmp.eq.s32.totalorder %s482, 0
      %s485 = sadd.s32 %s484, 1
      %s486 = scalar_select %p483, %s484, %s485
      %p489 = pneg %p483
      %p490 = scmp.eq.s32.totalorder %s51, 3
      %p491 = por %p489, %p490
      %p492 = scmp.ne.s32.totalorder %s484, %s487
      %p493 = scmp.eq.s32.totalorder %s51, 0
      %p494 = por %p492, %p493
      %p495 = scmp.ne.s32.totalorder %s484, %s487
      %p496 = scmp.eq.s32.totalorder %s56, 3
      %p497 = por %p495, %p496
      %p498 = scmp.ne.s32.totalorder %s487, %s488
      %p499 = scmp.eq.s32.totalorder %s56, 0
      %p500 = por %p498, %p499
      %p501 = scmp.ne.s32.totalorder %s487, %s488
      %p502 = scmp.eq.s32.totalorder %s57, 3
      %p503 = por %p501, %p502
      %p505 = scmp.ne.s32.totalorder %s488, %s504
      %p506 = scmp.eq.s32.totalorder %s57, 0
      %p507 = por %p505, %p506
      %s508 = ssub.s32 %s59, %s66
      %p509 = scmp.eq.s32.totalorder %s508, 0
      %s511 = sadd.s32 %s510, 1
      %s512 = scalar_select %p509, %s510, %s511
      %p515 = pneg %p509
      %p516 = scmp.eq.s32.totalorder %s51, 3
      %p517 = por %p515, %p516
      %p518 = scmp.ne.s32.totalorder %s510, %s513
      %p519 = scmp.eq.s32.totalorder %s51, 0
      %p520 = por %p518, %p519
      %p521 = scmp.ne.s32.totalorder %s510, %s513
      %p522 = scmp.eq.s32.totalorder %s56, 3
      %p523 = por %p521, %p522
      %p524 = scmp.ne.s32.totalorder %s513, %s514
      %p525 = scmp.eq.s32.totalorder %s56, 0
      %p526 = por %p524, %p525
      %p527 = scmp.ne.s32.totalorder %s513, %s514
      %p528 = scmp.eq.s32.totalorder %s57, 3
      %p529 = por %p527, %p528
      %p531 = scmp.ne.s32.totalorder %s514, %s530
      %p532 = scmp.eq.s32.totalorder %s57, 0
      %p533 = por %p531, %p532
      %s534 = ssub.s32 %s59, %s66
      %p535 = scmp.eq.s32.totalorder %s534, 0
      %s537 = sadd.s32 %s536, 1
      %s538 = scalar_select %p535, %s536, %s537
      %p541 = pneg %p535
      %p542 = scmp.eq.s32.totalorder %s51, 3
      %p543 = por %p541, %p542
      %p544 = scmp.ne.s32.totalorder %s536, %s539
      %p545 = scmp.eq.s32.totalorder %s51, 0
      %p546 = por %p544, %p545
      %p547 = scmp.ne.s32.totalorder %s536, %s539
      %p548 = scmp.eq.s32.totalorder %s56, 3
      %p549 = por %p547, %p548
      %p550 = scmp.ne.s32.totalorder %s539, %s540
      %p551 = scmp.eq.s32.totalorder %s56, 0
      %p552 = por %p550, %p551
      %p553 = scmp.ne.s32.totalorder %s539, %s540
      %p554 = scmp.eq.s32.totalorder %s57, 3
      %p555 = por %p553, %p554
      %p557 = scmp.ne.s32.totalorder %s540, %s556
      %p558 = scmp.eq.s32.totalorder %s57, 0
      %p559 = por %p557, %p558
      %s560 = ssub.s32 %s59, %s66
      %p561 = scmp.eq.s32.totalorder %s560, 0
      %s563 = sadd.s32 %s562, 1
      %s564 = scalar_select %p561, %s562, %s563
      %p567 = pneg %p561
      %p568 = scmp.eq.s32.totalorder %s51, 3
      %p569 = por %p567, %p568
      %p570 = scmp.ne.s32.totalorder %s562, %s565
      %p571 = scmp.eq.s32.totalorder %s51, 0
      %p572 = por %p570, %p571
      %p573 = scmp.ne.s32.totalorder %s562, %s565
      %p574 = scmp.eq.s32.totalorder %s56, 3
      %p575 = por %p573, %p574
      %p576 = scmp.ne.s32.totalorder %s565, %s566
      %p577 = scmp.eq.s32.totalorder %s56, 0
      %p578 = por %p576, %p577
      %p579 = scmp.ne.s32.totalorder %s565, %s566
      %p580 = scmp.eq.s32.totalorder %s57, 3
      %p581 = por %p579, %p580
      %p583 = scmp.ne.s32.totalorder %s566, %s582
      %p584 = scmp.eq.s32.totalorder %s57, 0
      %p585 = por %p583, %p584
      %s586 = ssub.s32 %s59, %s66
      %p587 = scmp.eq.s32.totalorder %s586, 0
      %s589 = sadd.s32 %s588, 1
      %s590 = scalar_select %p587, %s588, %s589
      %p593 = pneg %p587
      %p594 = scmp.eq.s32.totalorder %s51, 3
      %p595 = por %p593, %p594
      %p596 = scmp.ne.s32.totalorder %s588, %s591
      %p597 = scmp.eq.s32.totalorder %s51, 0
      %p598 = por %p596, %p597
      %p599 = scmp.ne.s32.totalorder %s588, %s591
      %p600 = scmp.eq.s32.totalorder %s56, 3
      %p601 = por %p599, %p600
      %p602 = scmp.ne.s32.totalorder %s591, %s592
      %p603 = scmp.eq.s32.totalorder %s56, 0
      %p604 = por %p602, %p603
      %p605 = scmp.ne.s32.totalorder %s591, %s592
      %p606 = scmp.eq.s32.totalorder %s57, 3
      %p607 = por %p605, %p606
      %p609 = scmp.ne.s32.totalorder %s592, %s608
      %p610 = scmp.eq.s32.totalorder %s57, 0
      %p611 = por %p609, %p610
      %s613 = sadd.s32 %s612, 1
      %p616 = scmp.eq.s32.totalorder %s51, 3
      %p617 = scmp.ne.s32.totalorder %s612, %s614
      %p618 = scmp.eq.s32.totalorder %s51, 0
      %p619 = por %p617, %p618
      %p620 = scmp.ne.s32.totalorder %s612, %s614
      %p621 = scmp.eq.s32.totalorder %s56, 3
      %p622 = por %p620, %p621
      %p623 = scmp.ne.s32.totalorder %s614, %s615
      %p624 = scmp.eq.s32.totalorder %s56, 0
      %p625 = por %p623, %p624
      %p626 = scmp.ne.s32.totalorder %s614, %s615
      %p627 = scmp.eq.s32.totalorder %s57, 3
      %p628 = por %p626, %p627
      %p630 = scmp.ne.s32.totalorder %s615, %s629
      %p631 = scmp.eq.s32.totalorder %s57, 0
      %p632 = por %p630, %p631
      %s634 = sadd.s32 %s633, 1
      %p637 = scmp.eq.s32.totalorder %s51, 3
      %p638 = scmp.ne.s32.totalorder %s633, %s635
      %p639 = scmp.eq.s32.totalorder %s51, 0
      %p640 = por %p638, %p639
      %p641 = scmp.ne.s32.totalorder %s633, %s635
      %p642 = scmp.eq.s32.totalorder %s56, 3
      %p643 = por %p641, %p642
      %p644 = scmp.ne.s32.totalorder %s635, %s636
      %p645 = scmp.eq.s32.totalorder %s56, 0
      %p646 = por %p644, %p645
      %p647 = scmp.ne.s32.totalorder %s635, %s636
      %p648 = scmp.eq.s32.totalorder %s57, 3
      %p649 = por %p647, %p648
      %p651 = scmp.ne.s32.totalorder %s636, %s650
      %p652 = scmp.eq.s32.totalorder %s57, 0
      %p653 = por %p651, %p652
      %s655 = sadd.s32 %s654, 1
      %p658 = scmp.eq.s32.totalorder %s51, 3
      %p659 = scmp.ne.s32.totalorder %s654, %s656
      %p660 = scmp.eq.s32.totalorder %s51, 0
      %p661 = por %p659, %p660
      %p662 = scmp.ne.s32.totalorder %s654, %s656
      %p663 = scmp.eq.s32.totalorder %s56, 3
      %p664 = por %p662, %p663
      %p665 = scmp.ne.s32.totalorder %s656, %s657
      %p666 = scmp.eq.s32.totalorder %s56, 0
      %p667 = por %p665, %p666
      %p668 = scmp.ne.s32.totalorder %s656, %s657
      %p669 = scmp.eq.s32.totalorder %s57, 3
      %p670 = por %p668, %p669
      %p672 = scmp.ne.s32.totalorder %s657, %s671
      %p673 = scmp.eq.s32.totalorder %s57, 0
      %p674 = por %p672, %p673
      %s676 = sadd.s32 %s675, 1
      %p679 = scmp.eq.s32.totalorder %s51, 3
      %p680 = scmp.ne.s32.totalorder %s675, %s677
      %p681 = scmp.eq.s32.totalorder %s51, 0
      %p682 = por %p680, %p681
      %p683 = scmp.ne.s32.totalorder %s675, %s677
      %p684 = scmp.eq.s32.totalorder %s56, 3
      %p685 = por %p683, %p684
      %p686 = scmp.ne.s32.totalorder %s677, %s678
      %p687 = scmp.eq.s32.totalorder %s56, 0
      %p688 = por %p686, %p687
      %p689 = scmp.ne.s32.totalorder %s677, %s678
      %p690 = scmp.eq.s32.totalorder %s57, 3
      %p691 = por %p689, %p690
      %p693 = scmp.ne.s32.totalorder %s678, %s692
      %p694 = scmp.eq.s32.totalorder %s57, 0
      %p695 = por %p693, %p694
      %s696 = ssub.s32 %s58, %s70
      %p697 = scmp.eq.s32.totalorder %s696, 0
      %s699 = sadd.s32 %s698, 1
      %s700 = scalar_select %p697, %s698, %s699
      %p703 = pneg %p697
      %p704 = scmp.eq.s32.totalorder %s51, 3
      %p705 = por %p703, %p704
      %p706 = scmp.ne.s32.totalorder %s698, %s701
      %p707 = scmp.eq.s32.totalorder %s51, 0
      %p708 = por %p706, %p707
      %p709 = scmp.ne.s32.totalorder %s698, %s701
      %p710 = scmp.eq.s32.totalorder %s56, 3
      %p711 = por %p709, %p710
      %p712 = scmp.ne.s32.totalorder %s701, %s702
      %p713 = scmp.eq.s32.totalorder %s56, 0
      %p714 = por %p712, %p713
      %p715 = scmp.ne.s32.totalorder %s701, %s702
      %p716 = scmp.eq.s32.totalorder %s57, 3
      %p717 = por %p715, %p716
      %p719 = scmp.ne.s32.totalorder %s702, %s718
      %p720 = scmp.eq.s32.totalorder %s57, 0
      %p721 = por %p719, %p720
      %p722 = scmp.le.s32.totalorder 1, %s51
      %p723 = scmp.lt.s32.totalorder %s51, 5
      %p724 = pnand %p722, %p723
      %p725 = pneg %p724
      // Predicated region
      $region9: #{tpu_custom_call.1} parent=5 // pred_check
        _
      $region10: #{tpu_custom_call.1} parent=5 // pred_check_branch
        %727 = sbr.rel (%p724) target = $region12
      $region11: #{tpu_custom_call.1} parent=5 // pred_region
        %s728 = ssub.s32 %s51, 1
        // Predicated region
        $region13: #{tpu_custom_call.1} parent=11 // pred_check
          %p729 = pneg %p188
        $region14: #{tpu_custom_call.1} parent=11 // pred_check_branch
          %731 = sbr.rel (%p729) target = $region16
        $region15: #{tpu_custom_call.1} parent=11 // pred_region
          %s733 = ssub.s32 128, 128
          %734 = vsyncadd [#allocation9], %s733
          %s736 = sshll.u32 [#allocation10], 4
          %s737 = int_to_ptr.vmem [resolvable:$true] %s736
          %739 = dma.hbm_to_vmem [thread:$0]  %s4, 128, %s737, [#allocation9]
        $region16: #{tpu_custom_call.1} parent=11 // pred_fallthru
          _
        // Predicated region
        $region17: #{tpu_custom_call.1} parent=11 // pred_check
          %p740 = pneg %p625
        $region18: #{tpu_custom_call.1} parent=11 // pred_check_branch
          %742 = sbr.rel (%p740) target = $region20
        $region19: #{tpu_custom_call.1} parent=11 // pred_region
          _
        $region20: #{tpu_custom_call.1} parent=11 // pred_fallthru
          _
        // Predicated region
        $region21: #{tpu_custom_call.1} parent=11 // pred_check
          %p743 = pneg %p646
        $region22: #{tpu_custom_call.1} parent=11 // pred_check_branch
          %745 = sbr.rel (%p743) target = $region24
        $region23: #{tpu_custom_call.1} parent=11 // pred_region
          _
        $region24: #{tpu_custom_call.1} parent=11 // pred_fallthru
          _
        // Predicated region
        $region25: #{tpu_custom_call.1} parent=11 // pred_check
          %p746 = pneg %p667
        $region26: #{tpu_custom_call.1} parent=11 // pred_check_branch
          %748 = sbr.rel (%p746) target = $region28
        $region27: #{tpu_custom_call.1} parent=11 // pred_region
          _
        $region28: #{tpu_custom_call.1} parent=11 // pred_fallthru
          _
        // Predicated region
        $region29: #{tpu_custom_call.1} parent=11 // pred_check
          %p749 = pneg %p688
        $region30: #{tpu_custom_call.1} parent=11 // pred_check_branch
          %751 = sbr.rel (%p749) target = $region32
        $region31: #{tpu_custom_call.1} parent=11 // pred_region
          _
        $region32: #{tpu_custom_call.1} parent=11 // pred_fallthru
          _
      $region12: #{tpu_custom_call.1} parent=5 // pred_fallthru
        _
      %p752 = scmp.lt.s32.totalorder %s51, 4
      // Predicated region
      $region33: #{tpu_custom_call.1} parent=5 // pred_check
        %p753 = pneg %p752
      $region34: #{tpu_custom_call.1} parent=5 // pred_check_branch
        %755 = sbr.rel (%p753) target = $region36
      $region35: #{tpu_custom_call.1} parent=5 // pred_region
        // Predicated region
        $region37: #{tpu_custom_call.1} parent=35 // pred_check
          %p756 = pneg %p83
        $region38: #{tpu_custom_call.1} parent=35 // pred_check_branch
          %758 = sbr.rel (%p756) target = $region40
        $region39: #{tpu_custom_call.1} parent=35 // pred_region
          %s759 = sand.u32 %s73, 1
          %s760 = scalar_lea.sflag [#allocation6], %s759
          %s761 = sand.u32 %s73, 1
          %s762 = smul.addr %s761, 8
          %s763 = scalar_lea.vmem [#allocation5], %s762
          %s765 = ssub.s32 128, 128
          %766 = vsyncadd %s760, %s765
          %s767 = smul.addr %s58, 128
          %s768 = scalar_lea.hbm %s0, %s767
          %s770 = sshll.u32 %s763, 4
          %s771 = int_to_ptr.vmem [resolvable:$true] %s770
          %773 = dma.hbm_to_vmem [thread:$0]  %s768, 128, %s771, %s760
        $region40: #{tpu_custom_call.1} parent=35 // pred_fallthru
          _
        // Predicated region
        $region41: #{tpu_custom_call.1} parent=35 // pred_check
          %p774 = pneg %p109
        $region42: #{tpu_custom_call.1} parent=35 // pred_check_branch
          %776 = sbr.rel (%p774) target = $region44
        $region43: #{tpu_custom_call.1} parent=35 // pred_region
          %p777 = scmp.lt.s32.totalorder %s58, 1
          %s778 = scalar_select %p777, %s58, 1
          %s779 = smul.addr %s778, 8
          %s780 = scalar_lea.vmem %s1, %s779
        $region44: #{tpu_custom_call.1} parent=35 // pred_fallthru
          _
        // Predicated region
        $region45: #{tpu_custom_call.1} parent=35 // pred_check
          %p781 = pneg %p135
        $region46: #{tpu_custom_call.1} parent=35 // pred_check_branch
          %783 = sbr.rel (%p781) target = $region48
        $region47: #{tpu_custom_call.1} parent=35 // pred_region
          %p784 = scmp.lt.s32.totalorder %s58, 1
          %s785 = scalar_select %p784, %s58, 1
          %s786 = scalar_lea.vmem %s2, %s785
        $region48: #{tpu_custom_call.1} parent=35 // pred_fallthru
          _
        // Predicated region
        $region49: #{tpu_custom_call.1} parent=35 // pred_check
          %p787 = pneg %p161
        $region50: #{tpu_custom_call.1} parent=35 // pred_check_branch
          %789 = sbr.rel (%p787) target = $region52
        $region51: #{tpu_custom_call.1} parent=35 // pred_region
          %s790 = sand.u32 %s51, 1
          %s791 = scalar_lea.sflag [#allocation9], %s790
          %s792 = sand.u32 %s151, 1
          %s793 = scalar_lea.vmem [#allocation8], %s792
          %s795 = ssub.s32 16, 16
          %796 = vsyncadd %s791, %s795
          %s797 = smul.addr %s58, 16
          %s798 = scalar_lea.hbm %s3, %s797
          %s800 = sshll.u32 %s793, 4
          %s801 = int_to_ptr.vmem [resolvable:$true] %s800
          %803 = dma.hbm_to_vmem [thread:$0]  %s798, 16, %s801, %s791
        $region52: #{tpu_custom_call.1} parent=35 // pred_fallthru
          _
        // Predicated region
        $region53: #{tpu_custom_call.1} parent=35 // pred_check
          %p804 = pneg %p208
        $region54: #{tpu_custom_call.1} parent=35 // pred_check_branch
          %806 = sbr.rel (%p804) target = $region56
        $region55: #{tpu_custom_call.1} parent=35 // pred_region
          %s807 = sand.u32 %s51, 1
          %s808 = scalar_lea.sflag [#allocation12], %s807
          %s809 = sand.u32 %s198, 1
          %s810 = scalar_lea.vmem [#allocation11], %s809
          %s812 = ssub.s32 16, 16
          %813 = vsyncadd %s808, %s812
          %s814 = smul.addr %s59, 16
          %s815 = scalar_lea.hbm %s5, %s814
          %s817 = sshll.u32 %s810, 4
          %s818 = int_to_ptr.vmem [resolvable:$true] %s817
          %820 = dma.hbm_to_vmem [thread:$0]  %s815, 16, %s818, %s808
        $region56: #{tpu_custom_call.1} parent=35 // pred_fallthru
          _
        // Predicated region
        $region57: #{tpu_custom_call.1} parent=35 // pred_check
          %p821 = pneg %p234
        $region58: #{tpu_custom_call.1} parent=35 // pred_check_branch
          %823 = sbr.rel (%p821) target = $region60
        $region59: #{tpu_custom_call.1} parent=35 // pred_region
          %s824 = sand.u32 %s51, 1
          %s825 = scalar_lea.sflag [#allocation12], %s824
          %s826 = sand.u32 %s224, 1
          %s827 = scalar_lea.vmem [#allocation13], %s826
          %s829 = ssub.s32 16, 16
          %830 = vsyncadd %s825, %s829
          %s831 = smul.addr %s59, 16
          %s832 = scalar_lea.hbm %s6, %s831
          %s834 = sshll.u32 %s827, 4
          %s835 = int_to_ptr.vmem [resolvable:$true] %s834
          %837 = dma.hbm_to_vmem [thread:$0]  %s832, 16, %s835, %s825
        $region60: #{tpu_custom_call.1} parent=35 // pred_fallthru
          _
        // Predicated region
        $region61: #{tpu_custom_call.1} parent=35 // pred_check
          %p838 = pneg %p260
        $region62: #{tpu_custom_call.1} parent=35 // pred_check_branch
          %840 = sbr.rel (%p838) target = $region64
        $region63: #{tpu_custom_call.1} parent=35 // pred_region
          %p841 = scmp.lt.s32.totalorder %s59, 1
          %s842 = scalar_select %p841, %s59, 1
          %s843 = smul.addr %s842, 4
          %s844 = smul.addr %s843, 4
          %s845 = scalar_lea.vmem %s7, %s844
        $region64: #{tpu_custom_call.1} parent=35 // pred_fallthru
          _
        // Predicated region
        $region65: #{tpu_custom_call.1} parent=35 // pred_check
          %p846 = pneg %p286
        $region66: #{tpu_custom_call.1} parent=35 // pred_check_branch
          %848 = sbr.rel (%p846) target = $region68
        $region67: #{tpu_custom_call.1} parent=35 // pred_region
          %s849 = sand.u32 %s51, 1
          %s850 = scalar_lea.sflag [#allocation15], %s849
          %s851 = sand.u32 %s276, 1
          %s852 = scalar_lea.vmem [#allocation14], %s851
          %s854 = ssub.s32 16, 16
          %855 = vsyncadd %s850, %s854
          %s856 = smul.addr %s59, 16
          %s857 = scalar_lea.hbm %s8, %s856
          %s859 = sshll.u32 %s852, 4
          %s860 = int_to_ptr.vmem [resolvable:$true] %s859
          %862 = dma.hbm_to_vmem [thread:$0]  %s857, 16, %s860, %s850
        $region68: #{tpu_custom_call.1} parent=35 // pred_fallthru
          _
        // Predicated region
        $region69: #{tpu_custom_call.1} parent=35 // pred_check
          %p863 = pneg %p312
        $region70: #{tpu_custom_call.1} parent=35 // pred_check_branch
          %865 = sbr.rel (%p863) target = $region72
        $region71: #{tpu_custom_call.1} parent=35 // pred_region
          %p866 = scmp.lt.s32.totalorder %s59, 1
          %s867 = scalar_select %p866, %s59, 1
          %s868 = smul.addr %s867, 4
          %s869 = smul.addr %s868, 4
          %s870 = scalar_lea.vmem %s9, %s869
        $region72: #{tpu_custom_call.1} parent=35 // pred_fallthru
          _
        // Predicated region
        $region73: #{tpu_custom_call.1} parent=35 // pred_check
          %p871 = pneg %p338
        $region74: #{tpu_custom_call.1} parent=35 // pred_check_branch
          %873 = sbr.rel (%p871) target = $region76
        $region75: #{tpu_custom_call.1} parent=35 // pred_region
          %s874 = sand.u32 %s51, 1
          %s875 = scalar_lea.sflag [#allocation15], %s874
          %s876 = sand.u32 %s328, 1
          %s877 = scalar_lea.vmem [#allocation16], %s876
          %s879 = ssub.s32 16, 16
          %880 = vsyncadd %s875, %s879
          %s881 = smul.addr %s59, 16
          %s882 = scalar_lea.hbm %s10, %s881
          %s884 = sshll.u32 %s877, 4
          %s885 = int_to_ptr.vmem [resolvable:$true] %s884
          %887 = dma.hbm_to_vmem [thread:$0]  %s882, 16, %s885, %s875
        $region76: #{tpu_custom_call.1} parent=35 // pred_fallthru
          _
        // Predicated region
        $region77: #{tpu_custom_call.1} parent=35 // pred_check
          %p888 = pneg %p364
        $region78: #{tpu_custom_call.1} parent=35 // pred_check_branch
          %890 = sbr.rel (%p888) target = $region80
        $region79: #{tpu_custom_call.1} parent=35 // pred_region
          %p891 = scmp.lt.s32.totalorder %s59, 1
          %s892 = scalar_select %p891, %s59, 1
          %s893 = smul.addr %s892, 4
          %s894 = smul.addr %s893, 4
          %s895 = scalar_lea.vmem %s11, %s894
        $region80: #{tpu_custom_call.1} parent=35 // pred_fallthru
          _
        // Predicated region
        $region81: #{tpu_custom_call.1} parent=35 // pred_check
          %p896 = pneg %p390
        $region82: #{tpu_custom_call.1} parent=35 // pred_check_branch
          %898 = sbr.rel (%p896) target = $region84
        $region83: #{tpu_custom_call.1} parent=35 // pred_region
          %s899 = sand.u32 %s51, 1
          %s900 = scalar_lea.sflag [#allocation18], %s899
          %s901 = sand.u32 %s380, 1
          %s902 = scalar_lea.vmem [#allocation17], %s901
          %s904 = ssub.s32 16, 16
          %905 = vsyncadd %s900, %s904
          %s906 = smul.addr %s59, 16
          %s907 = scalar_lea.hbm %s12, %s906
          %s909 = sshll.u32 %s902, 4
          %s910 = int_to_ptr.vmem [resolvable:$true] %s909
          %912 = dma.hbm_to_vmem [thread:$0]  %s907, 16, %s910, %s900
        $region84: #{tpu_custom_call.1} parent=35 // pred_fallthru
          _
        // Predicated region
        $region85: #{tpu_custom_call.1} parent=35 // pred_check
          %p913 = pneg %p416
        $region86: #{tpu_custom_call.1} parent=35 // pred_check_branch
          %915 = sbr.rel (%p913) target = $region88
        $region87: #{tpu_custom_call.1} parent=35 // pred_region
          %p916 = scmp.lt.s32.totalorder %s59, 1
          %s917 = scalar_select %p916, %s59, 1
          %s918 = smul.addr %s917, 4
          %s919 = smul.addr %s918, 4
          %s920 = scalar_lea.vmem %s13, %s919
        $region88: #{tpu_custom_call.1} parent=35 // pred_fallthru
          _
        // Predicated region
        $region89: #{tpu_custom_call.1} parent=35 // pred_check
          %p921 = pneg %p442
        $region90: #{tpu_custom_call.1} parent=35 // pred_check_branch
          %923 = sbr.rel (%p921) target = $region92
        $region91: #{tpu_custom_call.1} parent=35 // pred_region
          %p924 = scmp.lt.s32.totalorder %s59, 1
          %s925 = scalar_select %p924, %s59, 1
          %s926 = scalar_lea.vmem %s14, %s925
        $region92: #{tpu_custom_call.1} parent=35 // pred_fallthru
          _
        // Predicated region
        $region93: #{tpu_custom_call.1} parent=35 // pred_check
          %p927 = pneg %p468
        $region94: #{tpu_custom_call.1} parent=35 // pred_check_branch
          %929 = sbr.rel (%p927) target = $region96
        $region95: #{tpu_custom_call.1} parent=35 // pred_region
          %p930 = scmp.lt.s32.totalorder %s59, 1
          %s931 = scalar_select %p930, %s59, 1
          %s932 = scalar_lea.vmem %s15, %s931
        $region96: #{tpu_custom_call.1} parent=35 // pred_fallthru
          _
        // Predicated region
        $region97: #{tpu_custom_call.1} parent=35 // pred_check
          %p933 = pneg %p494
        $region98: #{tpu_custom_call.1} parent=35 // pred_check_branch
          %935 = sbr.rel (%p933) target = $region100
        $region99: #{tpu_custom_call.1} parent=35 // pred_region
          %p936 = scmp.lt.s32.totalorder %s59, 1
          %s937 = scalar_select %p936, %s59, 1
          %s938 = scalar_lea.vmem %s16, %s937
        $region100: #{tpu_custom_call.1} parent=35 // pred_fallthru
          _
        // Predicated region
        $region101: #{tpu_custom_call.1} parent=35 // pred_check
          %p939 = pneg %p520
        $region102: #{tpu_custom_call.1} parent=35 // pred_check_branch
          %941 = sbr.rel (%p939) target = $region104
        $region103: #{tpu_custom_call.1} parent=35 // pred_region
          %s942 = sand.u32 %s51, 1
          %s943 = scalar_lea.sflag [#allocation18], %s942
          %s944 = sand.u32 %s510, 1
          %s945 = smul.addr %s944, 16
          %s946 = scalar_lea.vmem [#allocation19], %s945
          %s948 = ssub.s32 256, 256
          %949 = vsyncadd %s943, %s948
          %s950 = smul.addr %s59, 4
          %s951 = smul.addr %s950, 64
          %s952 = scalar_lea.hbm %s17, %s951
          %s953 = sshll.u32 %s946, 4
          %s954 = int_to_ptr.vmem [resolvable:$true] %s953
          %959 = dma.hbm_to_vmem [thread:$0]  %s952, 256, %s954, %s943, 64, 64, 4
        $region104: #{tpu_custom_call.1} parent=35 // pred_fallthru
          _
        // Predicated region
        $region105: #{tpu_custom_call.1} parent=35 // pred_check
          %p960 = pneg %p546
        $region106: #{tpu_custom_call.1} parent=35 // pred_check_branch
          %962 = sbr.rel (%p960) target = $region108
        $region107: #{tpu_custom_call.1} parent=35 // pred_region
          %p963 = scmp.lt.s32.totalorder %s59, 1
          %s964 = scalar_select %p963, %s59, 1
          %s965 = scalar_lea.vmem %s18, %s964
        $region108: #{tpu_custom_call.1} parent=35 // pred_fallthru
          _
        // Predicated region
        $region109: #{tpu_custom_call.1} parent=35 // pred_check
          %p966 = pneg %p572
        $region110: #{tpu_custom_call.1} parent=35 // pred_check_branch
          %968 = sbr.rel (%p966) target = $region112
        $region111: #{tpu_custom_call.1} parent=35 // pred_region
          %p969 = scmp.lt.s32.totalorder %s59, 1
          %s970 = scalar_select %p969, %s59, 1
          %s971 = smul.addr %s970, 8
          %s972 = smul.addr %s971, 4
          %s973 = scalar_lea.vmem %s19, %s972
        $region112: #{tpu_custom_call.1} parent=35 // pred_fallthru
          _
        // Predicated region
        $region113: #{tpu_custom_call.1} parent=35 // pred_check
          %p974 = pneg %p598
        $region114: #{tpu_custom_call.1} parent=35 // pred_check_branch
          %976 = sbr.rel (%p974) target = $region116
        $region115: #{tpu_custom_call.1} parent=35 // pred_region
          %p977 = scmp.lt.s32.totalorder %s59, 1
          %s978 = scalar_select %p977, %s59, 1
          %s979 = scalar_lea.vmem %s20, %s978
        $region116: #{tpu_custom_call.1} parent=35 // pred_fallthru
          _
      $region36: #{tpu_custom_call.1} parent=5 // pred_fallthru
        _
      %p980 = scmp.le.s32.totalorder 1, %s51
      %p981 = scmp.lt.s32.totalorder %s51, 5
      %p982 = pnand %p980, %p981
      %p983 = pneg %p982
      // Predicated region
      $region117: #{tpu_custom_call.1} parent=5 // pred_check
        _
      $region118: #{tpu_custom_call.1} parent=5 // pred_check_branch
        %985 = sbr.rel (%p982) target = $region120
      $region119: #{tpu_custom_call.1} parent=5 // pred_region
        %s986 = ssub.s32 %s51, 1
        %s987 = sand.u32 %s76, 1
        %s988 = scalar_lea.sflag [#allocation6], %s987
        %s989 = sand.u32 %s76, 1
        %s990 = smul.addr %s989, 8
        %s991 = scalar_lea.vmem [#allocation5], %s990
        // Predicated region
        $region121: #{tpu_custom_call.1} parent=119 // pred_check
          %p992 = pneg %p89
        $region122: #{tpu_custom_call.1} parent=119 // pred_check_branch
          %994 = sbr.rel (%p992) target = $region124
        $region123: #{tpu_custom_call.1} parent=119 // pred_region
          %995 = dma.done %s988, 128
        $region124: #{tpu_custom_call.1} parent=119 // pred_fallthru
          _
        %s996 = sand.u32 %s56, 1
        %s997 = scalar_lea.sflag [#allocation9], %s996
        %s998 = sand.u32 %s154, 1
        %s999 = scalar_lea.vmem [#allocation8], %s998
        // Predicated region
        $region125: #{tpu_custom_call.1} parent=119 // pred_check
          %p1000 = pneg %p167
        $region126: #{tpu_custom_call.1} parent=119 // pred_check_branch
          %1002 = sbr.rel (%p1000) target = $region128
        $region127: #{tpu_custom_call.1} parent=119 // pred_region
          %1003 = dma.done %s997, 16
        $region128: #{tpu_custom_call.1} parent=119 // pred_fallthru
          _
        // Predicated region
        $region129: #{tpu_custom_call.1} parent=119 // pred_check
          %p1004 = pneg %p188
        $region130: #{tpu_custom_call.1} parent=119 // pred_check_branch
          %1006 = sbr.rel (%p1004) target = $region132
        $region131: #{tpu_custom_call.1} parent=119 // pred_region
          %1007 = dma.done [#allocation9], 128
        $region132: #{tpu_custom_call.1} parent=119 // pred_fallthru
          _
        %s1008 = sand.u32 %s56, 1
        %s1009 = scalar_lea.sflag [#allocation12], %s1008
        %s1010 = sand.u32 %s201, 1
        %s1011 = scalar_lea.vmem [#allocation11], %s1010
        // Predicated region
        $region133: #{tpu_custom_call.1} parent=119 // pred_check
          %p1012 = pneg %p214
        $region134: #{tpu_custom_call.1} parent=119 // pred_check_branch
          %1014 = sbr.rel (%p1012) target = $region136
        $region135: #{tpu_custom_call.1} parent=119 // pred_region
          %1015 = dma.done %s1009, 16
        $region136: #{tpu_custom_call.1} parent=119 // pred_fallthru
          _
        %s1016 = sand.u32 %s56, 1
        %s1017 = scalar_lea.sflag [#allocation12], %s1016
        %s1018 = sand.u32 %s227, 1
        %s1019 = scalar_lea.vmem [#allocation13], %s1018
        // Predicated region
        $region137: #{tpu_custom_call.1} parent=119 // pred_check
          %p1020 = pneg %p240
        $region138: #{tpu_custom_call.1} parent=119 // pred_check_branch
          %1022 = sbr.rel (%p1020) target = $region140
        $region139: #{tpu_custom_call.1} parent=119 // pred_region
          %1023 = dma.done %s1017, 16
        $region140: #{tpu_custom_call.1} parent=119 // pred_fallthru
          _
        %s1024 = sand.u32 %s56, 1
        %s1025 = scalar_lea.sflag [#allocation15], %s1024
        %s1026 = sand.u32 %s279, 1
        %s1027 = scalar_lea.vmem [#allocation14], %s1026
        // Predicated region
        $region141: #{tpu_custom_call.1} parent=119 // pred_check
          %p1028 = pneg %p292
        $region142: #{tpu_custom_call.1} parent=119 // pred_check_branch
          %1030 = sbr.rel (%p1028) target = $region144
        $region143: #{tpu_custom_call.1} parent=119 // pred_region
          %1031 = dma.done %s1025, 16
        $region144: #{tpu_custom_call.1} parent=119 // pred_fallthru
          _
        %s1032 = sand.u32 %s56, 1
        %s1033 = scalar_lea.sflag [#allocation15], %s1032
        %s1034 = sand.u32 %s331, 1
        %s1035 = scalar_lea.vmem [#allocation16], %s1034
        // Predicated region
        $region145: #{tpu_custom_call.1} parent=119 // pred_check
          %p1036 = pneg %p344
        $region146: #{tpu_custom_call.1} parent=119 // pred_check_branch
          %1038 = sbr.rel (%p1036) target = $region148
        $region147: #{tpu_custom_call.1} parent=119 // pred_region
          %1039 = dma.done %s1033, 16
        $region148: #{tpu_custom_call.1} parent=119 // pred_fallthru
          _
        %s1040 = sand.u32 %s56, 1
        %s1041 = scalar_lea.sflag [#allocation18], %s1040
        %s1042 = sand.u32 %s383, 1
        %s1043 = scalar_lea.vmem [#allocation17], %s1042
        // Predicated region
        $region149: #{tpu_custom_call.1} parent=119 // pred_check
          %p1044 = pneg %p396
        $region150: #{tpu_custom_call.1} parent=119 // pred_check_branch
          %1046 = sbr.rel (%p1044) target = $region152
        $region151: #{tpu_custom_call.1} parent=119 // pred_region
          %1047 = dma.done %s1041, 16
        $region152: #{tpu_custom_call.1} parent=119 // pred_fallthru
          _
        %s1048 = sand.u32 %s56, 1
        %s1049 = scalar_lea.sflag [#allocation18], %s1048
        %s1050 = sand.u32 %s513, 1
        %s1051 = smul.addr %s1050, 16
        %s1052 = scalar_lea.vmem [#allocation19], %s1051
        // Predicated region
        $region153: #{tpu_custom_call.1} parent=119 // pred_check
          %p1053 = pneg %p526
        $region154: #{tpu_custom_call.1} parent=119 // pred_check_branch
          %1055 = sbr.rel (%p1053) target = $region156
        $region155: #{tpu_custom_call.1} parent=119 // pred_region
          %1056 = dma.done %s1049, 256
        $region156: #{tpu_custom_call.1} parent=119 // pred_fallthru
          _
        %s1057 = sand.u32 %s76, 1
        %s1058 = scalar_lea.sflag [#allocation6], %s1057
        %s1059 = sand.u32 %s76, 1
        %s1060 = smul.addr %s1059, 8
        %s1061 = scalar_lea.vmem [#allocation5], %s1060
        %p1062 = pneg %p89
        %p1063 = pneg %p86
        %p1064 = scmp.lt.s32.totalorder %s60, 1
        %s1065 = scalar_select %p1064, %s60, 1
        %s1066 = smul.addr %s1065, 8
        %s1067 = scalar_lea.vmem %s1, %s1066
        %p1068 = pneg %p115
        %p1069 = pneg %p112
        %p1070 = scmp.lt.s32.totalorder %s60, 1
        %s1071 = scalar_select %p1070, %s60, 1
        %s1072 = scalar_lea.vmem %s2, %s1071
        %p1073 = pneg %p141
        %p1074 = pneg %p138
        %s1075 = sand.u32 %s56, 1
        %s1076 = scalar_lea.sflag [#allocation9], %s1075
        %s1077 = sand.u32 %s154, 1
        %s1078 = scalar_lea.vmem [#allocation8], %s1077
        %p1079 = pneg %p167
        %p1080 = pneg %p164
        %p1081 = pneg %p188
        %p1082 = pneg %p185
        %s1083 = sand.u32 %s56, 1
        %s1084 = scalar_lea.sflag [#allocation12], %s1083
        %s1085 = sand.u32 %s201, 1
        %s1086 = scalar_lea.vmem [#allocation11], %s1085
        %p1087 = pneg %p214
        %p1088 = pneg %p211
        %s1089 = sand.u32 %s56, 1
        %s1090 = scalar_lea.sflag [#allocation12], %s1089
        %s1091 = sand.u32 %s227, 1
        %s1092 = scalar_lea.vmem [#allocation13], %s1091
        %p1093 = pneg %p240
        %p1094 = pneg %p237
        %p1095 = scmp.lt.s32.totalorder %s61, 1
        %s1096 = scalar_select %p1095, %s61, 1
        %s1097 = smul.addr %s1096, 4
        %s1098 = smul.addr %s1097, 4
        %s1099 = scalar_lea.vmem %s7, %s1098
        %p1100 = pneg %p266
        %p1101 = pneg %p263
        %s1102 = sand.u32 %s56, 1
        %s1103 = scalar_lea.sflag [#allocation15], %s1102
        %s1104 = sand.u32 %s279, 1
        %s1105 = scalar_lea.vmem [#allocation14], %s1104
        %p1106 = pneg %p292
        %p1107 = pneg %p289
        %p1108 = scmp.lt.s32.totalorder %s61, 1
        %s1109 = scalar_select %p1108, %s61, 1
        %s1110 = smul.addr %s1109, 4
        %s1111 = smul.addr %s1110, 4
        %s1112 = scalar_lea.vmem %s9, %s1111
        %p1113 = pneg %p318
        %p1114 = pneg %p315
        %s1115 = sand.u32 %s56, 1
        %s1116 = scalar_lea.sflag [#allocation15], %s1115
        %s1117 = sand.u32 %s331, 1
        %s1118 = scalar_lea.vmem [#allocation16], %s1117
        %p1119 = pneg %p344
        %p1120 = pneg %p341
        %p1121 = scmp.lt.s32.totalorder %s61, 1
        %s1122 = scalar_select %p1121, %s61, 1
        %s1123 = smul.addr %s1122, 4
        %s1124 = smul.addr %s1123, 4
        %s1125 = scalar_lea.vmem %s11, %s1124
        %p1126 = pneg %p370
        %p1127 = pneg %p367
        %s1128 = sand.u32 %s56, 1
        %s1129 = scalar_lea.sflag [#allocation18], %s1128
        %s1130 = sand.u32 %s383, 1
        %s1131 = scalar_lea.vmem [#allocation17], %s1130
        %p1132 = pneg %p396
        %p1133 = pneg %p393
        %p1134 = scmp.lt.s32.totalorder %s61, 1
        %s1135 = scalar_select %p1134, %s61, 1
        %s1136 = smul.addr %s1135, 4
        %s1137 = smul.addr %s1136, 4
        %s1138 = scalar_lea.vmem %s13, %s1137
        %p1139 = pneg %p422
        %p1140 = pneg %p419
        %p1141 = scmp.lt.s32.totalorder %s61, 1
        %s1142 = scalar_select %p1141, %s61, 1
        %s1143 = scalar_lea.vmem %s14, %s1142
        %p1144 = pneg %p448
        %p1145 = pneg %p445
        %p1146 = scmp.lt.s32.totalorder %s61, 1
        %s1147 = scalar_select %p1146, %s61, 1
        %s1148 = scalar_lea.vmem %s15, %s1147
        %p1149 = pneg %p474
        %p1150 = pneg %p471
        %p1151 = scmp.lt.s32.totalorder %s61, 1
        %s1152 = scalar_select %p1151, %s61, 1
        %s1153 = scalar_lea.vmem %s16, %s1152
        %p1154 = pneg %p500
        %p1155 = pneg %p497
        %s1156 = sand.u32 %s56, 1
        %s1157 = scalar_lea.sflag [#allocation18], %s1156
        %s1158 = sand.u32 %s513, 1
        %s1159 = smul.addr %s1158, 16
        %s1160 = scalar_lea.vmem [#allocation19], %s1159
        %p1161 = pneg %p526
        %p1162 = pneg %p523
        %p1163 = scmp.lt.s32.totalorder %s61, 1
        %s1164 = scalar_select %p1163, %s61, 1
        %s1165 = scalar_lea.vmem %s18, %s1164
        %p1166 = pneg %p552
        %p1167 = pneg %p549
        %p1168 = scmp.lt.s32.totalorder %s61, 1
        %s1169 = scalar_select %p1168, %s61, 1
        %s1170 = smul.addr %s1169, 8
        %s1171 = smul.addr %s1170, 4
        %s1172 = scalar_lea.vmem %s19, %s1171
        %p1173 = pneg %p578
        %p1174 = pneg %p575
        %p1175 = scmp.lt.s32.totalorder %s61, 1
        %s1176 = scalar_select %p1175, %s61, 1
        %s1177 = scalar_lea.vmem %s20, %s1176
        %p1178 = pneg %p604
        %p1179 = pneg %p601
        %p1180 = pneg %p625
        %p1181 = pneg %p622
        %p1182 = pneg %p646
        %p1183 = pneg %p643
        %p1184 = pneg %p667
        %p1185 = pneg %p664
        %p1186 = pneg %p688
        %p1187 = pneg %p685
        %p1188 = pneg %p714
        %p1189 = pneg %p711
        %s1190 = sand.u32 %s701, 1
        %s1191 = scalar_lea.sflag [#allocation7], %s1190
        %s1192 = sand.u32 %s701, 1
        %s1193 = scalar_lea.vmem [#allocation20], %s1192
        %p1194 = scmp.lt.s32.totalorder %s60, 1
        %s1195 = scalar_select %p1194, %s60, 1
        %s1196 = smul.addr %s1195, 8
        %s1197 = scalar_lea.vmem %s1, %s1196
        %p1198 = scmp.lt.s32.totalorder %s60, 1
        %s1199 = scalar_select %p1198, %s60, 1
        %s1200 = scalar_lea.vmem %s2, %s1199
        %p1201 = scmp.lt.s32.totalorder %s61, 1
        %s1202 = scalar_select %p1201, %s61, 1
        %s1203 = smul.addr %s1202, 4
        %s1204 = smul.addr %s1203, 4
        %s1205 = scalar_lea.vmem %s7, %s1204
        %p1206 = scmp.lt.s32.totalorder %s61, 1
        %s1207 = scalar_select %p1206, %s61, 1
        %s1208 = smul.addr %s1207, 4
        %s1209 = smul.addr %s1208, 4
        %s1210 = scalar_lea.vmem %s9, %s1209
        %p1211 = scmp.lt.s32.totalorder %s61, 1
        %s1212 = scalar_select %p1211, %s61, 1
        %s1213 = smul.addr %s1212, 4
        %s1214 = smul.addr %s1213, 4
        %s1215 = scalar_lea.vmem %s11, %s1214
        %p1216 = scmp.lt.s32.totalorder %s61, 1
        %s1217 = scalar_select %p1216, %s61, 1
        %s1218 = smul.addr %s1217, 4
        %s1219 = smul.addr %s1218, 4
        %s1220 = scalar_lea.vmem %s13, %s1219
        %p1221 = scmp.lt.s32.totalorder %s61, 1
        %s1222 = scalar_select %p1221, %s61, 1
        %s1223 = scalar_lea.vmem %s14, %s1222
        %p1224 = scmp.lt.s32.totalorder %s61, 1
        %s1225 = scalar_select %p1224, %s61, 1
        %s1226 = scalar_lea.vmem %s15, %s1225
        %p1227 = scmp.lt.s32.totalorder %s61, 1
        %s1228 = scalar_select %p1227, %s61, 1
        %s1229 = scalar_lea.vmem %s16, %s1228
        %p1230 = scmp.lt.s32.totalorder %s61, 1
        %s1231 = scalar_select %p1230, %s61, 1
        %s1232 = scalar_lea.vmem %s18, %s1231
        %p1233 = scmp.lt.s32.totalorder %s61, 1
        %s1234 = scalar_select %p1233, %s61, 1
        %s1235 = smul.addr %s1234, 8
        %s1236 = smul.addr %s1235, 4
        %s1237 = scalar_lea.vmem %s19, %s1236
        %p1238 = scmp.lt.s32.totalorder %s61, 1
        %s1239 = scalar_select %p1238, %s61, 1
        %s1240 = scalar_lea.vmem %s20, %s1239
        %p1242 = scmp.eq.s32.totalorder %s61, 0
        // Predicated region
        $region157: #{tpu_custom_call.1} parent=119 // pred_check
          %p1243 = pneg %p1242
        $region158: #{tpu_custom_call.1} parent=119 // pred_check_branch
          %1245 = sbr.rel (%p1243) target = $region160
        $region159: #{tpu_custom_call.1} parent=119 // pred_region
          %v1246 = vld [vmem:[%s991] sm:$0xff]
          %v1247 = vld [vmem:[%s1197] sm:$0xff]
          %1249 = vset.pattern.permute.xlu0 0
          %1250 = vperm.xlu0 %1249, %v1247
          %v1251 = vpop.permute.xlu0 %1250
          %v1253 = vmul.f32 %v1246, %v1251
          %v1254 = vld [vmem:[#allocation10] sm:$0xff]
          %v1255 = vadd.f32 %v1253, %v1254
          %vm1256 = vcmask 261120
          %1257 = vst.msk [vmem:[#allocation2] sm:$0xff] %vm1256, %v1255
        $region160: #{tpu_custom_call.1} parent=119 // pred_fallthru
          _
        %v1258 = vld [vmem:[#allocation2] sm:$0xff]
        %v1259 = vld [vmem:[%s1011] sm:$0x1]
        %v1260 = vld [vmem:[%s1019] sm:$0x1]
        %vm1261 = vcmask 261120
        %v1262 = vsel %vm1261, %v1258, 0.0
        %1263 = vadd.xlane.f32.xlu0 %v1262
        %v1264 = vpop.xlane.xlu0 %1263
        %v1265 = vrcp.pop 32.0
        %v1266 = vmul.f32 %v1264, %v1265
        %v1267 = vsub.f32 %v1258, %v1266
        %v1268 = vmul.f32 %v1267, %v1267
        %v1269 = vsel %vm1261, %v1268, 0.0
        %1270 = vadd.xlane.f32.xlu0 %v1269
        %v1271 = vpop.xlane.xlu0 %1270
        %v1272 = vmul.f32 %v1271, %v1265
        %v1273 = vadd.f32 %v1272, 1e-06
        %v1274 = vrsqrt.pop %v1273
        %v1275 = vmul.f32 %v1267, %v1274
        %v1277 = vlaneseq
        %v1278 = vshrl.u32 %v1277, 7
        %v1279 = vsub.s32 0, %v1278
        %v1280 = vrot.slane %v1259, %v1279
        %v1282 = vmul.f32 %v1275, %v1280
        %v1284 = vlaneseq
        %v1285 = vshrl.u32 %v1284, 7
        %v1286 = vsub.s32 0, %v1285
        %v1287 = vrot.slane %v1260, %v1286
        %v1289 = vadd.f32 %v1282, %v1287
        %p1290 = scmp.gt.s32.totalorder %s61, 0
        %s1291 = scalar_select %p1290, 1, 0
        %s1292 = scvt.s32.f32 %s1291
        %v1293 = vsub.f32 %v1289, %v1258
        %v1294 = vstv %s1292
        %v1295 = vmul.f32 %v1294, %v1293
        %v1296 = vadd.f32 %v1258, %v1295
        %v1297 = vpack.c.bf16 %v1296, %v1296
        %v1298 = vld [vmem:[%s1205] sm:$0xf]
        %v1299 = vld [vmem:[%s1205 + $0x4] sm:$0xf]
        %v1300 = vld [vmem:[%s1205 + $0x8] sm:$0xf]
        %v1301 = vld [vmem:[%s1205 + $0xc] sm:$0xf]
        %v1302 = vld [vmem:[%s1027] sm:$0x1]
        %v1304 = vlaneseq
        %v1305 = vshrl.u32 %v1304, 7
        %v1306 = vsub.s32 0, %v1305
        %v1307 = vrot.slane %v1302, %v1306
        %v1313 = vunpack.c.l.b16 %v1298
        %v1314 = vunpack.c.l.b16 %v1299
        %v1315 = vunpack.c.l.b16 %v1300
        %v1316 = vunpack.c.l.b16 %v1301
        %v1317 = vpack.c.b16 %v1314, %v1313
        %v1318 = vpack.c.b16 %v1316, %v1315
        %v1322 = vsel %vm1261, %v1297, 0
        %1324 = vmatprep.subr.bf16.mxu0 0
        %1325 = vmatpush1.bf16.msra.mxu0 %v1317
        %1326 = vmatprep.subr.bf16.mxu0 0
        %1327 = vmatpush1.bf16.msra.mxu0 %v1318
        %1328 = vmatprep.subr.bf16.mxu0 0
        %1329 = vmatpush1.bf16.msra.mxu0 0
        %1330 = vmatprep.subr.bf16.mxu0 0
        %1331 = vmatpush1.bf16.msra.mxu0 0
        %1332 = vmatprep.subr.bf16.mxu0 0
        %1333 = vmatpush1.bf16.msra.mxu0 0
        %1334 = vmatprep.subr.bf16.mxu0 0
        %1335 = vmatpush1.bf16.msra.mxu0 0
        %1336 = vmatprep.subr.bf16.mxu0 0
        %1337 = vmatpush1.bf16.msra.mxu0 0
        %1338 = vmatprep.subr.bf16.mxu0 0
        %1339 = vmatpush1.bf16.msra.mxu0 0
        %1340 = vmatprep.subr.bf16.mxu0 0
        %1341 = vmatpush1.bf16.msra.mxu0 0
        %1342 = vmatprep.subr.bf16.mxu0 0
        %1343 = vmatpush1.bf16.msra.mxu0 0
        %1344 = vmatprep.subr.bf16.mxu0 0
        %1345 = vmatpush1.bf16.msra.mxu0 0
        %1346 = vmatprep.subr.bf16.mxu0 0
        %1347 = vmatpush1.bf16.msra.mxu0 0
        %1348 = vmatprep.subr.bf16.mxu0 0
        %1349 = vmatpush1.bf16.msra.mxu0 0
        %1350 = vmatprep.subr.bf16.mxu0 0
        %1351 = vmatpush1.bf16.msra.mxu0 0
        %1352 = vmatprep.subr.bf16.mxu0 0
        %1353 = vmatpush1.bf16.msra.mxu0 0
        %1354 = vmatprep.subr.bf16.mxu0 0
        %1355 = vmatpush1.bf16.msra.mxu0 0
        %1356 = vmatprep.mubr.bf16.mxu0 0
        %1357 = vmatmul.mubr.bf16.gmra.mrb[0].mxu0 %v1322
        %v1358 = vpop.f32.mrb[0].mxu0
        %v1359 = vadd.f32 %v1307, %v1358
        %v1360 = vpop.f32.mrb[0].mxu0
        %v1361 = vpop.f32.mrb[0].mxu0
        %v1362 = vpop.f32.mrb[0].mxu0
        %1363 = vdwg.mxu0
        %v1364 = vpack.c.bf16 %v1359, %v1359
        %v1365 = vld [vmem:[%s1210] sm:$0xf]
        %v1366 = vld [vmem:[%s1210 + $0x4] sm:$0xf]
        %v1367 = vld [vmem:[%s1210 + $0x8] sm:$0xf]
        %v1368 = vld [vmem:[%s1210 + $0xc] sm:$0xf]
        %v1369 = vld [vmem:[%s1035] sm:$0x1]
        %v1371 = vlaneseq
        %v1372 = vshrl.u32 %v1371, 7
        %v1373 = vsub.s32 0, %v1372
        %v1374 = vrot.slane %v1369, %v1373
        %v1380 = vunpack.c.l.b16 %v1365
        %v1381 = vunpack.c.l.b16 %v1366
        %v1382 = vunpack.c.l.b16 %v1367
        %v1383 = vunpack.c.l.b16 %v1368
        %v1384 = vpack.c.b16 %v1381, %v1380
        %v1385 = vpack.c.b16 %v1383, %v1382
        %1388 = vmatprep.subr.bf16.mxu0 0
        %1389 = vmatpush1.bf16.msra.mxu0 %v1384
        %1390 = vmatprep.subr.bf16.mxu0 0
        %1391 = vmatpush1.bf16.msra.mxu0 %v1385
        %1392 = vmatprep.subr.bf16.mxu0 0
        %1393 = vmatpush1.bf16.msra.mxu0 0
        %1394 = vmatprep.subr.bf16.mxu0 0
        %1395 = vmatpush1.bf16.msra.mxu0 0
        %1396 = vmatprep.subr.bf16.mxu0 0
        %1397 = vmatpush1.bf16.msra.mxu0 0
        %1398 = vmatprep.subr.bf16.mxu0 0
        %1399 = vmatpush1.bf16.msra.mxu0 0
        %1400 = vmatprep.subr.bf16.mxu0 0
        %1401 = vmatpush1.bf16.msra.mxu0 0
        %1402 = vmatprep.subr.bf16.mxu0 0
        %1403 = vmatpush1.bf16.msra.mxu0 0
        %1404 = vmatprep.subr.bf16.mxu0 0
        %1405 = vmatpush1.bf16.msra.mxu0 0
        %1406 = vmatprep.subr.bf16.mxu0 0
        %1407 = vmatpush1.bf16.msra.mxu0 0
        %1408 = vmatprep.subr.bf16.mxu0 0
        %1409 = vmatpush1.bf16.msra.mxu0 0
        %1410 = vmatprep.subr.bf16.mxu0 0
        %1411 = vmatpush1.bf16.msra.mxu0 0
        %1412 = vmatprep.subr.bf16.mxu0 0
        %1413 = vmatpush1.bf16.msra.mxu0 0
        %1414 = vmatprep.subr.bf16.mxu0 0
        %1415 = vmatpush1.bf16.msra.mxu0 0
        %1416 = vmatprep.subr.bf16.mxu0 0
        %1417 = vmatpush1.bf16.msra.mxu0 0
        %1418 = vmatprep.subr.bf16.mxu0 0
        %1419 = vmatpush1.bf16.msra.mxu0 0
        %1420 = vmatprep.mubr.bf16.mxu0 0
        %1421 = vmatmul.mubr.bf16.gmra.mrb[0].mxu0 %v1322
        %v1422 = vpop.f32.mrb[0].mxu0
        %v1423 = vadd.f32 %v1374, %v1422
        %v1424 = vpop.f32.mrb[0].mxu0
        %v1425 = vpop.f32.mrb[0].mxu0
        %v1426 = vpop.f32.mrb[0].mxu0
        %1427 = vdwg.mxu0
        %v1428 = vpack.c.bf16 %v1423, %v1423
        %v1429 = vld [vmem:[%s1215] sm:$0xf]
        %v1430 = vld [vmem:[%s1215 + $0x4] sm:$0xf]
        %v1431 = vld [vmem:[%s1215 + $0x8] sm:$0xf]
        %v1432 = vld [vmem:[%s1215 + $0xc] sm:$0xf]
        %v1433 = vld [vmem:[%s1043] sm:$0x1]
        %v1435 = vlaneseq
        %v1436 = vshrl.u32 %v1435, 7
        %v1437 = vsub.s32 0, %v1436
        %v1438 = vrot.slane %v1433, %v1437
        %v1444 = vunpack.c.l.b16 %v1429
        %v1445 = vunpack.c.l.b16 %v1430
        %v1446 = vunpack.c.l.b16 %v1431
        %v1447 = vunpack.c.l.b16 %v1432
        %v1448 = vpack.c.b16 %v1445, %v1444
        %v1449 = vpack.c.b16 %v1447, %v1446
        %1452 = vmatprep.subr.bf16.mxu0 0
        %1453 = vmatpush1.bf16.msra.mxu0 %v1448
        %1454 = vmatprep.subr.bf16.mxu0 0
        %1455 = vmatpush1.bf16.msra.mxu0 %v1449
        %1456 = vmatprep.subr.bf16.mxu0 0
        %1457 = vmatpush1.bf16.msra.mxu0 0
        %1458 = vmatprep.subr.bf16.mxu0 0
        %1459 = vmatpush1.bf16.msra.mxu0 0
        %1460 = vmatprep.subr.bf16.mxu0 0
        %1461 = vmatpush1.bf16.msra.mxu0 0
        %1462 = vmatprep.subr.bf16.mxu0 0
        %1463 = vmatpush1.bf16.msra.mxu0 0
        %1464 = vmatprep.subr.bf16.mxu0 0
        %1465 = vmatpush1.bf16.msra.mxu0 0
        %1466 = vmatprep.subr.bf16.mxu0 0
        %1467 = vmatpush1.bf16.msra.mxu0 0
        %1468 = vmatprep.subr.bf16.mxu0 0
        %1469 = vmatpush1.bf16.msra.mxu0 0
        %1470 = vmatprep.subr.bf16.mxu0 0
        %1471 = vmatpush1.bf16.msra.mxu0 0
        %1472 = vmatprep.subr.bf16.mxu0 0
        %1473 = vmatpush1.bf16.msra.mxu0 0
        %1474 = vmatprep.subr.bf16.mxu0 0
        %1475 = vmatpush1.bf16.msra.mxu0 0
        %1476 = vmatprep.subr.bf16.mxu0 0
        %1477 = vmatpush1.bf16.msra.mxu0 0
        %1478 = vmatprep.subr.bf16.mxu0 0
        %1479 = vmatpush1.bf16.msra.mxu0 0
        %1480 = vmatprep.subr.bf16.mxu0 0
        %1481 = vmatpush1.bf16.msra.mxu0 0
        %1482 = vmatprep.subr.bf16.mxu0 0
        %1483 = vmatpush1.bf16.msra.mxu0 0
        %1484 = vmatprep.mubr.bf16.mxu0 0
        %1485 = vmatmul.mubr.bf16.gmra.mrb[0].mxu0 %v1322
        %v1486 = vpop.f32.mrb[0].mxu0
        %v1487 = vadd.f32 %v1438, %v1486
        %v1488 = vpop.f32.mrb[0].mxu0
        %v1489 = vpop.f32.mrb[0].mxu0
        %v1490 = vpop.f32.mrb[0].mxu0
        %1491 = vdwg.mxu0
        %v1492 = vpack.c.bf16 %v1487, %v1487
        %v1493 = vld [vmem:[%s1200] sm:$0x1]
        %v1495 = vlaneseq
        %v1496 = vshrl.u32 %v1495, 7
        %v1497 = vsub.s32 0, %v1496
        %v1498 = vrot.slane %v1493, %v1497
        %vm1500 = vcmask 64512
        %v1502 = vsel %vm1500, %v1364, 0
        %v1505 = vsel %vm1500, %v1428, 0
        %1507 = vmatprep.subr.bf16.mxu0 0
        %1508 = vmatpush1.bf16.xpose.msra.mxu0 %v1505
        %1509 = vmatprep.subr.bf16.mxu0 0
        %1510 = vmatpush1.bf16.xpose.msra.mxu0 0
        %1511 = vmatprep.subr.bf16.mxu0 0
        %1512 = vmatpush1.bf16.xpose.msra.mxu0 0
        %1513 = vmatprep.subr.bf16.mxu0 0
        %1514 = vmatpush1.bf16.xpose.msra.mxu0 0
        %1515 = vmatprep.subr.bf16.mxu0 0
        %1516 = vmatpush1.bf16.xpose.msra.mxu0 0
        %1517 = vmatprep.subr.bf16.mxu0 0
        %1518 = vmatpush1.bf16.xpose.msra.mxu0 0
        %1519 = vmatprep.subr.bf16.mxu0 0
        %1520 = vmatpush1.bf16.xpose.msra.mxu0 0
        %1521 = vmatprep.subr.bf16.mxu0 0
        %1522 = vmatpush1.bf16.xpose.msra.mxu0 0
        %1523 = vmatprep.subr.bf16.mxu0 0
        %1524 = vmatpush1.bf16.xpose.msra.mxu0 0
        %1525 = vmatprep.subr.bf16.mxu0 0
        %1526 = vmatpush1.bf16.xpose.msra.mxu0 0
        %1527 = vmatprep.subr.bf16.mxu0 0
        %1528 = vmatpush1.bf16.xpose.msra.mxu0 0
        %1529 = vmatprep.subr.bf16.mxu0 0
        %1530 = vmatpush1.bf16.xpose.msra.mxu0 0
        %1531 = vmatprep.subr.bf16.mxu0 0
        %1532 = vmatpush1.bf16.xpose.msra.mxu0 0
        %1533 = vmatprep.subr.bf16.mxu0 0
        %1534 = vmatpush1.bf16.xpose.msra.mxu0 0
        %1535 = vmatprep.subr.bf16.mxu0 0
        %1536 = vmatpush1.bf16.xpose.msra.mxu0 0
        %1537 = vmatprep.subr.bf16.mxu0 0
        %1538 = vmatpush1.bf16.xpose.msra.mxu0 0
        %1539 = vmatprep.mubr.bf16.mxu0 0
        %1540 = vmatmul.mubr.bf16.gmra.mrb[0].mxu0 %v1502
        %v1541 = vpop.f32.mrb[0].mxu0
        %v1542 = vadd.f32 %v1498, %v1541
        %v1543 = vpop.f32.mrb[0].mxu0
        %v1544 = vpop.f32.mrb[0].mxu0
        %v1545 = vpop.f32.mrb[0].mxu0
        %1546 = vdwg.mxu0
        %v1547 = vsel %vm1500, %v1542, -inf
        %1548 = vmax.xlane.f32.xlu0 %v1547
        %v1549 = vpop.xlane.xlu0 %1548
        %v1550 = vsub.f32 %v1542, %v1549
        %v1551 = vmul.f32 %v1550, 1.442695
        %v1552 = vpow.pop %v1551
        %v1553 = vsel %vm1500, %v1552, 0.0
        %1554 = vadd.xlane.f32.xlu0 %v1553
        %v1555 = vpop.xlane.xlu0 %1554
        %v1556 = vrcp.pop %v1555
        %v1557 = vmul.f32 %v1552, %v1556
        %v1558 = vpack.c.bf16 %v1557, %v1557
        %v1560 = vsel %vm1500, %v1558, 0
        %vm1562 = vcmask 1043456
        %v1564 = vsel %vm1562, %v1492, 0
        %1566 = vmatprep.subr.bf16.mxu0 0
        %1567 = vmatpush1.bf16.msra.mxu0 %v1564
        %1568 = vmatprep.subr.bf16.mxu0 0
        %1569 = vmatpush1.bf16.msra.mxu0 0
        %1570 = vmatprep.subr.bf16.mxu0 0
        %1571 = vmatpush1.bf16.msra.mxu0 0
        %1572 = vmatprep.subr.bf16.mxu0 0
        %1573 = vmatpush1.bf16.msra.mxu0 0
        %1574 = vmatprep.subr.bf16.mxu0 0
        %1575 = vmatpush1.bf16.msra.mxu0 0
        %1576 = vmatprep.subr.bf16.mxu0 0
        %1577 = vmatpush1.bf16.msra.mxu0 0
        %1578 = vmatprep.subr.bf16.mxu0 0
        %1579 = vmatpush1.bf16.msra.mxu0 0
        %1580 = vmatprep.subr.bf16.mxu0 0
        %1581 = vmatpush1.bf16.msra.mxu0 0
        %1582 = vmatprep.subr.bf16.mxu0 0
        %1583 = vmatpush1.bf16.msra.mxu0 0
        %1584 = vmatprep.subr.bf16.mxu0 0
        %1585 = vmatpush1.bf16.msra.mxu0 0
        %1586 = vmatprep.subr.bf16.mxu0 0
        %1587 = vmatpush1.bf16.msra.mxu0 0
        %1588 = vmatprep.subr.bf16.mxu0 0
        %1589 = vmatpush1.bf16.msra.mxu0 0
        %1590 = vmatprep.subr.bf16.mxu0 0
        %1591 = vmatpush1.bf16.msra.mxu0 0
        %1592 = vmatprep.subr.bf16.mxu0 0
        %1593 = vmatpush1.bf16.msra.mxu0 0
        %1594 = vmatprep.subr.bf16.mxu0 0
        %1595 = vmatpush1.bf16.msra.mxu0 0
        %1596 = vmatprep.subr.bf16.mxu0 0
        %1597 = vmatpush1.bf16.msra.mxu0 0
        %1598 = vmatprep.mubr.bf16.mxu0 0
        %1599 = vmatmul.mubr.bf16.gmra.mrb[0].mxu0 %v1560
        %v1600 = vpop.f32.mrb[0].mxu0
        %v1601 = vadd.f32 0.0, %v1600
        %v1602 = vpop.f32.mrb[0].mxu0
        %v1603 = vpop.f32.mrb[0].mxu0
        %v1604 = vpop.f32.mrb[0].mxu0
        %1605 = vdwg.mxu0
        %v1606 = vpack.c.bf16 %v1601, %v1601
        %vm1607 = vcmask 60416
        %1608 = vst.msk [vmem:[#allocation3] sm:$0xf] %vm1607, %v1606
        %1610 = vrot.lane.b32.xlu0 %v1364, 120
        %v1611 = vpop.permute.xlu0 %1610
        %1613 = vrot.lane.b32.xlu0 %v1428, 120
        %v1614 = vpop.permute.xlu0 %1613
        %v1616 = vsel %vm1500, %v1611, 0
        %v1619 = vsel %vm1500, %v1614, 0
        %1621 = vmatprep.subr.bf16.mxu0 0
        %1622 = vmatpush1.bf16.xpose.msra.mxu0 %v1619
        %1623 = vmatprep.subr.bf16.mxu0 0
        %1624 = vmatpush1.bf16.xpose.msra.mxu0 0
        %1625 = vmatprep.subr.bf16.mxu0 0
        %1626 = vmatpush1.bf16.xpose.msra.mxu0 0
        %1627 = vmatprep.subr.bf16.mxu0 0
        %1628 = vmatpush1.bf16.xpose.msra.mxu0 0
        %1629 = vmatprep.subr.bf16.mxu0 0
        %1630 = vmatpush1.bf16.xpose.msra.mxu0 0
        %1631 = vmatprep.subr.bf16.mxu0 0
        %1632 = vmatpush1.bf16.xpose.msra.mxu0 0
        %1633 = vmatprep.subr.bf16.mxu0 0
        %1634 = vmatpush1.bf16.xpose.msra.mxu0 0
        %1635 = vmatprep.subr.bf16.mxu0 0
        %1636 = vmatpush1.bf16.xpose.msra.mxu0 0
        %1637 = vmatprep.subr.bf16.mxu0 0
        %1638 = vmatpush1.bf16.xpose.msra.mxu0 0
        %1639 = vmatprep.subr.bf16.mxu0 0
        %1640 = vmatpush1.bf16.xpose.msra.mxu0 0
        %1641 = vmatprep.subr.bf16.mxu0 0
        %1642 = vmatpush1.bf16.xpose.msra.mxu0 0
        %1643 = vmatprep.subr.bf16.mxu0 0
        %1644 = vmatpush1.bf16.xpose.msra.mxu0 0
        %1645 = vmatprep.subr.bf16.mxu0 0
        %1646 = vmatpush1.bf16.xpose.msra.mxu0 0
        %1647 = vmatprep.subr.bf16.mxu0 0
        %1648 = vmatpush1.bf16.xpose.msra.mxu0 0
        %1649 = vmatprep.subr.bf16.mxu0 0
        %1650 = vmatpush1.bf16.xpose.msra.mxu0 0
        %1651 = vmatprep.subr.bf16.mxu0 0
        %1652 = vmatpush1.bf16.xpose.msra.mxu0 0
        %1653 = vmatprep.mubr.bf16.mxu0 0
        %1654 = vmatmul.mubr.bf16.gmra.mrb[0].mxu0 %v1616
        %v1655 = vpop.f32.mrb[0].mxu0
        %v1656 = vadd.f32 %v1498, %v1655
        %v1657 = vpop.f32.mrb[0].mxu0
        %v1658 = vpop.f32.mrb[0].mxu0
        %v1659 = vpop.f32.mrb[0].mxu0
        %1660 = vdwg.mxu0
        %v1661 = vsel %vm1500, %v1656, -inf
        %1662 = vmax.xlane.f32.xlu0 %v1661
        %v1663 = vpop.xlane.xlu0 %1662
        %v1664 = vsub.f32 %v1656, %v1663
        %v1665 = vmul.f32 %v1664, 1.442695
        %v1666 = vpow.pop %v1665
        %v1667 = vsel %vm1500, %v1666, 0.0
        %1668 = vadd.xlane.f32.xlu0 %v1667
        %v1669 = vpop.xlane.xlu0 %1668
        %v1670 = vrcp.pop %v1669
        %v1671 = vmul.f32 %v1666, %v1670
        %v1672 = vpack.c.bf16 %v1671, %v1671
        %1674 = vrot.lane.b32.xlu0 %v1492, 120
        %v1675 = vpop.permute.xlu0 %1674
        %v1677 = vsel %vm1500, %v1672, 0
        %v1680 = vsel %vm1562, %v1675, 0
        %1682 = vmatprep.subr.bf16.mxu0 0
        %1683 = vmatpush1.bf16.msra.mxu0 %v1680
        %1684 = vmatprep.subr.bf16.mxu0 0
        %1685 = vmatpush1.bf16.msra.mxu0 0
        %1686 = vmatprep.subr.bf16.mxu0 0
        %1687 = vmatpush1.bf16.msra.mxu0 0
        %1688 = vmatprep.subr.bf16.mxu0 0
        %1689 = vmatpush1.bf16.msra.mxu0 0
        %1690 = vmatprep.subr.bf16.mxu0 0
        %1691 = vmatpush1.bf16.msra.mxu0 0
        %1692 = vmatprep.subr.bf16.mxu0 0
        %1693 = vmatpush1.bf16.msra.mxu0 0
        %1694 = vmatprep.subr.bf16.mxu0 0
        %1695 = vmatpush1.bf16.msra.mxu0 0
        %1696 = vmatprep.subr.bf16.mxu0 0
        %1697 = vmatpush1.bf16.msra.mxu0 0
        %1698 = vmatprep.subr.bf16.mxu0 0
        %1699 = vmatpush1.bf16.msra.mxu0 0
        %1700 = vmatprep.subr.bf16.mxu0 0
        %1701 = vmatpush1.bf16.msra.mxu0 0
        %1702 = vmatprep.subr.bf16.mxu0 0
        %1703 = vmatpush1.bf16.msra.mxu0 0
        %1704 = vmatprep.subr.bf16.mxu0 0
        %1705 = vmatpush1.bf16.msra.mxu0 0
        %1706 = vmatprep.subr.bf16.mxu0 0
        %1707 = vmatpush1.bf16.msra.mxu0 0
        %1708 = vmatprep.subr.bf16.mxu0 0
        %1709 = vmatpush1.bf16.msra.mxu0 0
        %1710 = vmatprep.subr.bf16.mxu0 0
        %1711 = vmatpush1.bf16.msra.mxu0 0
        %1712 = vmatprep.subr.bf16.mxu0 0
        %1713 = vmatpush1.bf16.msra.mxu0 0
        %1714 = vmatprep.mubr.bf16.mxu0 0
        %1715 = vmatmul.mubr.bf16.gmra.mrb[0].mxu0 %v1677
        %v1716 = vpop.f32.mrb[0].mxu0
        %v1717 = vadd.f32 0.0, %v1716
        %v1718 = vpop.f32.mrb[0].mxu0
        %v1719 = vpop.f32.mrb[0].mxu0
        %v1720 = vpop.f32.mrb[0].mxu0
        %1721 = vdwg.mxu0
        %v1722 = vpack.c.bf16 %v1717, %v1717
        %v1724 = vunpack.c.l.b16 %v1722
        %v1725 = vpack.c.b16 %v1724, %v1724
        %1726 = vrot.lane.b32.xlu0 %v1725, 8
        %v1727 = vpop.permute.xlu0 %1726
        %vm1729 = vcmask 126016
        %1730 = vst.msk [vmem:[#allocation3] sm:$0xf] %vm1729, %v1727
        %1731 = vrot.lane.b32.xlu0 %v1364, 112
        %v1732 = vpop.permute.xlu0 %1731
        %1733 = vrot.lane.b32.xlu0 %v1428, 112
        %v1734 = vpop.permute.xlu0 %1733
        %v1736 = vsel %vm1500, %v1732, 0
        %v1739 = vsel %vm1500, %v1734, 0
        %1741 = vmatprep.subr.bf16.mxu0 0
        %1742 = vmatpush1.bf16.xpose.msra.mxu0 %v1739
        %1743 = vmatprep.subr.bf16.mxu0 0
        %1744 = vmatpush1.bf16.xpose.msra.mxu0 0
        %1745 = vmatprep.subr.bf16.mxu0 0
        %1746 = vmatpush1.bf16.xpose.msra.mxu0 0
        %1747 = vmatprep.subr.bf16.mxu0 0
        %1748 = vmatpush1.bf16.xpose.msra.mxu0 0
        %1749 = vmatprep.subr.bf16.mxu0 0
        %1750 = vmatpush1.bf16.xpose.msra.mxu0 0
        %1751 = vmatprep.subr.bf16.mxu0 0
        %1752 = vmatpush1.bf16.xpose.msra.mxu0 0
        %1753 = vmatprep.subr.bf16.mxu0 0
        %1754 = vmatpush1.bf16.xpose.msra.mxu0 0
        %1755 = vmatprep.subr.bf16.mxu0 0
        %1756 = vmatpush1.bf16.xpose.msra.mxu0 0
        %1757 = vmatprep.subr.bf16.mxu0 0
        %1758 = vmatpush1.bf16.xpose.msra.mxu0 0
        %1759 = vmatprep.subr.bf16.mxu0 0
        %1760 = vmatpush1.bf16.xpose.msra.mxu0 0
        %1761 = vmatprep.subr.bf16.mxu0 0
        %1762 = vmatpush1.bf16.xpose.msra.mxu0 0
        %1763 = vmatprep.subr.bf16.mxu0 0
        %1764 = vmatpush1.bf16.xpose.msra.mxu0 0
        %1765 = vmatprep.subr.bf16.mxu0 0
        %1766 = vmatpush1.bf16.xpose.msra.mxu0 0
        %1767 = vmatprep.subr.bf16.mxu0 0
        %1768 = vmatpush1.bf16.xpose.msra.mxu0 0
        %1769 = vmatprep.subr.bf16.mxu0 0
        %1770 = vmatpush1.bf16.xpose.msra.mxu0 0
        %1771 = vmatprep.subr.bf16.mxu0 0
        %1772 = vmatpush1.bf16.xpose.msra.mxu0 0
        %1773 = vmatprep.mubr.bf16.mxu0 0
        %1774 = vmatmul.mubr.bf16.gmra.mrb[0].mxu0 %v1736
        %v1775 = vpop.f32.mrb[0].mxu0
        %v1776 = vadd.f32 %v1498, %v1775
        %v1777 = vpop.f32.mrb[0].mxu0
        %v1778 = vpop.f32.mrb[0].mxu0
        %v1779 = vpop.f32.mrb[0].mxu0
        %1780 = vdwg.mxu0
        %v1781 = vsel %vm1500, %v1776, -inf
        %1782 = vmax.xlane.f32.xlu0 %v1781
        %v1783 = vpop.xlane.xlu0 %1782
        %v1784 = vsub.f32 %v1776, %v1783
        %v1785 = vmul.f32 %v1784, 1.442695
        %v1786 = vpow.pop %v1785
        %v1787 = vsel %vm1500, %v1786, 0.0
        %1788 = vadd.xlane.f32.xlu0 %v1787
        %v1789 = vpop.xlane.xlu0 %1788
        %v1790 = vrcp.pop %v1789
        %v1791 = vmul.f32 %v1786, %v1790
        %v1792 = vpack.c.bf16 %v1791, %v1791
        %1793 = vrot.lane.b32.xlu0 %v1492, 112
        %v1794 = vpop.permute.xlu0 %1793
        %v1796 = vsel %vm1500, %v1792, 0
        %v1799 = vsel %vm1562, %v1794, 0
        %1801 = vmatprep.subr.bf16.mxu0 0
        %1802 = vmatpush1.bf16.msra.mxu0 %v1799
        %1803 = vmatprep.subr.bf16.mxu0 0
        %1804 = vmatpush1.bf16.msra.mxu0 0
        %1805 = vmatprep.subr.bf16.mxu0 0
        %1806 = vmatpush1.bf16.msra.mxu0 0
        %1807 = vmatprep.subr.bf16.mxu0 0
        %1808 = vmatpush1.bf16.msra.mxu0 0
        %1809 = vmatprep.subr.bf16.mxu0 0
        %1810 = vmatpush1.bf16.msra.mxu0 0
        %1811 = vmatprep.subr.bf16.mxu0 0
        %1812 = vmatpush1.bf16.msra.mxu0 0
        %1813 = vmatprep.subr.bf16.mxu0 0
        %1814 = vmatpush1.bf16.msra.mxu0 0
        %1815 = vmatprep.subr.bf16.mxu0 0
        %1816 = vmatpush1.bf16.msra.mxu0 0
        %1817 = vmatprep.subr.bf16.mxu0 0
        %1818 = vmatpush1.bf16.msra.mxu0 0
        %1819 = vmatprep.subr.bf16.mxu0 0
        %1820 = vmatpush1.bf16.msra.mxu0 0
        %1821 = vmatprep.subr.bf16.mxu0 0
        %1822 = vmatpush1.bf16.msra.mxu0 0
        %1823 = vmatprep.subr.bf16.mxu0 0
        %1824 = vmatpush1.bf16.msra.mxu0 0
        %1825 = vmatprep.subr.bf16.mxu0 0
        %1826 = vmatpush1.bf16.msra.mxu0 0
        %1827 = vmatprep.subr.bf16.mxu0 0
        %1828 = vmatpush1.bf16.msra.mxu0 0
        %1829 = vmatprep.subr.bf16.mxu0 0
        %1830 = vmatpush1.bf16.msra.mxu0 0
        %1831 = vmatprep.subr.bf16.mxu0 0
        %1832 = vmatpush1.bf16.msra.mxu0 0
        %1833 = vmatprep.mubr.bf16.mxu0 0
        %1834 = vmatmul.mubr.bf16.gmra.mrb[0].mxu0 %v1796
        %v1835 = vpop.f32.mrb[0].mxu0
        %v1836 = vadd.f32 0.0, %v1835
        %v1837 = vpop.f32.mrb[0].mxu0
        %v1838 = vpop.f32.mrb[0].mxu0
        %v1839 = vpop.f32.mrb[0].mxu0
        %1840 = vdwg.mxu0
        %v1841 = vpack.c.bf16 %v1836, %v1836
        %v1843 = vunpack.c.l.b16 %v1841
        %v1844 = vpack.c.b16 %v1843, %v1843
        %1845 = vrot.lane.b32.xlu0 %v1844, 16
        %v1846 = vpop.permute.xlu0 %1845
        %vm1848 = vcmask 191616
        %1849 = vst.msk [vmem:[#allocation3] sm:$0xf] %vm1848, %v1846
        %1850 = vrot.lane.b32.xlu0 %v1364, 104
        %v1851 = vpop.permute.xlu0 %1850
        %1852 = vrot.lane.b32.xlu0 %v1428, 104
        %v1853 = vpop.permute.xlu0 %1852
        %v1855 = vsel %vm1500, %v1851, 0
        %v1858 = vsel %vm1500, %v1853, 0
        %1860 = vmatprep.subr.bf16.mxu0 0
        %1861 = vmatpush1.bf16.xpose.msra.mxu0 %v1858
        %1862 = vmatprep.subr.bf16.mxu0 0
        %1863 = vmatpush1.bf16.xpose.msra.mxu0 0
        %1864 = vmatprep.subr.bf16.mxu0 0
        %1865 = vmatpush1.bf16.xpose.msra.mxu0 0
        %1866 = vmatprep.subr.bf16.mxu0 0
        %1867 = vmatpush1.bf16.xpose.msra.mxu0 0
        %1868 = vmatprep.subr.bf16.mxu0 0
        %1869 = vmatpush1.bf16.xpose.msra.mxu0 0
        %1870 = vmatprep.subr.bf16.mxu0 0
        %1871 = vmatpush1.bf16.xpose.msra.mxu0 0
        %1872 = vmatprep.subr.bf16.mxu0 0
        %1873 = vmatpush1.bf16.xpose.msra.mxu0 0
        %1874 = vmatprep.subr.bf16.mxu0 0
        %1875 = vmatpush1.bf16.xpose.msra.mxu0 0
        %1876 = vmatprep.subr.bf16.mxu0 0
        %1877 = vmatpush1.bf16.xpose.msra.mxu0 0
        %1878 = vmatprep.subr.bf16.mxu0 0
        %1879 = vmatpush1.bf16.xpose.msra.mxu0 0
        %1880 = vmatprep.subr.bf16.mxu0 0
        %1881 = vmatpush1.bf16.xpose.msra.mxu0 0
        %1882 = vmatprep.subr.bf16.mxu0 0
        %1883 = vmatpush1.bf16.xpose.msra.mxu0 0
        %1884 = vmatprep.subr.bf16.mxu0 0
        %1885 = vmatpush1.bf16.xpose.msra.mxu0 0
        %1886 = vmatprep.subr.bf16.mxu0 0
        %1887 = vmatpush1.bf16.xpose.msra.mxu0 0
        %1888 = vmatprep.subr.bf16.mxu0 0
        %1889 = vmatpush1.bf16.xpose.msra.mxu0 0
        %1890 = vmatprep.subr.bf16.mxu0 0
        %1891 = vmatpush1.bf16.xpose.msra.mxu0 0
        %1892 = vmatprep.mubr.bf16.mxu0 0
        %1893 = vmatmul.mubr.bf16.gmra.mrb[0].mxu0 %v1855
        %v1894 = vpop.f32.mrb[0].mxu0
        %v1895 = vadd.f32 %v1498, %v1894
        %v1896 = vpop.f32.mrb[0].mxu0
        %v1897 = vpop.f32.mrb[0].mxu0
        %v1898 = vpop.f32.mrb[0].mxu0
        %1899 = vdwg.mxu0
        %v1900 = vsel %vm1500, %v1895, -inf
        %1901 = vmax.xlane.f32.xlu0 %v1900
        %v1902 = vpop.xlane.xlu0 %1901
        %v1903 = vsub.f32 %v1895, %v1902
        %v1904 = vmul.f32 %v1903, 1.442695
        %v1905 = vpow.pop %v1904
        %v1906 = vsel %vm1500, %v1905, 0.0
        %1907 = vadd.xlane.f32.xlu0 %v1906
        %v1908 = vpop.xlane.xlu0 %1907
        %v1909 = vrcp.pop %v1908
        %v1910 = vmul.f32 %v1905, %v1909
        %v1911 = vpack.c.bf16 %v1910, %v1910
        %1912 = vrot.lane.b32.xlu0 %v1492, 104
        %v1913 = vpop.permute.xlu0 %1912
        %v1915 = vsel %vm1500, %v1911, 0
        %v1918 = vsel %vm1562, %v1913, 0
        %1920 = vmatprep.subr.bf16.mxu0 0
        %1921 = vmatpush1.bf16.msra.mxu0 %v1918
        %1922 = vmatprep.subr.bf16.mxu0 0
        %1923 = vmatpush1.bf16.msra.mxu0 0
        %1924 = vmatprep.subr.bf16.mxu0 0
        %1925 = vmatpush1.bf16.msra.mxu0 0
        %1926 = vmatprep.subr.bf16.mxu0 0
        %1927 = vmatpush1.bf16.msra.mxu0 0
        %1928 = vmatprep.subr.bf16.mxu0 0
        %1929 = vmatpush1.bf16.msra.mxu0 0
        %1930 = vmatprep.subr.bf16.mxu0 0
        %1931 = vmatpush1.bf16.msra.mxu0 0
        %1932 = vmatprep.subr.bf16.mxu0 0
        %1933 = vmatpush1.bf16.msra.mxu0 0
        %1934 = vmatprep.subr.bf16.mxu0 0
        %1935 = vmatpush1.bf16.msra.mxu0 0
        %1936 = vmatprep.subr.bf16.mxu0 0
        %1937 = vmatpush1.bf16.msra.mxu0 0
        %1938 = vmatprep.subr.bf16.mxu0 0
        %1939 = vmatpush1.bf16.msra.mxu0 0
        %1940 = vmatprep.subr.bf16.mxu0 0
        %1941 = vmatpush1.bf16.msra.mxu0 0
        %1942 = vmatprep.subr.bf16.mxu0 0
        %1943 = vmatpush1.bf16.msra.mxu0 0
        %1944 = vmatprep.subr.bf16.mxu0 0
        %1945 = vmatpush1.bf16.msra.mxu0 0
        %1946 = vmatprep.subr.bf16.mxu0 0
        %1947 = vmatpush1.bf16.msra.mxu0 0
        %1948 = vmatprep.subr.bf16.mxu0 0
        %1949 = vmatpush1.bf16.msra.mxu0 0
        %1950 = vmatprep.subr.bf16.mxu0 0
        %1951 = vmatpush1.bf16.msra.mxu0 0
        %1952 = vmatprep.mubr.bf16.mxu0 0
        %1953 = vmatmul.mubr.bf16.gmra.mrb[0].mxu0 %v1915
        %v1954 = vpop.f32.mrb[0].mxu0
        %v1955 = vadd.f32 0.0, %v1954
        %v1956 = vpop.f32.mrb[0].mxu0
        %v1957 = vpop.f32.mrb[0].mxu0
        %v1958 = vpop.f32.mrb[0].mxu0
        %1959 = vdwg.mxu0
        %v1960 = vpack.c.bf16 %v1955, %v1955
        %v1962 = vunpack.c.l.b16 %v1960
        %v1963 = vpack.c.b16 %v1962, %v1962
        %1964 = vrot.lane.b32.xlu0 %v1963, 24
        %v1965 = vpop.permute.xlu0 %1964
        %vm1967 = vcmask 257216
        %1968 = vst.msk [vmem:[#allocation3] sm:$0xf] %vm1967, %v1965
        %v1969 = vld [vmem:[#allocation3] sm:$0xf]
        %v1970 = vld [vmem:[%s1220] sm:$0xf]
        %v1971 = vld [vmem:[%s1220 + $0x4] sm:$0xf]
        %v1972 = vld [vmem:[%s1220 + $0x8] sm:$0xf]
        %v1973 = vld [vmem:[%s1220 + $0xc] sm:$0xf]
        %v1974 = vld [vmem:[%s1223] sm:$0x1]
        %v1976 = vlaneseq
        %v1977 = vshrl.u32 %v1976, 7
        %v1978 = vsub.s32 0, %v1977
        %v1979 = vrot.slane %v1974, %v1978
        %v1985 = vunpack.c.l.b16 %v1970
        %v1986 = vunpack.c.l.b16 %v1971
        %v1987 = vunpack.c.l.b16 %v1972
        %v1988 = vunpack.c.l.b16 %v1973
        %v1989 = vpack.c.b16 %v1986, %v1985
        %v1990 = vpack.c.b16 %v1988, %v1987
        %v1994 = vsel %vm1261, %v1969, 0
        %1996 = vmatprep.subr.bf16.mxu0 0
        %1997 = vmatpush1.bf16.msra.mxu0 %v1989
        %1998 = vmatprep.subr.bf16.mxu0 0
        %1999 = vmatpush1.bf16.msra.mxu0 %v1990
        %2000 = vmatprep.subr.bf16.mxu0 0
        %2001 = vmatpush1.bf16.msra.mxu0 0
        %2002 = vmatprep.subr.bf16.mxu0 0
        %2003 = vmatpush1.bf16.msra.mxu0 0
        %2004 = vmatprep.subr.bf16.mxu0 0
        %2005 = vmatpush1.bf16.msra.mxu0 0
        %2006 = vmatprep.subr.bf16.mxu0 0
        %2007 = vmatpush1.bf16.msra.mxu0 0
        %2008 = vmatprep.subr.bf16.mxu0 0
        %2009 = vmatpush1.bf16.msra.mxu0 0
        %2010 = vmatprep.subr.bf16.mxu0 0
        %2011 = vmatpush1.bf16.msra.mxu0 0
        %2012 = vmatprep.subr.bf16.mxu0 0
        %2013 = vmatpush1.bf16.msra.mxu0 0
        %2014 = vmatprep.subr.bf16.mxu0 0
        %2015 = vmatpush1.bf16.msra.mxu0 0
        %2016 = vmatprep.subr.bf16.mxu0 0
        %2017 = vmatpush1.bf16.msra.mxu0 0
        %2018 = vmatprep.subr.bf16.mxu0 0
        %2019 = vmatpush1.bf16.msra.mxu0 0
        %2020 = vmatprep.subr.bf16.mxu0 0
        %2021 = vmatpush1.bf16.msra.mxu0 0
        %2022 = vmatprep.subr.bf16.mxu0 0
        %2023 = vmatpush1.bf16.msra.mxu0 0
        %2024 = vmatprep.subr.bf16.mxu0 0
        %2025 = vmatpush1.bf16.msra.mxu0 0
        %2026 = vmatprep.subr.bf16.mxu0 0
        %2027 = vmatpush1.bf16.msra.mxu0 0
        %2028 = vmatprep.mubr.bf16.mxu0 0
        %2029 = vmatmul.mubr.bf16.gmra.mrb[0].mxu0 %v1994
        %v2030 = vpop.f32.mrb[0].mxu0
        %v2031 = vadd.f32 %v1979, %v2030
        %v2032 = vpop.f32.mrb[0].mxu0
        %v2033 = vpop.f32.mrb[0].mxu0
        %v2034 = vpop.f32.mrb[0].mxu0
        %2035 = vdwg.mxu0
        %v2036 = vadd.f32 %v2031, %v1258
        %v2037 = vld [vmem:[%s1226] sm:$0x1]
        %v2038 = vld [vmem:[%s1229] sm:$0x1]
        %v2039 = vsel %vm1261, %v2036, 0.0
        %2040 = vadd.xlane.f32.xlu0 %v2039
        %v2041 = vpop.xlane.xlu0 %2040
        %v2042 = vmul.f32 %v2041, %v1265
        %v2043 = vsub.f32 %v2036, %v2042
        %v2044 = vmul.f32 %v2043, %v2043
        %v2045 = vsel %vm1261, %v2044, 0.0
        %2046 = vadd.xlane.f32.xlu0 %v2045
        %v2047 = vpop.xlane.xlu0 %2046
        %v2048 = vmul.f32 %v2047, %v1265
        %v2049 = vadd.f32 %v2048, 1e-06
        %v2050 = vrsqrt.pop %v2049
        %v2051 = vmul.f32 %v2043, %v2050
        %v2053 = vlaneseq
        %v2054 = vshrl.u32 %v2053, 7
        %v2055 = vsub.s32 0, %v2054
        %v2056 = vrot.slane %v2037, %v2055
        %v2058 = vmul.f32 %v2051, %v2056
        %v2060 = vlaneseq
        %v2061 = vshrl.u32 %v2060, 7
        %v2062 = vsub.s32 0, %v2061
        %v2063 = vrot.slane %v2038, %v2062
        %v2065 = vadd.f32 %v2058, %v2063
        %v2066 = vpack.c.bf16 %v2065, %v2065
        %v2067 = vld [vmem:[%s1052] sm:$0xf]
        %v2068 = vld [vmem:[%s1052 + $0x4] sm:$0xf]
        %v2069 = vld [vmem:[%s1052 + $0x8] sm:$0xf]
        %v2070 = vld [vmem:[%s1052 + $0xc] sm:$0xf]
        %v2071 = vld [vmem:[%s1232] sm:$0x1]
        %v2073 = vlaneseq
        %v2074 = vshrl.u32 %v2073, 7
        %v2075 = vsub.s32 0, %v2074
        %v2076 = vrot.slane %v2071, %v2075
        %v2082 = vunpack.c.l.b16 %v2067
        %v2083 = vunpack.c.l.b16 %v2068
        %v2084 = vunpack.c.l.b16 %v2069
        %v2085 = vunpack.c.l.b16 %v2070
        %v2086 = vpack.c.b16 %v2083, %v2082
        %v2087 = vpack.c.b16 %v2085, %v2084
        %v2091 = vsel %vm1261, %v2066, 0
        %2093 = vmatprep.subr.bf16.mxu0 0
        %2094 = vmatpush1.bf16.msra.mxu0 %v2086
        %2095 = vmatprep.subr.bf16.mxu0 0
        %2096 = vmatpush1.bf16.msra.mxu0 %v2087
        %2097 = vmatprep.subr.bf16.mxu0 0
        %2098 = vmatpush1.bf16.msra.mxu0 0
        %2099 = vmatprep.subr.bf16.mxu0 0
        %2100 = vmatpush1.bf16.msra.mxu0 0
        %2101 = vmatprep.subr.bf16.mxu0 0
        %2102 = vmatpush1.bf16.msra.mxu0 0
        %2103 = vmatprep.subr.bf16.mxu0 0
        %2104 = vmatpush1.bf16.msra.mxu0 0
        %2105 = vmatprep.subr.bf16.mxu0 0
        %2106 = vmatpush1.bf16.msra.mxu0 0
        %2107 = vmatprep.subr.bf16.mxu0 0
        %2108 = vmatpush1.bf16.msra.mxu0 0
        %2109 = vmatprep.subr.bf16.mxu0 0
        %2110 = vmatpush1.bf16.msra.mxu0 0
        %2111 = vmatprep.subr.bf16.mxu0 0
        %2112 = vmatpush1.bf16.msra.mxu0 0
        %2113 = vmatprep.subr.bf16.mxu0 0
        %2114 = vmatpush1.bf16.msra.mxu0 0
        %2115 = vmatprep.subr.bf16.mxu0 0
        %2116 = vmatpush1.bf16.msra.mxu0 0
        %2117 = vmatprep.subr.bf16.mxu0 0
        %2118 = vmatpush1.bf16.msra.mxu0 0
        %2119 = vmatprep.subr.bf16.mxu0 0
        %2120 = vmatpush1.bf16.msra.mxu0 0
        %2121 = vmatprep.subr.bf16.mxu0 0
        %2122 = vmatpush1.bf16.msra.mxu0 0
        %2123 = vmatprep.subr.bf16.mxu0 0
        %2124 = vmatpush1.bf16.msra.mxu0 0
        %2125 = vmatprep.mubr.bf16.mxu0 0
        %2126 = vmatmul.mubr.bf16.gmra.mrb[0].mxu0 %v2091
        %v2127 = vpop.f32.mrb[0].mxu0
        %v2128 = vadd.f32 %v2076, %v2127
        %v2129 = vpop.f32.mrb[0].mxu0
        %v2130 = vpop.f32.mrb[0].mxu0
        %v2131 = vpop.f32.mrb[0].mxu0
        %2132 = vdwg.mxu0
        %v2133 = vmul.f32 %v2128, 0.5
        %v2134 = vmul.f32 %v2128, 0.044715
        %v2135 = vmul.f32 %v2134, %v2128
        %v2136 = vmul.f32 %v2135, %v2128
        %v2137 = vadd.f32 %v2128, %v2136
        %v2138 = vmul.f32 %v2137, 0.7978846
        %v2139 = vtanh.pop %v2138
        %v2140 = vadd.f32 %v2139, 1.0
        %v2141 = vmul.f32 %v2133, %v2140
        %v2142 = vpack.c.bf16 %v2141, %v2141
        %v2143 = vld [vmem:[%s1237] sm:$0xf]
        %v2144 = vld [vmem:[%s1237 + $0x4] sm:$0xf]
        %v2145 = vld [vmem:[%s1237 + $0x8] sm:$0xf]
        %v2146 = vld [vmem:[%s1237 + $0xc] sm:$0xf]
        %v2147 = vld [vmem:[%s1237 + $0x10] sm:$0xf]
        %v2148 = vld [vmem:[%s1237 + $0x14] sm:$0xf]
        %v2149 = vld [vmem:[%s1237 + $0x18] sm:$0xf]
        %v2150 = vld [vmem:[%s1237 + $0x1c] sm:$0xf]
        %v2151 = vld [vmem:[%s1240] sm:$0x1]
        %v2153 = vlaneseq
        %v2154 = vshrl.u32 %v2153, 7
        %v2155 = vsub.s32 0, %v2154
        %v2156 = vrot.slane %v2151, %v2155
        %v2166 = vunpack.c.l.b16 %v2143
        %v2167 = vunpack.c.l.b16 %v2144
        %v2168 = vunpack.c.l.b16 %v2145
        %v2169 = vunpack.c.l.b16 %v2146
        %v2170 = vunpack.c.l.b16 %v2147
        %v2171 = vunpack.c.l.b16 %v2148
        %v2172 = vunpack.c.l.b16 %v2149
        %v2173 = vunpack.c.l.b16 %v2150
        %v2174 = vpack.c.b16 %v2167, %v2166
        %v2175 = vpack.c.b16 %v2169, %v2168
        %v2176 = vpack.c.b16 %v2171, %v2170
        %v2177 = vpack.c.b16 %v2173, %v2172
        %vm2182 = vcmask 523264
        %v2184 = vsel %vm2182, %v2142, 0
        %2186 = vmatprep.subr.bf16.mxu0 0
        %2187 = vmatpush1.bf16.msra.mxu0 %v2174
        %2188 = vmatprep.subr.bf16.mxu0 0
        %2189 = vmatpush1.bf16.msra.mxu0 %v2175
        %2190 = vmatprep.subr.bf16.mxu0 0
        %2191 = vmatpush1.bf16.msra.mxu0 %v2176
        %2192 = vmatprep.subr.bf16.mxu0 0
        %2193 = vmatpush1.bf16.msra.mxu0 %v2177
        %2194 = vmatprep.subr.bf16.mxu0 0
        %2195 = vmatpush1.bf16.msra.mxu0 0
        %2196 = vmatprep.subr.bf16.mxu0 0
        %2197 = vmatpush1.bf16.msra.mxu0 0
        %2198 = vmatprep.subr.bf16.mxu0 0
        %2199 = vmatpush1.bf16.msra.mxu0 0
        %2200 = vmatprep.subr.bf16.mxu0 0
        %2201 = vmatpush1.bf16.msra.mxu0 0
        %2202 = vmatprep.subr.bf16.mxu0 0
        %2203 = vmatpush1.bf16.msra.mxu0 0
        %2204 = vmatprep.subr.bf16.mxu0 0
        %2205 = vmatpush1.bf16.msra.mxu0 0
        %2206 = vmatprep.subr.bf16.mxu0 0
        %2207 = vmatpush1.bf16.msra.mxu0 0
        %2208 = vmatprep.subr.bf16.mxu0 0
        %2209 = vmatpush1.bf16.msra.mxu0 0
        %2210 = vmatprep.subr.bf16.mxu0 0
        %2211 = vmatpush1.bf16.msra.mxu0 0
        %2212 = vmatprep.subr.bf16.mxu0 0
        %2213 = vmatpush1.bf16.msra.mxu0 0
        %2214 = vmatprep.subr.bf16.mxu0 0
        %2215 = vmatpush1.bf16.msra.mxu0 0
        %2216 = vmatprep.subr.bf16.mxu0 0
        %2217 = vmatpush1.bf16.msra.mxu0 0
        %2218 = vmatprep.mubr.bf16.mxu0 0
        %2219 = vmatmul.mubr.bf16.gmra.mrb[0].mxu0 %v2184
        %v2220 = vpop.f32.mrb[0].mxu0
        %v2221 = vadd.f32 %v2156, %v2220
        %v2222 = vpop.f32.mrb[0].mxu0
        %v2223 = vpop.f32.mrb[0].mxu0
        %v2224 = vpop.f32.mrb[0].mxu0
        %2225 = vdwg.mxu0
        %v2226 = vadd.f32 %v2221, %v2036
        %2227 = vst.msk [vmem:[#allocation2] sm:$0xff] %vm1261, %v2226
        %p2228 = scmp.eq.s32.totalorder %s61, 1
        // Predicated region
        $region161: #{tpu_custom_call.1} parent=119 // pred_check
          %p2229 = pneg %p2228
        $region162: #{tpu_custom_call.1} parent=119 // pred_check_branch
          %2231 = sbr.rel (%p2229) target = $region164
        $region163: #{tpu_custom_call.1} parent=119 // pred_region
          %v2232 = vld [vmem:[%s21] sm:$0x1]
          %v2233 = vld [vmem:[%s22] sm:$0x1]
          %v2234 = vsel %vm1261, %v2226, 0.0
          %2235 = vadd.xlane.f32.xlu0 %v2234
          %v2236 = vpop.xlane.xlu0 %2235
          %v2237 = vmul.f32 %v2236, %v1265
          %v2238 = vsub.f32 %v2226, %v2237
          %v2239 = vmul.f32 %v2238, %v2238
          %v2240 = vsel %vm1261, %v2239, 0.0
          %2241 = vadd.xlane.f32.xlu0 %v2240
          %v2242 = vpop.xlane.xlu0 %2241
          %v2243 = vmul.f32 %v2242, %v1265
          %v2244 = vadd.f32 %v2243, 1e-06
          %v2245 = vrsqrt.pop %v2244
          %v2246 = vmul.f32 %v2238, %v2245
          %v2248 = vlaneseq
          %v2249 = vshrl.u32 %v2248, 7
          %v2250 = vsub.s32 0, %v2249
          %v2251 = vrot.slane %v2232, %v2250
          %v2253 = vmul.f32 %v2246, %v2251
          %v2255 = vlaneseq
          %v2256 = vshrl.u32 %v2255, 7
          %v2257 = vsub.s32 0, %v2256
          %v2258 = vrot.slane %v2233, %v2257
          %v2260 = vadd.f32 %v2253, %v2258
          %v2261 = vld [vmem:[%s23] sm:$0x1]
          %v2263 = vlaneseq
          %v2264 = vshrl.u32 %v2263, 7
          %v2265 = vsub.s32 0, %v2264
          %v2266 = vrot.slane %v2261, %v2265
          %v2268 = vmul.f32 %v2260, %v2266
          %v2269 = vsel %vm1261, %v2268, 0.0
          %2270 = vadd.xlane.f32.xlu0 %v2269
          %v2271 = vpop.xlane.xlu0 %2270
          %v2272 = vld [vmem:[#allocation4] sm:$0x1]
          %2274 = vset.pattern.permute.xlu0 0
          %2275 = vperm.xlu0 %2274, %v2272
          %v2276 = vpop.permute.xlu0 %2275
          %v2278 = vlaneseq
          %v2279 = vshrl.u32 %v2278, 7
          %v2280 = vsub.s32 0, %v2279
          %v2281 = vrot.slane %v2276, %v2280
          %v2282 = vadd.f32 %v2271, %v2281
          %v2283 = vxor.u32 %v2282, 2147483648
          %v2284 = vmul.f32 %v2283, 1.442695
          %v2285 = vpow.pop %v2284
          %v2286 = vadd.f32 %v2285, 1.0
          %v2287 = vrcp.pop %v2286
          %v2288 = vmul.f32 1.0, %v2287
          %v2289 = vld [vmem:[%s999] sm:$0x1]
          %v2291 = vlaneseq
          %v2292 = vshrl.u32 %v2291, 7
          %v2293 = vsub.s32 0, %v2292
          %v2294 = vrot.slane %v2289, %v2293
          %2296 = vbcast.lane.b32.xlu0 %v2294, 256
          %v2297 = vpop.permute.xlu0 %2296
          %v2299 = vmul.f32 %v2288, %v2297
          %2301 = vset.pattern.permute.xlu0 0
          %2302 = vperm.xlu0 %2301, %v2299
          %v2303 = vpop.permute.xlu0 %2302
          %v2304 = vlaneseq
          %v2305 = vand.u32 %v2304, 127
          %v2306 = vlaneseq
          %v2307 = vshrl.u32 %v2306, 7
          %v2308 = vsub.s32 %v2305, %v2307
          %v2309 = vrot.slane %v2303, %v2308
          %vm2311 = vcmask 57344
          %2312 = vst.msk [vmem:[%s1193] sm:$0x1] %vm2311, %v2309
        $region164: #{tpu_custom_call.1} parent=119 // pred_fallthru
          _
        %s2313 = sand.u32 %s701, 1
        %s2314 = scalar_lea.sflag [#allocation7], %s2313
        %s2315 = sand.u32 %s701, 1
        %s2316 = scalar_lea.vmem [#allocation20], %s2315
        // Predicated region
        $region165: #{tpu_custom_call.1} parent=119 // pred_check
          %p2317 = pneg %p711
        $region166: #{tpu_custom_call.1} parent=119 // pred_check_branch
          %2319 = sbr.rel (%p2317) target = $region168
        $region167: #{tpu_custom_call.1} parent=119 // pred_region
          %s2321 = ssub.s32 16, 16
          %2322 = vsyncadd %s2314, %s2321
          %s2323 = smul.addr %s60, 16
          %s2324 = scalar_lea.hbm %s25, %s2323
          %s2326 = sshll.u32 %s2316, 4
          %s2327 = int_to_ptr.vmem [resolvable:$true] %s2326
          %2329 = dma.vmem_to_hbm [thread:$0]  %s2327, 16, %s2324, %s2314
        $region168: #{tpu_custom_call.1} parent=119 // pred_fallthru
          _
      $region120: #{tpu_custom_call.1} parent=5 // pred_fallthru
        _
      %p2330 = scmp.le.s32.totalorder 2, %s51
      // Predicated region
      $region169: #{tpu_custom_call.1} parent=5 // pred_check
        %p2331 = pneg %p2330
      $region170: #{tpu_custom_call.1} parent=5 // pred_check_branch
        %2333 = sbr.rel (%p2331) target = $region172
      $region171: #{tpu_custom_call.1} parent=5 // pred_region
        %s2334 = ssub.s32 %s51, 2
        // Predicated region
        $region173: #{tpu_custom_call.1} parent=171 // pred_check
          %p2335 = pneg %p717
        $region174: #{tpu_custom_call.1} parent=171 // pred_check_branch
          %2337 = sbr.rel (%p2335) target = $region176
        $region175: #{tpu_custom_call.1} parent=171 // pred_region
          %s2338 = sand.u32 %s702, 1
          %s2339 = scalar_lea.sflag [#allocation7], %s2338
          %s2340 = sand.u32 %s702, 1
          %s2341 = scalar_lea.vmem [#allocation20], %s2340
          %2342 = dma.done %s2339, 16
        $region176: #{tpu_custom_call.1} parent=171 // pred_fallthru
          _
      $region172: #{tpu_custom_call.1} parent=5 // pred_fallthru
        _
    $region6: #{tpu_custom_call.1} parent=1 // loop_footer
      %s55 = sadd.s32 1, %s51
    $region7: #{tpu_custom_call.1} parent=1 // loop_footer_branch
      %50 = sbr.rel target = $region3
    $region8: #{tpu_custom_call.1} parent=1 // loop_exit
      _
    %2343 = vsyncpa [#allocation6], 1
    %s2344 = scalar_lea.sflag [#allocation6], 1
    %2345 = vsyncpa %s2344, 1
    %2346 = vsyncpa [#allocation9], 1
    %s2347 = scalar_lea.sflag [#allocation9], 1
    %2348 = vsyncpa %s2347, 1
    %2349 = vsyncpa [#allocation12], 1
    %s2350 = scalar_lea.sflag [#allocation12], 1
    %2351 = vsyncpa %s2350, 1
    %2352 = vsyncpa [#allocation15], 1
    %s2353 = scalar_lea.sflag [#allocation15], 1
    %2354 = vsyncpa %s2353, 1
    %2355 = vsyncpa [#allocation18], 1
    %s2356 = scalar_lea.sflag [#allocation18], 1
    %2357 = vsyncpa %s2356, 1
    %2358 = vsyncpa [#allocation7], 1
    %s2359 = scalar_lea.sflag [#allocation7], 1
    %2360 = vsyncpa %s2359, 1

</llo_original>
